<compile_context>
chip_gen: v7x
topology: tpu7x:2x2x1
jax: 0.10.0
libtpu: 0.0.40
codegen_flags: <defaults>
</compile_context>

<pallas_src>
import functools

import jax
import jax.numpy as jnp
from jax.experimental import pallas as pl
from jax.experimental.pallas import tpu as pltpu

_SP1 = ((0, 0), (1, 1), (1, 1), (0, 0))        # NHWC spatial zero-pad of 1


# ----------------------- JAX-side layout helpers (no byte inflation) ---------


def _s2d(x, s=2):
    """Space-to-depth (block s). Pure layout transform."""
    N, H, W, C = x.shape
    assert H % s == 0 and W % s == 0, (H, W, s)
    x = x.reshape(N, H // s, s, W // s, s, C)
    x = jnp.transpose(x, (0, 1, 3, 2, 4, 5))
    return x.reshape(N, H // s, W // s, s * s * C)


def _s2d_weight(w, s=2):
    """(k,k,Cin,Cout) HWIO weight (k even) -> stride-1 (k//s,k//s) weight on the
    space-to-depth input.  Matches _s2d's (sh, sw, c) channel ordering."""
    k, _, cin, cout = w.shape
    w = w.reshape(k // s, s, k // s, s, cin, cout)
    w = jnp.transpose(w, (0, 2, 1, 3, 4, 5))
    return w.reshape(k // s, k // s, s * s * cin, cout)


def _flatten_rows(x):
    """(N, H, W, C) -> (N, H*W, C)."""
    N, H, W, C = x.shape
    return x.reshape(N, H * W, C)


# ------------------------------- conv kernel ---------------------------------


def _conv_kernel(k, img_w, apply_relu, x_ref, w_ref, b_ref, o_ref):
    """VALID kxk stride-1 conv on one flattened image, fused bias (+ReLU).

    x_ref: (1, h_in*img_w + k-1, Cin) bf16   flattened rows (+ zero slack rows)
    w_ref: (k, k, Cin, Cout)          bf16   (pre-cast in the wrapper)
    b_ref: (1, Cout)                  f32
    o_ref: (1, h_out*img_w, Cout)            full-width rows; the (k-1) garbage
           right-edge columns of each row are sliced off by the wrapper.

    All k*k taps accumulate into ONE (h_out*img_w, Cout) f32 accumulator, so
    every MXU matmul has M = h_out*img_w instead of M = W_out.
    """
    m_out, c_out = o_ref.shape[1], o_ref.shape[2]
    x = x_ref[0].astype(jnp.float32)                       # single whole-block load
    acc = jnp.broadcast_to(b_ref[...], (m_out, c_out))     # bias-initialized acc
    for a in range(k):
        for b in range(k):
            off = a * img_w + b
            acc = acc + jnp.dot(x[off:off + m_out, :].astype(jnp.bfloat16),
                                w_ref[a, b],
                                preferred_element_type=jnp.float32)
    if apply_relu:
        acc = jnp.maximum(acc, 0.0)
    o_ref[0] = acc.astype(o_ref.dtype)


def conv_valid_pallas(x, w, bias, *, relu, out_dtype=jnp.bfloat16):
    """VALID kxk stride-1 conv.  x: (N,Hin,Win,Cin); w: (k,k,Cin,Cout) bf16;
    bias: (Cout,) f32.  Returns (N, Hout, Wout, Cout) in out_dtype."""
    N, h_in, w_in, c_in = x.shape
    k, _, _, c_out = w.shape
    h_out, w_out = h_in - k + 1, w_in - k + 1
    m_out = h_out * w_in

    xf = _flatten_rows(x).astype(jnp.bfloat16)
    xf = jnp.pad(xf, ((0, 0), (0, k - 1), (0, 0)))         # slack rows for last taps
    m_in = xf.shape[1]

    yf = pl.pallas_call(
        functools.partial(_conv_kernel, k, w_in, relu),
        out_shape=jax.ShapeDtypeStruct((N, m_out, c_out), out_dtype),
        grid=(N,),
        in_specs=[
            pl.BlockSpec((1, m_in, c_in), lambda n: (n, 0, 0)),
            pl.BlockSpec((k, k, c_in, c_out), lambda n: (0, 0, 0, 0)),
            pl.BlockSpec((1, c_out), lambda n: (0, 0)),
        ],
        out_specs=pl.BlockSpec((1, m_out, c_out), lambda n: (n, 0, 0)),
        compiler_params=pltpu.CompilerParams(dimension_semantics=("parallel",)),
    )(xf, w, bias.reshape(1, c_out))

    # Drop the (k-1) garbage right-edge columns of every output row (cheap XLA slice).
    return yf.reshape(N, h_out, w_in, c_out)[:, :, :w_out, :]


# -------------------- fused conv3 + ResidualStack kernel ---------------------


def _res_stack_kernel(w_pad, x_ref, w3_ref, b3_ref, rw1_ref, rw2_ref,
                      mask_ref, o_ref, carry):
    """conv3 (3x3, pad 1, +bias) fused with the whole ResidualStack.

    Grid = (batch, layer).  The activation lives in `carry` (VMEM, padded
    flattened-row layout) across layers; the zero 1-pixel border is written once
    at layer == 0 and each layer only updates the interior, so nothing touches
    HBM between conv3 and/or between residual layers.

    x_ref   : (1, (H+2)*(W+2)+2, C) bf16  conv2 output, zero-padded + flattened
    w3_ref  : (3, 3, C, C) bf16 ; b3_ref : (1, C) f32
    rw1_ref : (3, 3, C, R) bf16 ; rw2_ref: (R, C) bf16   (shared across layers)
    mask_ref: (H*(W+2), 1) f32   1.0 on valid columns, 0.0 on the 2 garbage ones
    o_ref   : (1, H*(W+2), C) f32
    carry   : ((H+2)*(W+2)+2, C) f32 scratch
    """
    m_out, c = o_ref.shape[1], o_ref.shape[2]
    r_dim = rw1_ref.shape[-1]
    layer = pl.program_id(1)
    mask = mask_ref[...]                                   # (m_out, 1)
    lo = w_pad + 1                                         # first interior row

    def conv3x3(src_f32, wt_ref, acc):
        for a in range(3):
            for b in range(3):
                off = a * w_pad + b
                acc = acc + jnp.dot(
                    src_f32[off:off + m_out, :].astype(jnp.bfloat16),
                    wt_ref[a, b], preferred_element_type=jnp.float32)
        return acc

    @pl.when(layer == 0)
    def _():
        # conv3 into the carry interior; zero border written once, stays zero.
        carry[...] = jnp.zeros_like(carry)
        c3 = conv3x3(x_ref[0].astype(jnp.float32), w3_ref,
                     jnp.broadcast_to(b3_ref[...], (m_out, c)))
        carry[pl.ds(lo, m_out), :] = c3 * mask

    # ---- one residual layer: x <- x + conv1x1(relu(conv3x3(relu(x)))) -------
    xf = jnp.maximum(carry[...], 0.0)                      # relu; border stays 0
    h = conv3x3(xf, rw1_ref, jnp.zeros((m_out, r_dim), jnp.float32))
    h = jnp.maximum(h, 0.0).astype(jnp.bfloat16)           # (m_out, R)
    y = jnp.dot(h, rw2_ref[...], preferred_element_type=jnp.float32)
    x_int = carry[pl.ds(lo, m_out), :]                     # skip connection (pre-relu)
    carry[pl.ds(lo, m_out), :] = x_int + y * mask          # masked: border stays 0

    @pl.when(layer == pl.num_programs(1) - 1)
    def _():
        o_ref[0] = jnp.maximum(carry[pl.ds(lo, m_out), :], 0.0)  # final F.relu


def conv3_res_stack_pallas(x, w3, b3, rw1, rw2, n_res_layers):
    """x: (N,H,W,C) conv2 output (post-ReLU, bf16).  Returns (N,H,W,C) f32."""
    N, H, W, C = x.shape
    R = rw1.shape[-1]
    Wp = W + 2
    m_out = H * Wp
    m_in = (H + 2) * Wp + 2                                # +2 slack rows for 3x3 taps

    xf = jnp.pad(_flatten_rows(jnp.pad(x, _SP1)).astype(jnp.bfloat16),
                 ((0, 0), (0, 2), (0, 0)))
    col = jnp.arange(m_out, dtype=jnp.int32) % Wp
    mask = (col < W).astype(jnp.float32).reshape(m_out, 1)

    yf = pl.pallas_call(
        functools.partial(_res_stack_kernel, Wp),
        out_shape=jax.ShapeDtypeStruct((N, m_out, C), jnp.float32),
        grid=(N, n_res_layers),
        in_specs=[
            pl.BlockSpec((1, m_in, C), lambda n, l: (n, 0, 0)),
            pl.BlockSpec((3, 3, C, C), lambda n, l: (0, 0, 0, 0)),
            pl.BlockSpec((1, C), lambda n, l: (0, 0)),
            pl.BlockSpec((3, 3, C, R), lambda n, l: (0, 0, 0, 0)),
            pl.BlockSpec((R, C), lambda n, l: (0, 0)),
            pl.BlockSpec((m_out, 1), lambda n, l: (0, 0)),
        ],
        out_specs=pl.BlockSpec((1, m_out, C), lambda n, l: (n, 0, 0)),
        scratch_shapes=[pltpu.VMEM((m_in, C), jnp.float32)],
        compiler_params=pltpu.CompilerParams(
            dimension_semantics=("parallel", "arbitrary")),
    )(xf, w3, b3.reshape(1, C), rw1, rw2, mask)

    return yf.reshape(N, H, Wp, C)[:, :, :W, :]


# ----------------------------- Encoder forward -------------------------------


def init_params(key, in_dim, h_dim, res_h_dim):
    ks = jax.random.split(key, 8)

    def conv_w(k, kh, kw, cin, cout):
        fan_in = kh * kw * cin
        return jax.random.normal(k, (kh, kw, cin, cout), jnp.float32) / jnp.sqrt(
            jnp.float32(fan_in))

    return {
        "w1": conv_w(ks[0], 4, 4, in_dim, h_dim // 2),
        "b1": 0.01 * jax.random.normal(ks[1], (h_dim // 2,), jnp.float32),
        "w2": conv_w(ks[2], 4, 4, h_dim // 2, h_dim),
        "b2": 0.01 * jax.random.normal(ks[3], (h_dim,), jnp.float32),
        "w3": conv_w(ks[4], 3, 3, h_dim, h_dim),
        "b3": 0.01 * jax.random.normal(ks[5], (h_dim,), jnp.float32),
        # Residual layer (shared across all n_res_layers, bias=False in PyTorch)
        "rw1": conv_w(ks[6], 3, 3, h_dim, res_h_dim),
        "rw2": conv_w(ks[7], 1, 1, res_h_dim, h_dim),
    }


def encoder_forward(x_nchw, params, n_res_layers):
    x = jnp.transpose(x_nchw, (0, 2, 3, 1)).astype(jnp.float32)   # NCHW -> NHWC

    # Pre-cast weights to bf16 once (f32 accumulation stays in-kernel).
    w1 = _s2d_weight(params["w1"]).astype(jnp.bfloat16)
    w2 = _s2d_weight(params["w2"]).astype(jnp.bfloat16)
    w3 = params["w3"].astype(jnp.bfloat16)
    rw1 = params["rw1"].astype(jnp.bfloat16)
    res_h, h_dim = params["rw2"].shape[2], params["rw2"].shape[3]
    rw2 = params["rw2"].reshape(res_h, h_dim).astype(jnp.bfloat16)

    # conv1/conv2: 4x4 stride-2 pad-1  ==  pad + space-to-depth + 2x2 VALID conv
    # (+bias +ReLU fused in the kernel).  Outputs stay bf16 in HBM.
    x = conv_valid_pallas(_s2d(jnp.pad(x, _SP1)), w1, params["b1"], relu=True)
    x = conv_valid_pallas(_s2d(jnp.pad(x, _SP1)), w2, params["b2"], relu=True)

    # conv3 (3x3 pad 1, +bias, no ReLU) fused with the full ResidualStack
    # (+ its final F.relu) in a single pallas_call.
    x = conv3_res_stack_pallas(x, w3, params["b3"], rw1, rw2, n_res_layers)

    return jnp.transpose(x, (0, 3, 1, 2))                          # NHWC -> NCHW


# ----------------------------- pure-JAX reference ----------------------------


def encoder_ref(x_nchw, params, n_res_layers):
    x = jnp.transpose(x_nchw, (0, 2, 3, 1)).astype(jnp.float32)

    def conv(x, w, b, stride, pad):
        y = jax.lax.conv_general_dilated(
            x, w, (stride, stride), ((pad, pad), (pad, pad)),
            dimension_numbers=("NHWC", "HWIO", "NHWC"))
        return y if b is None else y + b

    x = jax.nn.relu(conv(x, params["w1"], params["b1"], 2, 1))
    x = jax.nn.relu(conv(x, params["w2"], params["b2"], 2, 1))
    x = conv(x, params["w3"], params["b3"], 1, 1)
    for _ in range(n_res_layers):
        h = jax.nn.relu(conv(jax.nn.relu(x), params["rw1"], None, 1, 1))
        x = x + conv(h, params["rw2"], None, 1, 0)
    x = jax.nn.relu(x)
    return jnp.transpose(x, (0, 3, 1, 2))


# ----------------------------------- main -------------------------------------


if __name__ == "__main__":
    in_dim, h_dim, n_res_layers, res_h_dim = 3, 32, 2, 8
    key = jax.random.PRNGKey(0)
    k_x, k_p = jax.random.split(key)

    x = jax.random.normal(k_x, (2, in_dim, 16, 16), jnp.float32)   # NCHW, like PyTorch
    params = init_params(k_p, in_dim, h_dim, res_h_dim)

    fwd = jax.jit(encoder_forward, static_argnums=(2,))
    out = jax.block_until_ready(fwd(x, params, n_res_layers))

    ref = jax.block_until_ready(encoder_ref(x, params, n_res_layers))
    assert out.shape == (2, h_dim, 4, 4), out.shape
    # bf16 MXU operands / bf16 inter-kernel activations (f32 accumulation)
    # => looser tolerance than a pure-f32 run.
    assert jnp.allclose(out, ref, rtol=5e-2, atol=5e-2), float(
        jnp.max(jnp.abs(out - ref)))

    print("KERNEL_OK")
</pallas_src>

<mosaic_0001>
module attributes {stable_mosaic.version = 11 : i64} {
  func.func @_conv_kernel(%arg0: i32, %arg1: memref<1x82x12xbf16, #tpu.memory_space<vmem>>, %arg2: memref<2x2x12x16xbf16, #tpu.memory_space<vmem>>, %arg3: memref<1x16xf32, #tpu.memory_space<vmem>>, %arg4: memref<1x72x16xbf16, #tpu.memory_space<vmem>>) attributes {dimension_semantics = [#tpu.dimension_semantics<parallel>], iteration_bounds = array<i64: 2>, scalar_prefetch = 0 : i64, scratch_operands = 0 : i64, tpu.core_type = #tpu.core_type<tc>, window_params = [{transform_indices = @transform_0, window_bounds = array<i64: 1, 82, 12>}, {pipeline_mode = #tpu.pipeline_mode<synchronous>, transform_indices = @transform_1, window_bounds = array<i64: 2, 2, 12, 16>}, {pipeline_mode = #tpu.pipeline_mode<synchronous>, transform_indices = @transform_2, window_bounds = array<i64: 1, 16>}, {transform_indices = @transform_3, window_bounds = array<i64: 1, 72, 16>}]} {
    %c0 = arith.constant 0 : index
    %c0_0 = arith.constant 0 : index
    %c0_1 = arith.constant 0 : index
    %0 = vector.load %arg1[%c0, %c0_0, %c0_1] : memref<1x82x12xbf16, #tpu.memory_space<vmem>>, vector<1x82x12xbf16>
    %1 = vector.shape_cast %0 : vector<1x82x12xbf16> to vector<82x12xbf16>
    %2 = arith.extf %1 : vector<82x12xbf16> to vector<82x12xf32>
    %c0_2 = arith.constant 0 : index
    %c0_3 = arith.constant 0 : index
    %3 = vector.load %arg3[%c0_2, %c0_3] : memref<1x16xf32, #tpu.memory_space<vmem>>, vector<1x16xf32>
    %4 = vector.shape_cast %3 : vector<1x16xf32> to vector<1x16xf32>
    %5 = vector.broadcast %4 : vector<1x16xf32> to vector<72x16xf32>
    %6 = vector.extract_strided_slice %2 {offsets = [0, 0], sizes = [72, 12], strides = [1, 1]} : vector<82x12xf32> to vector<72x12xf32>
    %7 = arith.truncf %6 : vector<72x12xf32> to vector<72x12xbf16>
    %c0_4 = arith.constant 0 : index
    %c0_5 = arith.constant 0 : index
    %c0_6 = arith.constant 0 : index
    %c0_7 = arith.constant 0 : index
    %8 = vector.load %arg2[%c0_4, %c0_5, %c0_6, %c0_7] : memref<2x2x12x16xbf16, #tpu.memory_space<vmem>>, vector<1x1x12x16xbf16>
    %9 = vector.shape_cast %8 : vector<1x1x12x16xbf16> to vector<12x16xbf16>
    %cst = arith.constant dense<0.000000e+00> : vector<72x16xf32>
    %10 = tpu.matmul %7, %9, %cst {dimension_numbers = #tpu.dot_dimension_numbers<[1], [0], [0], [1], [0, 0, 1, 1], [], []>} : vector<72x12xbf16>, vector<12x16xbf16>, vector<72x16xf32> -> vector<72x16xf32>
    %11 = arith.addf %5, %10 : vector<72x16xf32>
    %12 = vector.extract_strided_slice %2 {offsets = [1, 0], sizes = [72, 12], strides = [1, 1]} : vector<82x12xf32> to vector<72x12xf32>
    %13 = arith.truncf %12 : vector<72x12xf32> to vector<72x12xbf16>
    %c0_8 = arith.constant 0 : index
    %c1 = arith.constant 1 : index
    %c0_9 = arith.constant 0 : index
    %c0_10 = arith.constant 0 : index
    %14 = vector.load %arg2[%c0_8, %c1, %c0_9, %c0_10] : memref<2x2x12x16xbf16, #tpu.memory_space<vmem>>, vector<1x1x12x16xbf16>
    %15 = vector.shape_cast %14 : vector<1x1x12x16xbf16> to vector<12x16xbf16>
    %cst_11 = arith.constant dense<0.000000e+00> : vector<72x16xf32>
    %16 = tpu.matmul %13, %15, %cst_11 {dimension_numbers = #tpu.dot_dimension_numbers<[1], [0], [0], [1], [0, 0, 1, 1], [], []>} : vector<72x12xbf16>, vector<12x16xbf16>, vector<72x16xf32> -> vector<72x16xf32>
    %17 = arith.addf %11, %16 : vector<72x16xf32>
    %18 = vector.extract_strided_slice %2 {offsets = [9, 0], sizes = [72, 12], strides = [1, 1]} : vector<82x12xf32> to vector<72x12xf32>
    %19 = arith.truncf %18 : vector<72x12xf32> to vector<72x12xbf16>
    %c1_12 = arith.constant 1 : index
    %c0_13 = arith.constant 0 : index
    %c0_14 = arith.constant 0 : index
    %c0_15 = arith.constant 0 : index
    %20 = vector.load %arg2[%c1_12, %c0_13, %c0_14, %c0_15] : memref<2x2x12x16xbf16, #tpu.memory_space<vmem>>, vector<1x1x12x16xbf16>
    %21 = vector.shape_cast %20 : vector<1x1x12x16xbf16> to vector<12x16xbf16>
    %cst_16 = arith.constant dense<0.000000e+00> : vector<72x16xf32>
    %22 = tpu.matmul %19, %21, %cst_16 {dimension_numbers = #tpu.dot_dimension_numbers<[1], [0], [0], [1], [0, 0, 1, 1], [], []>} : vector<72x12xbf16>, vector<12x16xbf16>, vector<72x16xf32> -> vector<72x16xf32>
    %23 = arith.addf %17, %22 : vector<72x16xf32>
    %24 = vector.extract_strided_slice %2 {offsets = [10, 0], sizes = [72, 12], strides = [1, 1]} : vector<82x12xf32> to vector<72x12xf32>
    %25 = arith.truncf %24 : vector<72x12xf32> to vector<72x12xbf16>
    %c1_17 = arith.constant 1 : index
    %c1_18 = arith.constant 1 : index
    %c0_19 = arith.constant 0 : index
    %c0_20 = arith.constant 0 : index
    %26 = vector.load %arg2[%c1_17, %c1_18, %c0_19, %c0_20] : memref<2x2x12x16xbf16, #tpu.memory_space<vmem>>, vector<1x1x12x16xbf16>
    %27 = vector.shape_cast %26 : vector<1x1x12x16xbf16> to vector<12x16xbf16>
    %cst_21 = arith.constant dense<0.000000e+00> : vector<72x16xf32>
    %28 = tpu.matmul %25, %27, %cst_21 {dimension_numbers = #tpu.dot_dimension_numbers<[1], [0], [0], [1], [0, 0, 1, 1], [], []>} : vector<72x12xbf16>, vector<12x16xbf16>, vector<72x16xf32> -> vector<72x16xf32>
    %29 = arith.addf %23, %28 : vector<72x16xf32>
    %cst_22 = arith.constant 0.000000e+00 : f32
    %30 = vector.broadcast %cst_22 : f32 to vector<72x16xf32>
    %31 = arith.maximumf %29, %30 : vector<72x16xf32>
    %32 = arith.truncf %31 : vector<72x16xf32> to vector<72x16xbf16>
    %c0_23 = arith.constant 0 : index
    %c0_24 = arith.constant 0 : index
    %c0_25 = arith.constant 0 : index
    %33 = vector.load %arg4[%c0_23, %c0_24, %c0_25] : memref<1x72x16xbf16, #tpu.memory_space<vmem>>, vector<1x72x16xbf16>
    %34 = vector.shape_cast %33 : vector<1x72x16xbf16> to vector<72x16xbf16>
    %35 = vector.shape_cast %32 : vector<72x16xbf16> to vector<1x72x16xbf16>
    tpu.vector_store %arg4[%c0_23, %c0_24, %c0_25], %35 {strides = array<i32>} : memref<1x72x16xbf16, #tpu.memory_space<vmem>>, vector<1x72x16xbf16>,
    return
  }
  func.func @transform_0(%arg0: i32) -> (i32, i32, i32) {
    %c0_i32 = arith.constant 0 : i32
    %c0_i32_0 = arith.constant 0 : i32
    %c0_i32_1 = arith.constant 0 : i32
    return %arg0, %c0_i32, %c0_i32_0 : i32, i32, i32
  }
  func.func @transform_1(%arg0: i32) -> (i32, i32, i32, i32) {
    %c0_i32 = arith.constant 0 : i32
    %c0_i32_0 = arith.constant 0 : i32
    %c0_i32_1 = arith.constant 0 : i32
    %c0_i32_2 = arith.constant 0 : i32
    %c0_i32_3 = arith.constant 0 : i32
    return %c0_i32, %c0_i32_0, %c0_i32_1, %c0_i32_2 : i32, i32, i32, i32
  }
  func.func @transform_2(%arg0: i32) -> (i32, i32) {
    %c0_i32 = arith.constant 0 : i32
    %c0_i32_0 = arith.constant 0 : i32
    %c0_i32_1 = arith.constant 0 : i32
    return %c0_i32, %c0_i32_0 : i32, i32
  }
  func.func @transform_3(%arg0: i32) -> (i32, i32, i32) {
    %c0_i32 = arith.constant 0 : i32
    %c0_i32_0 = arith.constant 0 : i32
    %c0_i32_1 = arith.constant 0 : i32
    return %arg0, %c0_i32, %c0_i32_0 : i32, i32, i32
  }
}

module attributes {stable_mosaic.version = 11 : i64} {
  func.func @_conv_kernel(%arg0: i32, %arg1: memref<1x26x64xbf16, #tpu.memory_space<vmem>>, %arg2: memref<2x2x64x32xbf16, #tpu.memory_space<vmem>>, %arg3: memref<1x32xf32, #tpu.memory_space<vmem>>, %arg4: memref<1x20x32xbf16, #tpu.memory_space<vmem>>) attributes {dimension_semantics = [#tpu.dimension_semantics<parallel>], iteration_bounds = array<i64: 2>, scalar_prefetch = 0 : i64, scratch_operands = 0 : i64, tpu.core_type = #tpu.core_type<tc>, window_params = [{transform_indices = @transform_0, window_bounds = array<i64: 1, 26, 64>}, {pipeline_mode = #tpu.pipeline_mode<synchronous>, transform_indices = @transform_1, window_bounds = array<i64: 2, 2, 64, 32>}, {pipeline_mode = #tpu.pipeline_mode<synchronous>, transform_indices = @transform_2, window_bounds = array<i64: 1, 32>}, {transform_indices = @transform_3, window_bounds = array<i64: 1, 20, 32>}]} {
    %c0 = arith.constant 0 : index
    %c0_0 = arith.constant 0 : index
    %c0_1 = arith.constant 0 : index
    %0 = vector.load %arg1[%c0, %c0_0, %c0_1] : memref<1x26x64xbf16, #tpu.memory_space<vmem>>, vector<1x26x64xbf16>
    %1 = vector.shape_cast %0 : vector<1x26x64xbf16> to vector<26x64xbf16>
    %2 = arith.extf %1 : vector<26x64xbf16> to vector<26x64xf32>
    %c0_2 = arith.constant 0 : index
    %c0_3 = arith.constant 0 : index
    %3 = vector.load %arg3[%c0_2, %c0_3] : memref<1x32xf32, #tpu.memory_space<vmem>>, vector<1x32xf32>
    %4 = vector.shape_cast %3 : vector<1x32xf32> to vector<1x32xf32>
    %5 = vector.broadcast %4 : vector<1x32xf32> to vector<20x32xf32>
    %6 = vector.extract_strided_slice %2 {offsets = [0, 0], sizes = [20, 64], strides = [1, 1]} : vector<26x64xf32> to vector<20x64xf32>
    %7 = arith.truncf %6 : vector<20x64xf32> to vector<20x64xbf16>
    %c0_4 = arith.constant 0 : index
    %c0_5 = arith.constant 0 : index
    %c0_6 = arith.constant 0 : index
    %c0_7 = arith.constant 0 : index
    %8 = vector.load %arg2[%c0_4, %c0_5, %c0_6, %c0_7] : memref<2x2x64x32xbf16, #tpu.memory_space<vmem>>, vector<1x1x64x32xbf16>
    %9 = vector.shape_cast %8 : vector<1x1x64x32xbf16> to vector<64x32xbf16>
    %cst = arith.constant dense<0.000000e+00> : vector<20x32xf32>
    %10 = tpu.matmul %7, %9, %cst {dimension_numbers = #tpu.dot_dimension_numbers<[1], [0], [0], [1], [0, 0, 1, 1], [], []>} : vector<20x64xbf16>, vector<64x32xbf16>, vector<20x32xf32> -> vector<20x32xf32>
    %11 = arith.addf %5, %10 : vector<20x32xf32>
    %12 = vector.extract_strided_slice %2 {offsets = [1, 0], sizes = [20, 64], strides = [1, 1]} : vector<26x64xf32> to vector<20x64xf32>
    %13 = arith.truncf %12 : vector<20x64xf32> to vector<20x64xbf16>
    %c0_8 = arith.constant 0 : index
    %c1 = arith.constant 1 : index
    %c0_9 = arith.constant 0 : index
    %c0_10 = arith.constant 0 : index
    %14 = vector.load %arg2[%c0_8, %c1, %c0_9, %c0_10] : memref<2x2x64x32xbf16, #tpu.memory_space<vmem>>, vector<1x1x64x32xbf16>
    %15 = vector.shape_cast %14 : vector<1x1x64x32xbf16> to vector<64x32xbf16>
    %cst_11 = arith.constant dense<0.000000e+00> : vector<20x32xf32>
    %16 = tpu.matmul %13, %15, %cst_11 {dimension_numbers = #tpu.dot_dimension_numbers<[1], [0], [0], [1], [0, 0, 1, 1], [], []>} : vector<20x64xbf16>, vector<64x32xbf16>, vector<20x32xf32> -> vector<20x32xf32>
    %17 = arith.addf %11, %16 : vector<20x32xf32>
    %18 = vector.extract_strided_slice %2 {offsets = [5, 0], sizes = [20, 64], strides = [1, 1]} : vector<26x64xf32> to vector<20x64xf32>
    %19 = arith.truncf %18 : vector<20x64xf32> to vector<20x64xbf16>
    %c1_12 = arith.constant 1 : index
    %c0_13 = arith.constant 0 : index
    %c0_14 = arith.constant 0 : index
    %c0_15 = arith.constant 0 : index
    %20 = vector.load %arg2[%c1_12, %c0_13, %c0_14, %c0_15] : memref<2x2x64x32xbf16, #tpu.memory_space<vmem>>, vector<1x1x64x32xbf16>
    %21 = vector.shape_cast %20 : vector<1x1x64x32xbf16> to vector<64x32xbf16>
    %cst_16 = arith.constant dense<0.000000e+00> : vector<20x32xf32>
    %22 = tpu.matmul %19, %21, %cst_16 {dimension_numbers = #tpu.dot_dimension_numbers<[1], [0], [0], [1], [0, 0, 1, 1], [], []>} : vector<20x64xbf16>, vector<64x32xbf16>, vector<20x32xf32> -> vector<20x32xf32>
    %23 = arith.addf %17, %22 : vector<20x32xf32>
    %24 = vector.extract_strided_slice %2 {offsets = [6, 0], sizes = [20, 64], strides = [1, 1]} : vector<26x64xf32> to vector<20x64xf32>
    %25 = arith.truncf %24 : vector<20x64xf32> to vector<20x64xbf16>
    %c1_17 = arith.constant 1 : index
    %c1_18 = arith.constant 1 : index
    %c0_19 = arith.constant 0 : index
    %c0_20 = arith.constant 0 : index
    %26 = vector.load %arg2[%c1_17, %c1_18, %c0_19, %c0_20] : memref<2x2x64x32xbf16, #tpu.memory_space<vmem>>, vector<1x1x64x32xbf16>
    %27 = vector.shape_cast %26 : vector<1x1x64x32xbf16> to vector<64x32xbf16>
    %cst_21 = arith.constant dense<0.000000e+00> : vector<20x32xf32>
    %28 = tpu.matmul %25, %27, %cst_21 {dimension_numbers = #tpu.dot_dimension_numbers<[1], [0], [0], [1], [0, 0, 1, 1], [], []>} : vector<20x64xbf16>, vector<64x32xbf16>, vector<20x32xf32> -> vector<20x32xf32>
    %29 = arith.addf %23, %28 : vector<20x32xf32>
    %cst_22 = arith.constant 0.000000e+00 : f32
    %30 = vector.broadcast %cst_22 : f32 to vector<20x32xf32>
    %31 = arith.maximumf %29, %30 : vector<20x32xf32>
    %32 = arith.truncf %31 : vector<20x32xf32> to vector<20x32xbf16>
    %c0_23 = arith.constant 0 : index
    %c0_24 = arith.constant 0 : index
    %c0_25 = arith.constant 0 : index
    %33 = vector.load %arg4[%c0_23, %c0_24, %c0_25] : memref<1x20x32xbf16, #tpu.memory_space<vmem>>, vector<1x20x32xbf16>
    %34 = vector.shape_cast %33 : vector<1x20x32xbf16> to vector<20x32xbf16>
    %35 = vector.shape_cast %32 : vector<20x32xbf16> to vector<1x20x32xbf16>
    tpu.vector_store %arg4[%c0_23, %c0_24, %c0_25], %35 {strides = array<i32>} : memref<1x20x32xbf16, #tpu.memory_space<vmem>>, vector<1x20x32xbf16>,
    return
  }
  func.func @transform_0(%arg0: i32) -> (i32, i32, i32) {
    %c0_i32 = arith.constant 0 : i32
    %c0_i32_0 = arith.constant 0 : i32
    %c0_i32_1 = arith.constant 0 : i32
    return %arg0, %c0_i32, %c0_i32_0 : i32, i32, i32
  }
  func.func @transform_1(%arg0: i32) -> (i32, i32, i32, i32) {
    %c0_i32 = arith.constant 0 : i32
    %c0_i32_0 = arith.constant 0 : i32
    %c0_i32_1 = arith.constant 0 : i32
    %c0_i32_2 = arith.constant 0 : i32
    %c0_i32_3 = arith.constant 0 : i32
    return %c0_i32, %c0_i32_0, %c0_i32_1, %c0_i32_2 : i32, i32, i32, i32
  }
  func.func @transform_2(%arg0: i32) -> (i32, i32) {
    %c0_i32 = arith.constant 0 : i32
    %c0_i32_0 = arith.constant 0 : i32
    %c0_i32_1 = arith.constant 0 : i32
    return %c0_i32, %c0_i32_0 : i32, i32
  }
  func.func @transform_3(%arg0: i32) -> (i32, i32, i32) {
    %c0_i32 = arith.constant 0 : i32
    %c0_i32_0 = arith.constant 0 : i32
    %c0_i32_1 = arith.constant 0 : i32
    return %arg0, %c0_i32, %c0_i32_0 : i32, i32, i32
  }
}

module attributes {stable_mosaic.version = 11 : i64} {
  func.func @_res_stack_kernel(%arg0: i32, %arg1: i32, %arg2: memref<1x38x32xbf16, #tpu.memory_space<vmem>>, %arg3: memref<3x3x32x32xbf16, #tpu.memory_space<vmem>>, %arg4: memref<1x32xf32, #tpu.memory_space<vmem>>, %arg5: memref<3x3x32x8xbf16, #tpu.memory_space<vmem>>, %arg6: memref<8x32xbf16, #tpu.memory_space<vmem>>, %arg7: memref<24x1xf32, #tpu.memory_space<vmem>>, %arg8: memref<1x24x32xf32, #tpu.memory_space<vmem>>, %arg9: memref<38x32xf32, #tpu.memory_space<vmem>>) attributes {dimension_semantics = [#tpu.dimension_semantics<parallel>, #tpu.dimension_semantics<arbitrary>], iteration_bounds = array<i64: 2, 2>, scalar_prefetch = 0 : i64, scratch_operands = 1 : i64, tpu.core_type = #tpu.core_type<tc>, window_params = [{transform_indices = @transform_0, window_bounds = array<i64: 1, 38, 32>}, {pipeline_mode = #tpu.pipeline_mode<synchronous>, transform_indices = @transform_1, window_bounds = array<i64: 3, 3, 32, 32>}, {pipeline_mode = #tpu.pipeline_mode<synchronous>, transform_indices = @transform_2, window_bounds = array<i64: 1, 32>}, {pipeline_mode = #tpu.pipeline_mode<synchronous>, transform_indices = @transform_3, window_bounds = array<i64: 3, 3, 32, 8>}, {pipeline_mode = #tpu.pipeline_mode<synchronous>, transform_indices = @transform_4, window_bounds = array<i64: 8, 32>}, {pipeline_mode = #tpu.pipeline_mode<synchronous>, transform_indices = @transform_5, window_bounds = array<i64: 24, 1>}, {transform_indices = @transform_6, window_bounds = array<i64: 1, 24, 32>}]} {
    %c0 = arith.constant 0 : index
    %c0_0 = arith.constant 0 : index
    %0 = vector.load %arg7[%c0, %c0_0] : memref<24x1xf32, #tpu.memory_space<vmem>>, vector<24x1xf32>
    %c0_i32 = arith.constant 0 : i32
    %1 = arith.cmpi eq, %arg1, %c0_i32 : i32
    %2 = arith.extui %1 : i1 to i32
    %c0_i32_1 = arith.constant 0 : i32
    %3 = arith.cmpi ne, %2, %c0_i32_1 : i32
    scf.if %3 {
      %cst_56 = arith.constant 0.000000e+00 : f32
      %75 = vector.broadcast %cst_56 : f32 to vector<38x32xf32>
      %c0_57 = arith.constant 0 : index
      %c0_58 = arith.constant 0 : index
      %76 = vector.load %arg9[%c0_57, %c0_58] : memref<38x32xf32, #tpu.memory_space<vmem>>, vector<38x32xf32>
      tpu.vector_store %arg9[%c0_57, %c0_58], %75 {strides = array<i32>} : memref<38x32xf32, #tpu.memory_space<vmem>>, vector<38x32xf32>,
      %c0_59 = arith.constant 0 : index
      %c0_60 = arith.constant 0 : index
      %c0_61 = arith.constant 0 : index
      %77 = vector.load %arg2[%c0_59, %c0_60, %c0_61] : memref<1x38x32xbf16, #tpu.memory_space<vmem>>, vector<1x38x32xbf16>
      %78 = vector.shape_cast %77 : vector<1x38x32xbf16> to vector<38x32xbf16>
      %79 = arith.extf %78 : vector<38x32xbf16> to vector<38x32xf32>
      %c0_62 = arith.constant 0 : index
      %c0_63 = arith.constant 0 : index
      %80 = vector.load %arg4[%c0_62, %c0_63] : memref<1x32xf32, #tpu.memory_space<vmem>>, vector<1x32xf32>
      %81 = vector.shape_cast %80 : vector<1x32xf32> to vector<1x32xf32>
      %82 = vector.broadcast %81 : vector<1x32xf32> to vector<24x32xf32>
      %83 = vector.extract_strided_slice %79 {offsets = [0, 0], sizes = [24, 32], strides = [1, 1]} : vector<38x32xf32> to vector<24x32xf32>
      %84 = arith.truncf %83 : vector<24x32xf32> to vector<24x32xbf16>
      %c0_64 = arith.constant 0 : index
      %c0_65 = arith.constant 0 : index
      %c0_66 = arith.constant 0 : index
      %c0_67 = arith.constant 0 : index
      %85 = vector.load %arg3[%c0_64, %c0_65, %c0_66, %c0_67] : memref<3x3x32x32xbf16, #tpu.memory_space<vmem>>, vector<1x1x32x32xbf16>
      %86 = vector.shape_cast %85 : vector<1x1x32x32xbf16> to vector<32x32xbf16>
      %cst_68 = arith.constant dense<0.000000e+00> : vector<24x32xf32>
      %87 = tpu.matmul %84, %86, %cst_68 {dimension_numbers = #tpu.dot_dimension_numbers<[1], [0], [0], [1], [0, 0, 1, 1], [], []>} : vector<24x32xbf16>, vector<32x32xbf16>, vector<24x32xf32> -> vector<24x32xf32>
      %88 = arith.addf %82, %87 : vector<24x32xf32>
      %89 = vector.extract_strided_slice %79 {offsets = [1, 0], sizes = [24, 32], strides = [1, 1]} : vector<38x32xf32> to vector<24x32xf32>
      %90 = arith.truncf %89 : vector<24x32xf32> to vector<24x32xbf16>
      %c0_69 = arith.constant 0 : index
      %c1_70 = arith.constant 1 : index
      %c0_71 = arith.constant 0 : index
      %c0_72 = arith.constant 0 : index
      %91 = vector.load %arg3[%c0_69, %c1_70, %c0_71, %c0_72] : memref<3x3x32x32xbf16, #tpu.memory_space<vmem>>, vector<1x1x32x32xbf16>
      %92 = vector.shape_cast %91 : vector<1x1x32x32xbf16> to vector<32x32xbf16>
      %cst_73 = arith.constant dense<0.000000e+00> : vector<24x32xf32>
      %93 = tpu.matmul %90, %92, %cst_73 {dimension_numbers = #tpu.dot_dimension_numbers<[1], [0], [0], [1], [0, 0, 1, 1], [], []>} : vector<24x32xbf16>, vector<32x32xbf16>, vector<24x32xf32> -> vector<24x32xf32>
      %94 = arith.addf %88, %93 : vector<24x32xf32>
      %95 = vector.extract_strided_slice %79 {offsets = [2, 0], sizes = [24, 32], strides = [1, 1]} : vector<38x32xf32> to vector<24x32xf32>
      %96 = arith.truncf %95 : vector<24x32xf32> to vector<24x32xbf16>
      %c0_74 = arith.constant 0 : index
      %c2_75 = arith.constant 2 : index
      %c0_76 = arith.constant 0 : index
      %c0_77 = arith.constant 0 : index
      %97 = vector.load %arg3[%c0_74, %c2_75, %c0_76, %c0_77] : memref<3x3x32x32xbf16, #tpu.memory_space<vmem>>, vector<1x1x32x32xbf16>
      %98 = vector.shape_cast %97 : vector<1x1x32x32xbf16> to vector<32x32xbf16>
      %cst_78 = arith.constant dense<0.000000e+00> : vector<24x32xf32>
      %99 = tpu.matmul %96, %98, %cst_78 {dimension_numbers = #tpu.dot_dimension_numbers<[1], [0], [0], [1], [0, 0, 1, 1], [], []>} : vector<24x32xbf16>, vector<32x32xbf16>, vector<24x32xf32> -> vector<24x32xf32>
      %100 = arith.addf %94, %99 : vector<24x32xf32>
      %101 = vector.extract_strided_slice %79 {offsets = [6, 0], sizes = [24, 32], strides = [1, 1]} : vector<38x32xf32> to vector<24x32xf32>
      %102 = arith.truncf %101 : vector<24x32xf32> to vector<24x32xbf16>
      %c1_79 = arith.constant 1 : index
      %c0_80 = arith.constant 0 : index
      %c0_81 = arith.constant 0 : index
      %c0_82 = arith.constant 0 : index
      %103 = vector.load %arg3[%c1_79, %c0_80, %c0_81, %c0_82] : memref<3x3x32x32xbf16, #tpu.memory_space<vmem>>, vector<1x1x32x32xbf16>
      %104 = vector.shape_cast %103 : vector<1x1x32x32xbf16> to vector<32x32xbf16>
      %cst_83 = arith.constant dense<0.000000e+00> : vector<24x32xf32>
      %105 = tpu.matmul %102, %104, %cst_83 {dimension_numbers = #tpu.dot_dimension_numbers<[1], [0], [0], [1], [0, 0, 1, 1], [], []>} : vector<24x32xbf16>, vector<32x32xbf16>, vector<24x32xf32> -> vector<24x32xf32>
      %106 = arith.addf %100, %105 : vector<24x32xf32>
      %107 = vector.extract_strided_slice %79 {offsets = [7, 0], sizes = [24, 32], strides = [1, 1]} : vector<38x32xf32> to vector<24x32xf32>
      %108 = arith.truncf %107 : vector<24x32xf32> to vector<24x32xbf16>
      %c1_84 = arith.constant 1 : index
      %c1_85 = arith.constant 1 : index
      %c0_86 = arith.constant 0 : index
      %c0_87 = arith.constant 0 : index
      %109 = vector.load %arg3[%c1_84, %c1_85, %c0_86, %c0_87] : memref<3x3x32x32xbf16, #tpu.memory_space<vmem>>, vector<1x1x32x32xbf16>
      %110 = vector.shape_cast %109 : vector<1x1x32x32xbf16> to vector<32x32xbf16>
      %cst_88 = arith.constant dense<0.000000e+00> : vector<24x32xf32>
      %111 = tpu.matmul %108, %110, %cst_88 {dimension_numbers = #tpu.dot_dimension_numbers<[1], [0], [0], [1], [0, 0, 1, 1], [], []>} : vector<24x32xbf16>, vector<32x32xbf16>, vector<24x32xf32> -> vector<24x32xf32>
      %112 = arith.addf %106, %111 : vector<24x32xf32>
      %113 = vector.extract_strided_slice %79 {offsets = [8, 0], sizes = [24, 32], strides = [1, 1]} : vector<38x32xf32> to vector<24x32xf32>
      %114 = arith.truncf %113 : vector<24x32xf32> to vector<24x32xbf16>
      %c1_89 = arith.constant 1 : index
      %c2_90 = arith.constant 2 : index
      %c0_91 = arith.constant 0 : index
      %c0_92 = arith.constant 0 : index
      %115 = vector.load %arg3[%c1_89, %c2_90, %c0_91, %c0_92] : memref<3x3x32x32xbf16, #tpu.memory_space<vmem>>, vector<1x1x32x32xbf16>
      %116 = vector.shape_cast %115 : vector<1x1x32x32xbf16> to vector<32x32xbf16>
      %cst_93 = arith.constant dense<0.000000e+00> : vector<24x32xf32>
      %117 = tpu.matmul %114, %116, %cst_93 {dimension_numbers = #tpu.dot_dimension_numbers<[1], [0], [0], [1], [0, 0, 1, 1], [], []>} : vector<24x32xbf16>, vector<32x32xbf16>, vector<24x32xf32> -> vector<24x32xf32>
      %118 = arith.addf %112, %117 : vector<24x32xf32>
      %119 = vector.extract_strided_slice %79 {offsets = [12, 0], sizes = [24, 32], strides = [1, 1]} : vector<38x32xf32> to vector<24x32xf32>
      %120 = arith.truncf %119 : vector<24x32xf32> to vector<24x32xbf16>
      %c2_94 = arith.constant 2 : index
      %c0_95 = arith.constant 0 : index
      %c0_96 = arith.constant 0 : index
      %c0_97 = arith.constant 0 : index
      %121 = vector.load %arg3[%c2_94, %c0_95, %c0_96, %c0_97] : memref<3x3x32x32xbf16, #tpu.memory_space<vmem>>, vector<1x1x32x32xbf16>
      %122 = vector.shape_cast %121 : vector<1x1x32x32xbf16> to vector<32x32xbf16>
      %cst_98 = arith.constant dense<0.000000e+00> : vector<24x32xf32>
      %123 = tpu.matmul %120, %122, %cst_98 {dimension_numbers = #tpu.dot_dimension_numbers<[1], [0], [0], [1], [0, 0, 1, 1], [], []>} : vector<24x32xbf16>, vector<32x32xbf16>, vector<24x32xf32> -> vector<24x32xf32>
      %124 = arith.addf %118, %123 : vector<24x32xf32>
      %125 = vector.extract_strided_slice %79 {offsets = [13, 0], sizes = [24, 32], strides = [1, 1]} : vector<38x32xf32> to vector<24x32xf32>
      %126 = arith.truncf %125 : vector<24x32xf32> to vector<24x32xbf16>
      %c2_99 = arith.constant 2 : index
      %c1_100 = arith.constant 1 : index
      %c0_101 = arith.constant 0 : index
      %c0_102 = arith.constant 0 : index
      %127 = vector.load %arg3[%c2_99, %c1_100, %c0_101, %c0_102] : memref<3x3x32x32xbf16, #tpu.memory_space<vmem>>, vector<1x1x32x32xbf16>
      %128 = vector.shape_cast %127 : vector<1x1x32x32xbf16> to vector<32x32xbf16>
      %cst_103 = arith.constant dense<0.000000e+00> : vector<24x32xf32>
      %129 = tpu.matmul %126, %128, %cst_103 {dimension_numbers = #tpu.dot_dimension_numbers<[1], [0], [0], [1], [0, 0, 1, 1], [], []>} : vector<24x32xbf16>, vector<32x32xbf16>, vector<24x32xf32> -> vector<24x32xf32>
      %130 = arith.addf %124, %129 : vector<24x32xf32>
      %131 = vector.extract_strided_slice %79 {offsets = [14, 0], sizes = [24, 32], strides = [1, 1]} : vector<38x32xf32> to vector<24x32xf32>
      %132 = arith.truncf %131 : vector<24x32xf32> to vector<24x32xbf16>
      %c2_104 = arith.constant 2 : index
      %c2_105 = arith.constant 2 : index
      %c0_106 = arith.constant 0 : index
      %c0_107 = arith.constant 0 : index
      %133 = vector.load %arg3[%c2_104, %c2_105, %c0_106, %c0_107] : memref<3x3x32x32xbf16, #tpu.memory_space<vmem>>, vector<1x1x32x32xbf16>
      %134 = vector.shape_cast %133 : vector<1x1x32x32xbf16> to vector<32x32xbf16>
      %cst_108 = arith.constant dense<0.000000e+00> : vector<24x32xf32>
      %135 = tpu.matmul %132, %134, %cst_108 {dimension_numbers = #tpu.dot_dimension_numbers<[1], [0], [0], [1], [0, 0, 1, 1], [], []>} : vector<24x32xbf16>, vector<32x32xbf16>, vector<24x32xf32> -> vector<24x32xf32>
      %136 = arith.addf %130, %135 : vector<24x32xf32>
      %137 = vector.broadcast %0 : vector<24x1xf32> to vector<24x32xf32>
      %138 = arith.mulf %136, %137 : vector<24x32xf32>
      %c7_109 = arith.constant 7 : index
      %c0_110 = arith.constant 0 : index
      %139 = vector.load %arg9[%c7_109, %c0_110] : memref<38x32xf32, #tpu.memory_space<vmem>>, vector<24x32xf32>
      tpu.vector_store %arg9[%c7_109, %c0_110], %138 {strides = array<i32>} : memref<38x32xf32, #tpu.memory_space<vmem>>, vector<24x32xf32>,
    } else {
    }
    %c0_2 = arith.constant 0 : index
    %c0_3 = arith.constant 0 : index
    %4 = vector.load %arg9[%c0_2, %c0_3] : memref<38x32xf32, #tpu.memory_space<vmem>>, vector<38x32xf32>
    %cst = arith.constant 0.000000e+00 : f32
    %5 = vector.broadcast %cst : f32 to vector<38x32xf32>
    %6 = arith.maximumf %4, %5 : vector<38x32xf32>
    %cst_4 = arith.constant 0.000000e+00 : f32
    %7 = vector.broadcast %cst_4 : f32 to vector<24x8xf32>
    %8 = vector.extract_strided_slice %6 {offsets = [0, 0], sizes = [24, 32], strides = [1, 1]} : vector<38x32xf32> to vector<24x32xf32>
    %9 = arith.truncf %8 : vector<24x32xf32> to vector<24x32xbf16>
    %c0_5 = arith.constant 0 : index
    %c0_6 = arith.constant 0 : index
    %c0_7 = arith.constant 0 : index
    %c0_8 = arith.constant 0 : index
    %10 = vector.load %arg5[%c0_5, %c0_6, %c0_7, %c0_8] : memref<3x3x32x8xbf16, #tpu.memory_space<vmem>>, vector<1x1x32x8xbf16>
    %11 = vector.shape_cast %10 : vector<1x1x32x8xbf16> to vector<32x8xbf16>
    %cst_9 = arith.constant dense<0.000000e+00> : vector<24x8xf32>
    %12 = tpu.matmul %9, %11, %cst_9 {dimension_numbers = #tpu.dot_dimension_numbers<[1], [0], [0], [1], [0, 0, 1, 1], [], []>} : vector<24x32xbf16>, vector<32x8xbf16>, vector<24x8xf32> -> vector<24x8xf32>
    %13 = arith.addf %7, %12 : vector<24x8xf32>
    %14 = vector.extract_strided_slice %6 {offsets = [1, 0], sizes = [24, 32], strides = [1, 1]} : vector<38x32xf32> to vector<24x32xf32>
    %15 = arith.truncf %14 : vector<24x32xf32> to vector<24x32xbf16>
    %c0_10 = arith.constant 0 : index
    %c1 = arith.constant 1 : index
    %c0_11 = arith.constant 0 : index
    %c0_12 = arith.constant 0 : index
    %16 = vector.load %arg5[%c0_10, %c1, %c0_11, %c0_12] : memref<3x3x32x8xbf16, #tpu.memory_space<vmem>>, vector<1x1x32x8xbf16>
    %17 = vector.shape_cast %16 : vector<1x1x32x8xbf16> to vector<32x8xbf16>
    %cst_13 = arith.constant dense<0.000000e+00> : vector<24x8xf32>
    %18 = tpu.matmul %15, %17, %cst_13 {dimension_numbers = #tpu.dot_dimension_numbers<[1], [0], [0], [1], [0, 0, 1, 1], [], []>} : vector<24x32xbf16>, vector<32x8xbf16>, vector<24x8xf32> -> vector<24x8xf32>
    %19 = arith.addf %13, %18 : vector<24x8xf32>
    %20 = vector.extract_strided_slice %6 {offsets = [2, 0], sizes = [24, 32], strides = [1, 1]} : vector<38x32xf32> to vector<24x32xf32>
    %21 = arith.truncf %20 : vector<24x32xf32> to vector<24x32xbf16>
    %c0_14 = arith.constant 0 : index
    %c2 = arith.constant 2 : index
    %c0_15 = arith.constant 0 : index
    %c0_16 = arith.constant 0 : index
    %22 = vector.load %arg5[%c0_14, %c2, %c0_15, %c0_16] : memref<3x3x32x8xbf16, #tpu.memory_space<vmem>>, vector<1x1x32x8xbf16>
    %23 = vector.shape_cast %22 : vector<1x1x32x8xbf16> to vector<32x8xbf16>
    %cst_17 = arith.constant dense<0.000000e+00> : vector<24x8xf32>
    %24 = tpu.matmul %21, %23, %cst_17 {dimension_numbers = #tpu.dot_dimension_numbers<[1], [0], [0], [1], [0, 0, 1, 1], [], []>} : vector<24x32xbf16>, vector<32x8xbf16>, vector<24x8xf32> -> vector<24x8xf32>
    %25 = arith.addf %19, %24 : vector<24x8xf32>
    %26 = vector.extract_strided_slice %6 {offsets = [6, 0], sizes = [24, 32], strides = [1, 1]} : vector<38x32xf32> to vector<24x32xf32>
    %27 = arith.truncf %26 : vector<24x32xf32> to vector<24x32xbf16>
    %c1_18 = arith.constant 1 : index
    %c0_19 = arith.constant 0 : index
    %c0_20 = arith.constant 0 : index
    %c0_21 = arith.constant 0 : index
    %28 = vector.load %arg5[%c1_18, %c0_19, %c0_20, %c0_21] : memref<3x3x32x8xbf16, #tpu.memory_space<vmem>>, vector<1x1x32x8xbf16>
    %29 = vector.shape_cast %28 : vector<1x1x32x8xbf16> to vector<32x8xbf16>
    %cst_22 = arith.constant dense<0.000000e+00> : vector<24x8xf32>
    %30 = tpu.matmul %27, %29, %cst_22 {dimension_numbers = #tpu.dot_dimension_numbers<[1], [0], [0], [1], [0, 0, 1, 1], [], []>} : vector<24x32xbf16>, vector<32x8xbf16>, vector<24x8xf32> -> vector<24x8xf32>
    %31 = arith.addf %25, %30 : vector<24x8xf32>
    %32 = vector.extract_strided_slice %6 {offsets = [7, 0], sizes = [24, 32], strides = [1, 1]} : vector<38x32xf32> to vector<24x32xf32>
    %33 = arith.truncf %32 : vector<24x32xf32> to vector<24x32xbf16>
    %c1_23 = arith.constant 1 : index
    %c1_24 = arith.constant 1 : index
    %c0_25 = arith.constant 0 : index
    %c0_26 = arith.constant 0 : index
    %34 = vector.load %arg5[%c1_23, %c1_24, %c0_25, %c0_26] : memref<3x3x32x8xbf16, #tpu.memory_space<vmem>>, vector<1x1x32x8xbf16>
    %35 = vector.shape_cast %34 : vector<1x1x32x8xbf16> to vector<32x8xbf16>
    %cst_27 = arith.constant dense<0.000000e+00> : vector<24x8xf32>
    %36 = tpu.matmul %33, %35, %cst_27 {dimension_numbers = #tpu.dot_dimension_numbers<[1], [0], [0], [1], [0, 0, 1, 1], [], []>} : vector<24x32xbf16>, vector<32x8xbf16>, vector<24x8xf32> -> vector<24x8xf32>
    %37 = arith.addf %31, %36 : vector<24x8xf32>
    %38 = vector.extract_strided_slice %6 {offsets = [8, 0], sizes = [24, 32], strides = [1, 1]} : vector<38x32xf32> to vector<24x32xf32>
    %39 = arith.truncf %38 : vector<24x32xf32> to vector<24x32xbf16>
    %c1_28 = arith.constant 1 : index
    %c2_29 = arith.constant 2 : index
    %c0_30 = arith.constant 0 : index
    %c0_31 = arith.constant 0 : index
    %40 = vector.load %arg5[%c1_28, %c2_29, %c0_30, %c0_31] : memref<3x3x32x8xbf16, #tpu.memory_space<vmem>>, vector<1x1x32x8xbf16>
    %41 = vector.shape_cast %40 : vector<1x1x32x8xbf16> to vector<32x8xbf16>
    %cst_32 = arith.constant dense<0.000000e+00> : vector<24x8xf32>
    %42 = tpu.matmul %39, %41, %cst_32 {dimension_numbers = #tpu.dot_dimension_numbers<[1], [0], [0], [1], [0, 0, 1, 1], [], []>} : vector<24x32xbf16>, vector<32x8xbf16>, vector<24x8xf32> -> vector<24x8xf32>
    %43 = arith.addf %37, %42 : vector<24x8xf32>
    %44 = vector.extract_strided_slice %6 {offsets = [12, 0], sizes = [24, 32], strides = [1, 1]} : vector<38x32xf32> to vector<24x32xf32>
    %45 = arith.truncf %44 : vector<24x32xf32> to vector<24x32xbf16>
    %c2_33 = arith.constant 2 : index
    %c0_34 = arith.constant 0 : index
    %c0_35 = arith.constant 0 : index
    %c0_36 = arith.constant 0 : index
    %46 = vector.load %arg5[%c2_33, %c0_34, %c0_35, %c0_36] : memref<3x3x32x8xbf16, #tpu.memory_space<vmem>>, vector<1x1x32x8xbf16>
    %47 = vector.shape_cast %46 : vector<1x1x32x8xbf16> to vector<32x8xbf16>
    %cst_37 = arith.constant dense<0.000000e+00> : vector<24x8xf32>
    %48 = tpu.matmul %45, %47, %cst_37 {dimension_numbers = #tpu.dot_dimension_numbers<[1], [0], [0], [1], [0, 0, 1, 1], [], []>} : vector<24x32xbf16>, vector<32x8xbf16>, vector<24x8xf32> -> vector<24x8xf32>
    %49 = arith.addf %43, %48 : vector<24x8xf32>
    %50 = vector.extract_strided_slice %6 {offsets = [13, 0], sizes = [24, 32], strides = [1, 1]} : vector<38x32xf32> to vector<24x32xf32>
    %51 = arith.truncf %50 : vector<24x32xf32> to vector<24x32xbf16>
    %c2_38 = arith.constant 2 : index
    %c1_39 = arith.constant 1 : index
    %c0_40 = arith.constant 0 : index
    %c0_41 = arith.constant 0 : index
    %52 = vector.load %arg5[%c2_38, %c1_39, %c0_40, %c0_41] : memref<3x3x32x8xbf16, #tpu.memory_space<vmem>>, vector<1x1x32x8xbf16>
    %53 = vector.shape_cast %52 : vector<1x1x32x8xbf16> to vector<32x8xbf16>
    %cst_42 = arith.constant dense<0.000000e+00> : vector<24x8xf32>
    %54 = tpu.matmul %51, %53, %cst_42 {dimension_numbers = #tpu.dot_dimension_numbers<[1], [0], [0], [1], [0, 0, 1, 1], [], []>} : vector<24x32xbf16>, vector<32x8xbf16>, vector<24x8xf32> -> vector<24x8xf32>
    %55 = arith.addf %49, %54 : vector<24x8xf32>
    %56 = vector.extract_strided_slice %6 {offsets = [14, 0], sizes = [24, 32], strides = [1, 1]} : vector<38x32xf32> to vector<24x32xf32>
    %57 = arith.truncf %56 : vector<24x32xf32> to vector<24x32xbf16>
    %c2_43 = arith.constant 2 : index
    %c2_44 = arith.constant 2 : index
    %c0_45 = arith.constant 0 : index
    %c0_46 = arith.constant 0 : index
    %58 = vector.load %arg5[%c2_43, %c2_44, %c0_45, %c0_46] : memref<3x3x32x8xbf16, #tpu.memory_space<vmem>>, vector<1x1x32x8xbf16>
    %59 = vector.shape_cast %58 : vector<1x1x32x8xbf16> to vector<32x8xbf16>
    %cst_47 = arith.constant dense<0.000000e+00> : vector<24x8xf32>
    %60 = tpu.matmul %57, %59, %cst_47 {dimension_numbers = #tpu.dot_dimension_numbers<[1], [0], [0], [1], [0, 0, 1, 1], [], []>} : vector<24x32xbf16>, vector<32x8xbf16>, vector<24x8xf32> -> vector<24x8xf32>
    %61 = arith.addf %55, %60 : vector<24x8xf32>
    %cst_48 = arith.constant 0.000000e+00 : f32
    %62 = vector.broadcast %cst_48 : f32 to vector<24x8xf32>
    %63 = arith.maximumf %61, %62 : vector<24x8xf32>
    %64 = arith.truncf %63 : vector<24x8xf32> to vector<24x8xbf16>
    %c0_49 = arith.constant 0 : index
    %c0_50 = arith.constant 0 : index
    %65 = vector.load %arg6[%c0_49, %c0_50] : memref<8x32xbf16, #tpu.memory_space<vmem>>, vector<8x32xbf16>
    %cst_51 = arith.constant dense<0.000000e+00> : vector<24x32xf32>
    %66 = tpu.matmul %64, %65, %cst_51 {dimension_numbers = #tpu.dot_dimension_numbers<[1], [0], [0], [1], [0, 0, 1, 1], [], []>} : vector<24x8xbf16>, vector<8x32xbf16>, vector<24x32xf32> -> vector<24x32xf32>
    %c7 = arith.constant 7 : index
    %c0_52 = arith.constant 0 : index
    %67 = vector.load %arg9[%c7, %c0_52] : memref<38x32xf32, #tpu.memory_space<vmem>>, vector<24x32xf32>
    %68 = vector.broadcast %0 : vector<24x1xf32> to vector<24x32xf32>
    %69 = arith.mulf %66, %68 : vector<24x32xf32>
    %70 = arith.addf %67, %69 : vector<24x32xf32>
    %c7_53 = arith.constant 7 : index
    %c0_54 = arith.constant 0 : index
    %71 = vector.load %arg9[%c7_53, %c0_54] : memref<38x32xf32, #tpu.memory_space<vmem>>, vector<24x32xf32>
    tpu.vector_store %arg9[%c7_53, %c0_54], %70 {strides = array<i32>} : memref<38x32xf32, #tpu.memory_space<vmem>>, vector<24x32xf32>,
    %c1_i32 = arith.constant 1 : i32
    %72 = arith.cmpi eq, %arg1, %c1_i32 : i32
    %73 = arith.extui %72 : i1 to i32
    %c0_i32_55 = arith.constant 0 : i32
    %74 = arith.cmpi ne, %73, %c0_i32_55 : i32
    scf.if %74 {
      %c7_56 = arith.constant 7 : index
      %c0_57 = arith.constant 0 : index
      %75 = vector.load %arg9[%c7_56, %c0_57] : memref<38x32xf32, #tpu.memory_space<vmem>>, vector<24x32xf32>
      %cst_58 = arith.constant 0.000000e+00 : f32
      %76 = vector.broadcast %cst_58 : f32 to vector<24x32xf32>
      %77 = arith.maximumf %75, %76 : vector<24x32xf32>
      %c0_59 = arith.constant 0 : index
      %c0_60 = arith.constant 0 : index
      %c0_61 = arith.constant 0 : index
      %78 = vector.load %arg8[%c0_59, %c0_60, %c0_61] : memref<1x24x32xf32, #tpu.memory_space<vmem>>, vector<1x24x32xf32>
      %79 = vector.shape_cast %78 : vector<1x24x32xf32> to vector<24x32xf32>
      %80 = vector.shape_cast %77 : vector<24x32xf32> to vector<1x24x32xf32>
      tpu.vector_store %arg8[%c0_59, %c0_60, %c0_61], %80 {strides = array<i32>} : memref<1x24x32xf32, #tpu.memory_space<vmem>>, vector<1x24x32xf32>,
    } else {
    }
    return
  }
  func.func @transform_0(%arg0: i32, %arg1: i32) -> (i32, i32, i32) {
    %c0_i32 = arith.constant 0 : i32
    %c0_i32_0 = arith.constant 0 : i32
    %c0_i32_1 = arith.constant 0 : i32
    return %arg0, %c0_i32, %c0_i32_0 : i32, i32, i32
  }
  func.func @transform_1(%arg0: i32, %arg1: i32) -> (i32, i32, i32, i32) {
    %c0_i32 = arith.constant 0 : i32
    %c0_i32_0 = arith.constant 0 : i32
    %c0_i32_1 = arith.constant 0 : i32
    %c0_i32_2 = arith.constant 0 : i32
    %c0_i32_3 = arith.constant 0 : i32
    return %c0_i32, %c0_i32_0, %c0_i32_1, %c0_i32_2 : i32, i32, i32, i32
  }
  func.func @transform_2(%arg0: i32, %arg1: i32) -> (i32, i32) {
    %c0_i32 = arith.constant 0 : i32
    %c0_i32_0 = arith.constant 0 : i32
    %c0_i32_1 = arith.constant 0 : i32
    return %c0_i32, %c0_i32_0 : i32, i32
  }
  func.func @transform_3(%arg0: i32, %arg1: i32) -> (i32, i32, i32, i32) {
    %c0_i32 = arith.constant 0 : i32
    %c0_i32_0 = arith.constant 0 : i32
    %c0_i32_1 = arith.constant 0 : i32
    %c0_i32_2 = arith.constant 0 : i32
    %c0_i32_3 = arith.constant 0 : i32
    return %c0_i32, %c0_i32_0, %c0_i32_1, %c0_i32_2 : i32, i32, i32, i32
  }
  func.func @transform_4(%arg0: i32, %arg1: i32) -> (i32, i32) {
    %c0_i32 = arith.constant 0 : i32
    %c0_i32_0 = arith.constant 0 : i32
    %c0_i32_1 = arith.constant 0 : i32
    return %c0_i32, %c0_i32_0 : i32, i32
  }
  func.func @transform_5(%arg0: i32, %arg1: i32) -> (i32, i32) {
    %c0_i32 = arith.constant 0 : i32
    %c0_i32_0 = arith.constant 0 : i32
    %c0_i32_1 = arith.constant 0 : i32
    return %c0_i32, %c0_i32_0 : i32, i32
  }
  func.func @transform_6(%arg0: i32, %arg1: i32) -> (i32, i32, i32) {
    %c0_i32 = arith.constant 0 : i32
    %c0_i32_0 = arith.constant 0 : i32
    %c0_i32_1 = arith.constant 0 : i32
    return %arg0, %c0_i32, %c0_i32_0 : i32, i32, i32
  }
}

</mosaic_0001>

<llo_original>
// kernel: encoder_forward.3
$region0: #{encoder_forward.3}
  #allocation0 [shape = 'u32[]', space=smem, size = 0x4, offset = 0x4, fixed_abs, tag = 'smem constant byte address 0x4 - core index']
  #allocation1 [shape = 'u32[144,128]{1,0:T(1,128)}', space=vmem, size = 0x12000, scoped, tag = 'internal scratch']
  %s0 = inlined_call_operand.vmem [shape: bf16[2,82,12], index: 0, kind: input, shape index: {}]
  %s1 = inlined_call_operand.vmem [shape: bf16[2,2,12,16], index: 1, kind: input, shape index: {}]
  %s2 = inlined_call_operand.vmem [shape: f32[1,16], index: 2, kind: input, shape index: {}]
  %s3 = inlined_call_operand.vmem [shape: bf16[2,72,16], index: 3, kind: output, shape index: {}]
  %s4 = sld [smem:[#allocation0]]
  $region45: #{encoder_forward.3} parent=0
    _
  %s6 = ssub.s32 1, %s4
  %s7 = scalar_select 0, %s6, %s4
  loop: start=0, step=1, limit=4
  $region2: #{encoder_forward.3} parent=0 // loop_pre_header
    _
  $region3: #{encoder_forward.3} parent=0 // loop_header
    %s9 = sphi 0, %s13
    %p10 = scmp.ge.s32.totalorder %s9, 4
    %s19 = sphi 0, %s21
    %s22 = sphi 0, %s19
    %s23 = sphi 0, %s22
    %s39 = sphi 0, %s23
    %s43 = sphi 0, %s43
    %s45 = sphi 0, %s43
    %s46 = sphi 0, %s45
    %s60 = sphi 0, %s46
    %s64 = sphi 0, %s64
    %s66 = sphi 0, %s64
    %s67 = sphi 0, %s66
    %s81 = sphi 0, %s67
    %s87 = sphi 0, %s89
    %s90 = sphi 0, %s87
    %s91 = sphi 0, %s90
    %s107 = sphi 0, %s91
  $region4: #{encoder_forward.3} parent=0 // loop_header_branch
    %12 = sbr.rel (%p10) target = $region8
  $region5: #{encoder_forward.3} parent=0 // loop_body
    %s14 = ssub.s32 %s9, 1
    %s15 = ssub.s32 %s9, 2
    %s16 = sadd.s32 %s9, 1
    %s17 = ssub.s32 %s9, %s16
    %p18 = scmp.eq.s32.totalorder %s17, 0
    %s20 = sadd.s32 %s19, 1
    %s21 = scalar_select %p18, %s19, %s20
    %p24 = pneg %p18
    %p25 = scmp.eq.s32.totalorder %s9, 1
    %p26 = por %p24, %p25
    %p27 = scmp.ne.s32.totalorder %s19, %s22
    %p28 = scmp.eq.s32.totalorder %s9, 0
    %p29 = por %p27, %p28
    %p30 = scmp.ne.s32.totalorder %s19, %s22
    %p31 = scmp.eq.s32.totalorder %s14, 1
    %p32 = por %p30, %p31
    %p33 = scmp.ne.s32.totalorder %s22, %s23
    %p34 = scmp.eq.s32.totalorder %s14, 0
    %p35 = por %p33, %p34
    %p36 = scmp.ne.s32.totalorder %s22, %s23
    %p37 = scmp.eq.s32.totalorder %s15, 1
    %p38 = por %p36, %p37
    %p40 = scmp.ne.s32.totalorder %s23, %s39
    %p41 = scmp.eq.s32.totalorder %s15, 0
    %p42 = por %p40, %p41
    %s44 = sadd.s32 %s43, 1
    %p47 = scmp.eq.s32.totalorder %s9, 1
    %p48 = scmp.ne.s32.totalorder %s43, %s45
    %p49 = scmp.eq.s32.totalorder %s9, 0
    %p50 = por %p48, %p49
    %p51 = scmp.ne.s32.totalorder %s43, %s45
    %p52 = scmp.eq.s32.totalorder %s14, 1
    %p53 = por %p51, %p52
    %p54 = scmp.ne.s32.totalorder %s45, %s46
    %p55 = scmp.eq.s32.totalorder %s14, 0
    %p56 = por %p54, %p55
    %p57 = scmp.ne.s32.totalorder %s45, %s46
    %p58 = scmp.eq.s32.totalorder %s15, 1
    %p59 = por %p57, %p58
    %p61 = scmp.ne.s32.totalorder %s46, %s60
    %p62 = scmp.eq.s32.totalorder %s15, 0
    %p63 = por %p61, %p62
    %s65 = sadd.s32 %s64, 1
    %p68 = scmp.eq.s32.totalorder %s9, 1
    %p69 = scmp.ne.s32.totalorder %s64, %s66
    %p70 = scmp.eq.s32.totalorder %s9, 0
    %p71 = por %p69, %p70
    %p72 = scmp.ne.s32.totalorder %s64, %s66
    %p73 = scmp.eq.s32.totalorder %s14, 1
    %p74 = por %p72, %p73
    %p75 = scmp.ne.s32.totalorder %s66, %s67
    %p76 = scmp.eq.s32.totalorder %s14, 0
    %p77 = por %p75, %p76
    %p78 = scmp.ne.s32.totalorder %s66, %s67
    %p79 = scmp.eq.s32.totalorder %s15, 1
    %p80 = por %p78, %p79
    %p82 = scmp.ne.s32.totalorder %s67, %s81
    %p83 = scmp.eq.s32.totalorder %s15, 0
    %p84 = por %p82, %p83
    %s85 = ssub.s32 %s9, %s16
    %p86 = scmp.eq.s32.totalorder %s85, 0
    %s88 = sadd.s32 %s87, 1
    %s89 = scalar_select %p86, %s87, %s88
    %p92 = pneg %p86
    %p93 = scmp.eq.s32.totalorder %s9, 1
    %p94 = por %p92, %p93
    %p95 = scmp.ne.s32.totalorder %s87, %s90
    %p96 = scmp.eq.s32.totalorder %s9, 0
    %p97 = por %p95, %p96
    %p98 = scmp.ne.s32.totalorder %s87, %s90
    %p99 = scmp.eq.s32.totalorder %s14, 1
    %p100 = por %p98, %p99
    %p101 = scmp.ne.s32.totalorder %s90, %s91
    %p102 = scmp.eq.s32.totalorder %s14, 0
    %p103 = por %p101, %p102
    %p104 = scmp.ne.s32.totalorder %s90, %s91
    %p105 = scmp.eq.s32.totalorder %s15, 1
    %p106 = por %p104, %p105
    %p108 = scmp.ne.s32.totalorder %s91, %s107
    %p109 = scmp.eq.s32.totalorder %s15, 0
    %p110 = por %p108, %p109
    %p111 = scmp.le.s32.totalorder 1, %s9
    %p112 = scmp.lt.s32.totalorder %s9, 3
    %p113 = pnand %p111, %p112
    %p114 = pneg %p113
    // Predicated region
    $region9: #{encoder_forward.3} parent=5 // pred_check
      _
    $region10: #{encoder_forward.3} parent=5 // pred_check_branch
      %116 = sbr.rel (%p113) target = $region12
    $region11: #{encoder_forward.3} parent=5 // pred_region
      %s117 = ssub.s32 %s9, 1
      // Predicated region
      $region13: #{encoder_forward.3} parent=11 // pred_check
        %p118 = pneg %p56
      $region14: #{encoder_forward.3} parent=11 // pred_check_branch
        %120 = sbr.rel (%p118) target = $region16
      $region15: #{encoder_forward.3} parent=11 // pred_region
        _
      $region16: #{encoder_forward.3} parent=11 // pred_fallthru
        _
      // Predicated region
      $region17: #{encoder_forward.3} parent=11 // pred_check
        %p121 = pneg %p77
      $region18: #{encoder_forward.3} parent=11 // pred_check_branch
        %123 = sbr.rel (%p121) target = $region20
      $region19: #{encoder_forward.3} parent=11 // pred_region
        _
      $region20: #{encoder_forward.3} parent=11 // pred_fallthru
        _
    $region12: #{encoder_forward.3} parent=5 // pred_fallthru
      _
    %p124 = scmp.lt.s32.totalorder %s9, 2
    // Predicated region
    $region21: #{encoder_forward.3} parent=5 // pred_check
      %p125 = pneg %p124
    $region22: #{encoder_forward.3} parent=5 // pred_check_branch
      %127 = sbr.rel (%p125) target = $region24
    $region23: #{encoder_forward.3} parent=5 // pred_region
      // Predicated region
      $region25: #{encoder_forward.3} parent=23 // pred_check
        %p128 = pneg %p29
      $region26: #{encoder_forward.3} parent=23 // pred_check_branch
        %130 = sbr.rel (%p128) target = $region28
      $region27: #{encoder_forward.3} parent=23 // pred_region
        %p131 = scmp.lt.s32.totalorder %s9, 1
        %s132 = scalar_select %p131, %s9, 1
        %s133 = smul.addr %s132, 11
        %s134 = smul.addr %s133, 4
        %s135 = scalar_lea.vmem %s0, %s134
      $region28: #{encoder_forward.3} parent=23 // pred_fallthru
        _
    $region24: #{encoder_forward.3} parent=5 // pred_fallthru
      _
    %p136 = scmp.le.s32.totalorder 1, %s9
    %p137 = scmp.lt.s32.totalorder %s9, 3
    %p138 = pnand %p136, %p137
    %p139 = pneg %p138
    // Predicated region
    $region29: #{encoder_forward.3} parent=5 // pred_check
      _
    $region30: #{encoder_forward.3} parent=5 // pred_check_branch
      %141 = sbr.rel (%p138) target = $region32
    $region31: #{encoder_forward.3} parent=5 // pred_region
      %s142 = ssub.s32 %s9, 1
      %p143 = scmp.lt.s32.totalorder %s14, 1
      %s144 = scalar_select %p143, %s14, 1
      %s145 = smul.addr %s144, 11
      %s146 = smul.addr %s145, 4
      %s147 = scalar_lea.vmem %s0, %s146
      %p148 = pneg %p35
      %p149 = pneg %p32
      %p150 = pneg %p56
      %p151 = pneg %p53
      %p152 = pneg %p77
      %p153 = pneg %p74
      %p154 = pneg %p103
      %p155 = pneg %p100
      %p156 = scmp.lt.s32.totalorder %s14, 1
      %s157 = scalar_select %p156, %s14, 1
      %s158 = smul.addr %s157, 9
      %s159 = smul.addr %s158, 4
      %s160 = scalar_lea.vmem %s3, %s159
      %p161 = scmp.lt.s32.totalorder %s14, 1
      %s162 = scalar_select %p161, %s14, 1
      %s163 = smul.addr %s162, 11
      %s164 = smul.addr %s163, 4
      %s165 = scalar_lea.vmem %s0, %s164
      %p166 = scmp.lt.s32.totalorder %s14, 1
      %s167 = scalar_select %p166, %s14, 1
      %s168 = smul.addr %s167, 9
      %s169 = smul.addr %s168, 4
      %s170 = scalar_lea.vmem %s3, %s169
      %v172 = vld [vmem:[%s165] sm:$0xf]
      %v173 = vld [vmem:[%s165 + $0x4] sm:$0xf]
      %v174 = vld [vmem:[%s165 + $0x8] sm:$0xf]
      %v175 = vld [vmem:[%s165 + $0xc] sm:$0xf]
      %v176 = vld [vmem:[%s165 + $0x10] sm:$0xf]
      %v177 = vld [vmem:[%s165 + $0x14] sm:$0xf]
      %v178 = vld [vmem:[%s165 + $0x18] sm:$0xf]
      %v179 = vld [vmem:[%s165 + $0x1c] sm:$0xf]
      %v180 = vld [vmem:[%s165 + $0x20] sm:$0xf]
      %v181 = vld [vmem:[%s165 + $0x24] sm:$0xf]
      %v182 = vld [vmem:[%s165 + $0x28] sm:$0x1]
      %v183 = vunpack.c.l.bf16 %v172
      %v184 = vunpack.c.l.bf16 %v173
      %v185 = vunpack.c.l.bf16 %v174
      %v186 = vunpack.c.l.bf16 %v175
      %v187 = vunpack.c.l.bf16 %v176
      %v188 = vunpack.c.l.bf16 %v177
      %v189 = vunpack.c.l.bf16 %v178
      %v190 = vunpack.c.l.bf16 %v179
      %v191 = vunpack.c.l.bf16 %v180
      %v192 = vunpack.c.l.bf16 %v181
      %v193 = vunpack.c.l.bf16 %v182
      %v194 = vld [vmem:[%s2] sm:$0x1]
      %v196 = vlaneseq
      %v197 = vshrl.u32 %v196, 7
      %v198 = vsub.s32 0, %v197
      %v199 = vrot.slane %v194, %v198
      %v201 = vpack.c.bf16 %v184, %v183
      %v202 = vpack.c.bf16 %v186, %v185
      %v203 = vpack.c.bf16 %v188, %v187
      %v204 = vpack.c.bf16 %v190, %v189
      %v205 = vpack.c.bf16 %v191, %v191
      %v206 = vld [vmem:[%s1] sm:$0xf]
      %v207 = vld [vmem:[%s1 + $0x4] sm:$0x3]
      %v210 = vunpack.c.l.b16 %v206
      %v211 = vunpack.c.l.b16 %v207
      %v212 = vpack.c.b16 %v211, %v210
      %vm213 = vcmask 97280
      %v215 = vsel %vm213, %v201, 0
      %v218 = vsel %vm213, %v202, 0
      %v221 = vsel %vm213, %v203, 0
      %v224 = vsel %vm213, %v204, 0
      %v227 = vsel %vm213, %v205, 0
      %vm229 = vcmask 1045504
      %v231 = vsel %vm229, %v212, 0
      %233 = vmatprep.subr.bf16.mxu0 0
      %234 = vmatpush1.bf16.msra.mxu0 %v231
      %235 = vmatprep.subr.bf16.mxu0 0
      %236 = vmatpush1.bf16.msra.mxu0 0
      %237 = vmatprep.subr.bf16.mxu0 0
      %238 = vmatpush1.bf16.msra.mxu0 0
      %239 = vmatprep.subr.bf16.mxu0 0
      %240 = vmatpush1.bf16.msra.mxu0 0
      %241 = vmatprep.subr.bf16.mxu0 0
      %242 = vmatpush1.bf16.msra.mxu0 0
      %243 = vmatprep.subr.bf16.mxu0 0
      %244 = vmatpush1.bf16.msra.mxu0 0
      %245 = vmatprep.subr.bf16.mxu0 0
      %246 = vmatpush1.bf16.msra.mxu0 0
      %247 = vmatprep.subr.bf16.mxu0 0
      %248 = vmatpush1.bf16.msra.mxu0 0
      %249 = vmatprep.subr.bf16.mxu0 0
      %250 = vmatpush1.bf16.msra.mxu0 0
      %251 = vmatprep.subr.bf16.mxu0 0
      %252 = vmatpush1.bf16.msra.mxu0 0
      %253 = vmatprep.subr.bf16.mxu0 0
      %254 = vmatpush1.bf16.msra.mxu0 0
      %255 = vmatprep.subr.bf16.mxu0 0
      %256 = vmatpush1.bf16.msra.mxu0 0
      %257 = vmatprep.subr.bf16.mxu0 0
      %258 = vmatpush1.bf16.msra.mxu0 0
      %259 = vmatprep.subr.bf16.mxu0 0
      %260 = vmatpush1.bf16.msra.mxu0 0
      %261 = vmatprep.subr.bf16.mxu0 0
      %262 = vmatpush1.bf16.msra.mxu0 0
      %263 = vmatprep.subr.bf16.mxu0 0
      %264 = vmatpush1.bf16.msra.mxu0 0
      %265 = vmatprep.mubr.bf16.mxu0 0
      %266 = vmatmul.mubr.bf16.gmra.mrb[0].mxu0 %v215
      %v267 = vpop.f32.mrb[0].mxu0
      %v268 = vadd.f32 0.0, %v267
      %v269 = vpop.f32.mrb[0].mxu0
      %v270 = vpop.f32.mrb[0].mxu0
      %v271 = vadd.f32 0.0, %v270
      %v272 = vpop.f32.mrb[0].mxu0
      %273 = vmatprep.mubr.bf16.mxu0 0
      %274 = vmatmul.mubr.bf16.gmra.mrb[0].mxu0 %v218
      %v275 = vpop.f32.mrb[0].mxu0
      %v276 = vadd.f32 0.0, %v275
      %v277 = vpop.f32.mrb[0].mxu0
      %v278 = vpop.f32.mrb[0].mxu0
      %v279 = vadd.f32 0.0, %v278
      %v280 = vpop.f32.mrb[0].mxu0
      %281 = vmatprep.mubr.bf16.mxu0 0
      %282 = vmatmul.mubr.bf16.gmra.mrb[0].mxu0 %v221
      %v283 = vpop.f32.mrb[0].mxu0
      %v284 = vadd.f32 0.0, %v283
      %v285 = vpop.f32.mrb[0].mxu0
      %v286 = vpop.f32.mrb[0].mxu0
      %v287 = vadd.f32 0.0, %v286
      %v288 = vpop.f32.mrb[0].mxu0
      %289 = vmatprep.mubr.bf16.mxu0 0
      %290 = vmatmul.mubr.bf16.gmra.mrb[0].mxu0 %v224
      %v291 = vpop.f32.mrb[0].mxu0
      %v292 = vadd.f32 0.0, %v291
      %v293 = vpop.f32.mrb[0].mxu0
      %v294 = vpop.f32.mrb[0].mxu0
      %v295 = vadd.f32 0.0, %v294
      %v296 = vpop.f32.mrb[0].mxu0
      %297 = vmatprep.mubr.bf16.mxu0 0
      %298 = vmatmul.mubr.bf16.gmra.mrb[0].mxu0 %v227
      %v299 = vpop.f32.mrb[0].mxu0
      %v300 = vadd.f32 0.0, %v299
      %v301 = vpop.f32.mrb[0].mxu0
      %v302 = vpop.f32.mrb[0].mxu0
      %v303 = vpop.f32.mrb[0].mxu0
      %304 = vdwg.mxu0
      %v305 = vadd.f32 %v199, %v268
      %v306 = vadd.f32 %v199, %v271
      %v307 = vadd.f32 %v199, %v276
      %v308 = vadd.f32 %v199, %v279
      %v309 = vadd.f32 %v199, %v284
      %v310 = vadd.f32 %v199, %v287
      %v311 = vadd.f32 %v199, %v292
      %v312 = vadd.f32 %v199, %v295
      %v313 = vadd.f32 %v199, %v300
      %v314 = vpack.c.bf16 %v192, %v191
      %s315 = scalar_lea.vmem %s1, 8
      %v316 = vld [vmem:[%s315] sm:$0xf]
      %v317 = vld [vmem:[%s315 + $0x4] sm:$0x3]
      %vm318 = vsmask.f32 7424
      %v319 = vshrl.u32 %v201, 16
      %v321 = vshll.u32 %v201, 16
      %v323 = vrot.slane %v321, 1
      %v324 = vor.u32 %v319, %v323
      %v325 = vshll.u32 %v202, 16
      %v327 = vrot.slane %v325, 1
      %v328 = vsel %vm318, %v324, %v327
      %v329 = vshrl.u32 %v202, 16
      %v331 = vor.u32 %v329, %v327
      %v332 = vshll.u32 %v203, 16
      %v334 = vrot.slane %v332, 1
      %v335 = vsel %vm318, %v331, %v334
      %v336 = vshrl.u32 %v203, 16
      %v338 = vor.u32 %v336, %v334
      %v339 = vshll.u32 %v204, 16
      %v341 = vrot.slane %v339, 1
      %v342 = vsel %vm318, %v338, %v341
      %v343 = vshrl.u32 %v204, 16
      %v345 = vor.u32 %v343, %v341
      %v347 = vshll.u32 %v314, 16
      %v349 = vrot.slane %v347, 1
      %v350 = vsel %vm318, %v345, %v349
      %v351 = vshrl.u32 %v314, 16
      %v353 = vor.u32 %v351, %v349
      %v356 = vunpack.c.l.b16 %v316
      %v357 = vunpack.c.l.b16 %v317
      %v358 = vpack.c.b16 %v357, %v356
      %v360 = vsel %vm213, %v328, 0
      %v363 = vsel %vm213, %v335, 0
      %v366 = vsel %vm213, %v342, 0
      %v369 = vsel %vm213, %v350, 0
      %v372 = vsel %vm213, %v353, 0
      %v375 = vsel %vm229, %v358, 0
      %377 = vmatprep.subr.bf16.mxu0 0
      %378 = vmatpush1.bf16.msra.mxu0 %v375
      %379 = vmatprep.subr.bf16.mxu0 0
      %380 = vmatpush1.bf16.msra.mxu0 0
      %381 = vmatprep.subr.bf16.mxu0 0
      %382 = vmatpush1.bf16.msra.mxu0 0
      %383 = vmatprep.subr.bf16.mxu0 0
      %384 = vmatpush1.bf16.msra.mxu0 0
      %385 = vmatprep.subr.bf16.mxu0 0
      %386 = vmatpush1.bf16.msra.mxu0 0
      %387 = vmatprep.subr.bf16.mxu0 0
      %388 = vmatpush1.bf16.msra.mxu0 0
      %389 = vmatprep.subr.bf16.mxu0 0
      %390 = vmatpush1.bf16.msra.mxu0 0
      %391 = vmatprep.subr.bf16.mxu0 0
      %392 = vmatpush1.bf16.msra.mxu0 0
      %393 = vmatprep.subr.bf16.mxu0 0
      %394 = vmatpush1.bf16.msra.mxu0 0
      %395 = vmatprep.subr.bf16.mxu0 0
      %396 = vmatpush1.bf16.msra.mxu0 0
      %397 = vmatprep.subr.bf16.mxu0 0
      %398 = vmatpush1.bf16.msra.mxu0 0
      %399 = vmatprep.subr.bf16.mxu0 0
      %400 = vmatpush1.bf16.msra.mxu0 0
      %401 = vmatprep.subr.bf16.mxu0 0
      %402 = vmatpush1.bf16.msra.mxu0 0
      %403 = vmatprep.subr.bf16.mxu0 0
      %404 = vmatpush1.bf16.msra.mxu0 0
      %405 = vmatprep.subr.bf16.mxu0 0
      %406 = vmatpush1.bf16.msra.mxu0 0
      %407 = vmatprep.subr.bf16.mxu0 0
      %408 = vmatpush1.bf16.msra.mxu0 0
      %409 = vmatprep.mubr.bf16.mxu0 0
      %410 = vmatmul.mubr.bf16.gmra.mrb[0].mxu0 %v360
      %v411 = vpop.f32.mrb[0].mxu0
      %v412 = vadd.f32 0.0, %v411
      %v413 = vpop.f32.mrb[0].mxu0
      %v414 = vpop.f32.mrb[0].mxu0
      %v415 = vadd.f32 0.0, %v414
      %v416 = vpop.f32.mrb[0].mxu0
      %417 = vmatprep.mubr.bf16.mxu0 0
      %418 = vmatmul.mubr.bf16.gmra.mrb[0].mxu0 %v363
      %v419 = vpop.f32.mrb[0].mxu0
      %v420 = vadd.f32 0.0, %v419
      %v421 = vpop.f32.mrb[0].mxu0
      %v422 = vpop.f32.mrb[0].mxu0
      %v423 = vadd.f32 0.0, %v422
      %v424 = vpop.f32.mrb[0].mxu0
      %425 = vmatprep.mubr.bf16.mxu0 0
      %426 = vmatmul.mubr.bf16.gmra.mrb[0].mxu0 %v366
      %v427 = vpop.f32.mrb[0].mxu0
      %v428 = vadd.f32 0.0, %v427
      %v429 = vpop.f32.mrb[0].mxu0
      %v430 = vpop.f32.mrb[0].mxu0
      %v431 = vadd.f32 0.0, %v430
      %v432 = vpop.f32.mrb[0].mxu0
      %433 = vmatprep.mubr.bf16.mxu0 0
      %434 = vmatmul.mubr.bf16.gmra.mrb[0].mxu0 %v369
      %v435 = vpop.f32.mrb[0].mxu0
      %v436 = vadd.f32 0.0, %v435
      %v437 = vpop.f32.mrb[0].mxu0
      %v438 = vpop.f32.mrb[0].mxu0
      %v439 = vadd.f32 0.0, %v438
      %v440 = vpop.f32.mrb[0].mxu0
      %441 = vmatprep.mubr.bf16.mxu0 0
      %442 = vmatmul.mubr.bf16.gmra.mrb[0].mxu0 %v372
      %v443 = vpop.f32.mrb[0].mxu0
      %v444 = vadd.f32 0.0, %v443
      %v445 = vpop.f32.mrb[0].mxu0
      %v446 = vpop.f32.mrb[0].mxu0
      %v447 = vpop.f32.mrb[0].mxu0
      %448 = vdwg.mxu0
      %v449 = vadd.f32 %v305, %v412
      %v450 = vadd.f32 %v306, %v415
      %v451 = vadd.f32 %v307, %v420
      %v452 = vadd.f32 %v308, %v423
      %v453 = vadd.f32 %v309, %v428
      %v454 = vadd.f32 %v310, %v431
      %v455 = vadd.f32 %v311, %v436
      %v456 = vadd.f32 %v312, %v439
      %v457 = vadd.f32 %v313, %v444
      %v458 = vpack.c.bf16 %v185, %v184
      %v459 = vpack.c.bf16 %v187, %v186
      %v460 = vpack.c.bf16 %v189, %v188
      %v461 = vpack.c.bf16 %v191, %v190
      %v462 = vpack.c.bf16 %v193, %v192
      %s463 = scalar_lea.vmem %s1, 16
      %v464 = vld [vmem:[%s463] sm:$0xf]
      %v465 = vld [vmem:[%s463 + $0x4] sm:$0x3]
      %v467 = vshrl.u32 %v458, 16
      %v469 = vshll.u32 %v458, 16
      %v471 = vrot.slane %v469, 1
      %v472 = vor.u32 %v467, %v471
      %v474 = vshll.u32 %v459, 16
      %v476 = vrot.slane %v474, 1
      %v477 = vsel %vm318, %v472, %v476
      %v478 = vshrl.u32 %v459, 16
      %v480 = vor.u32 %v478, %v476
      %v482 = vshll.u32 %v460, 16
      %v484 = vrot.slane %v482, 1
      %v485 = vsel %vm318, %v480, %v484
      %v486 = vshrl.u32 %v460, 16
      %v488 = vor.u32 %v486, %v484
      %v490 = vshll.u32 %v461, 16
      %v492 = vrot.slane %v490, 1
      %v493 = vsel %vm318, %v488, %v492
      %v494 = vshrl.u32 %v461, 16
      %v496 = vor.u32 %v494, %v492
      %v498 = vshll.u32 %v462, 16
      %v500 = vrot.slane %v498, 1
      %v501 = vsel %vm318, %v496, %v500
      %v502 = vshrl.u32 %v462, 16
      %v504 = vor.u32 %v502, %v500
      %v507 = vunpack.c.l.b16 %v464
      %v508 = vunpack.c.l.b16 %v465
      %v509 = vpack.c.b16 %v508, %v507
      %v511 = vsel %vm213, %v477, 0
      %v514 = vsel %vm213, %v485, 0
      %v517 = vsel %vm213, %v493, 0
      %v520 = vsel %vm213, %v501, 0
      %v523 = vsel %vm213, %v504, 0
      %v526 = vsel %vm229, %v509, 0
      %528 = vmatprep.subr.bf16.mxu0 0
      %529 = vmatpush1.bf16.msra.mxu0 %v526
      %530 = vmatprep.subr.bf16.mxu0 0
      %531 = vmatpush1.bf16.msra.mxu0 0
      %532 = vmatprep.subr.bf16.mxu0 0
      %533 = vmatpush1.bf16.msra.mxu0 0
      %534 = vmatprep.subr.bf16.mxu0 0
      %535 = vmatpush1.bf16.msra.mxu0 0
      %536 = vmatprep.subr.bf16.mxu0 0
      %537 = vmatpush1.bf16.msra.mxu0 0
      %538 = vmatprep.subr.bf16.mxu0 0
      %539 = vmatpush1.bf16.msra.mxu0 0
      %540 = vmatprep.subr.bf16.mxu0 0
      %541 = vmatpush1.bf16.msra.mxu0 0
      %542 = vmatprep.subr.bf16.mxu0 0
      %543 = vmatpush1.bf16.msra.mxu0 0
      %544 = vmatprep.subr.bf16.mxu0 0
      %545 = vmatpush1.bf16.msra.mxu0 0
      %546 = vmatprep.subr.bf16.mxu0 0
      %547 = vmatpush1.bf16.msra.mxu0 0
      %548 = vmatprep.subr.bf16.mxu0 0
      %549 = vmatpush1.bf16.msra.mxu0 0
      %550 = vmatprep.subr.bf16.mxu0 0
      %551 = vmatpush1.bf16.msra.mxu0 0
      %552 = vmatprep.subr.bf16.mxu0 0
      %553 = vmatpush1.bf16.msra.mxu0 0
      %554 = vmatprep.subr.bf16.mxu0 0
      %555 = vmatpush1.bf16.msra.mxu0 0
      %556 = vmatprep.subr.bf16.mxu0 0
      %557 = vmatpush1.bf16.msra.mxu0 0
      %558 = vmatprep.subr.bf16.mxu0 0
      %559 = vmatpush1.bf16.msra.mxu0 0
      %560 = vmatprep.mubr.bf16.mxu0 0
      %561 = vmatmul.mubr.bf16.gmra.mrb[0].mxu0 %v511
      %v562 = vpop.f32.mrb[0].mxu0
      %v563 = vadd.f32 0.0, %v562
      %v564 = vpop.f32.mrb[0].mxu0
      %v565 = vpop.f32.mrb[0].mxu0
      %v566 = vadd.f32 0.0, %v565
      %v567 = vpop.f32.mrb[0].mxu0
      %568 = vmatprep.mubr.bf16.mxu0 0
      %569 = vmatmul.mubr.bf16.gmra.mrb[0].mxu0 %v514
      %v570 = vpop.f32.mrb[0].mxu0
      %v571 = vadd.f32 0.0, %v570
      %v572 = vpop.f32.mrb[0].mxu0
      %v573 = vpop.f32.mrb[0].mxu0
      %v574 = vadd.f32 0.0, %v573
      %v575 = vpop.f32.mrb[0].mxu0
      %576 = vmatprep.mubr.bf16.mxu0 0
      %577 = vmatmul.mubr.bf16.gmra.mrb[0].mxu0 %v517
      %v578 = vpop.f32.mrb[0].mxu0
      %v579 = vadd.f32 0.0, %v578
      %v580 = vpop.f32.mrb[0].mxu0
      %v581 = vpop.f32.mrb[0].mxu0
      %v582 = vadd.f32 0.0, %v581
      %v583 = vpop.f32.mrb[0].mxu0
      %584 = vmatprep.mubr.bf16.mxu0 0
      %585 = vmatmul.mubr.bf16.gmra.mrb[0].mxu0 %v520
      %v586 = vpop.f32.mrb[0].mxu0
      %v587 = vadd.f32 0.0, %v586
      %v588 = vpop.f32.mrb[0].mxu0
      %v589 = vpop.f32.mrb[0].mxu0
      %v590 = vadd.f32 0.0, %v589
      %v591 = vpop.f32.mrb[0].mxu0
      %592 = vmatprep.mubr.bf16.mxu0 0
      %593 = vmatmul.mubr.bf16.gmra.mrb[0].mxu0 %v523
      %v594 = vpop.f32.mrb[0].mxu0
      %v595 = vadd.f32 0.0, %v594
      %v596 = vpop.f32.mrb[0].mxu0
      %v597 = vpop.f32.mrb[0].mxu0
      %v598 = vpop.f32.mrb[0].mxu0
      %599 = vdwg.mxu0
      %v600 = vadd.f32 %v449, %v563
      %v601 = vadd.f32 %v450, %v566
      %v602 = vadd.f32 %v451, %v571
      %v603 = vadd.f32 %v452, %v574
      %v604 = vadd.f32 %v453, %v579
      %v605 = vadd.f32 %v454, %v582
      %v606 = vadd.f32 %v455, %v587
      %v607 = vadd.f32 %v456, %v590
      %v608 = vadd.f32 %v457, %v595
      %s609 = scalar_lea.vmem %s1, 24
      %v610 = vld [vmem:[%s609] sm:$0xf]
      %v611 = vld [vmem:[%s609 + $0x4] sm:$0x3]
      %vm617 = vcmask 1046528
      %v618 = vrot.slane %v458, 1
      %v619 = vrot.slane %v459, 1
      %v620 = vsel %vm617, %v618, %v619
      %v621 = vrot.slane %v460, 1
      %v622 = vsel %vm617, %v619, %v621
      %v623 = vrot.slane %v461, 1
      %v624 = vsel %vm617, %v621, %v623
      %v625 = vrot.slane %v462, 1
      %v626 = vsel %vm617, %v623, %v625
      %v629 = vunpack.c.l.b16 %v610
      %v630 = vunpack.c.l.b16 %v611
      %v631 = vpack.c.b16 %v630, %v629
      %v633 = vsel %vm213, %v620, 0
      %v636 = vsel %vm213, %v622, 0
      %v639 = vsel %vm213, %v624, 0
      %v642 = vsel %vm213, %v626, 0
      %v645 = vsel %vm213, %v625, 0
      %v648 = vsel %vm229, %v631, 0
      %650 = vmatprep.subr.bf16.mxu0 0
      %651 = vmatpush1.bf16.msra.mxu0 %v648
      %652 = vmatprep.subr.bf16.mxu0 0
      %653 = vmatpush1.bf16.msra.mxu0 0
      %654 = vmatprep.subr.bf16.mxu0 0
      %655 = vmatpush1.bf16.msra.mxu0 0
      %656 = vmatprep.subr.bf16.mxu0 0
      %657 = vmatpush1.bf16.msra.mxu0 0
      %658 = vmatprep.subr.bf16.mxu0 0
      %659 = vmatpush1.bf16.msra.mxu0 0
      %660 = vmatprep.subr.bf16.mxu0 0
      %661 = vmatpush1.bf16.msra.mxu0 0
      %662 = vmatprep.subr.bf16.mxu0 0
      %663 = vmatpush1.bf16.msra.mxu0 0
      %664 = vmatprep.subr.bf16.mxu0 0
      %665 = vmatpush1.bf16.msra.mxu0 0
      %666 = vmatprep.subr.bf16.mxu0 0
      %667 = vmatpush1.bf16.msra.mxu0 0
      %668 = vmatprep.subr.bf16.mxu0 0
      %669 = vmatpush1.bf16.msra.mxu0 0
      %670 = vmatprep.subr.bf16.mxu0 0
      %671 = vmatpush1.bf16.msra.mxu0 0
      %672 = vmatprep.subr.bf16.mxu0 0
      %673 = vmatpush1.bf16.msra.mxu0 0
      %674 = vmatprep.subr.bf16.mxu0 0
      %675 = vmatpush1.bf16.msra.mxu0 0
      %676 = vmatprep.subr.bf16.mxu0 0
      %677 = vmatpush1.bf16.msra.mxu0 0
      %678 = vmatprep.subr.bf16.mxu0 0
      %679 = vmatpush1.bf16.msra.mxu0 0
      %680 = vmatprep.subr.bf16.mxu0 0
      %681 = vmatpush1.bf16.msra.mxu0 0
      %682 = vmatprep.mubr.bf16.mxu0 0
      %683 = vmatmul.mubr.bf16.gmra.mrb[0].mxu0 %v633
      %v684 = vpop.f32.mrb[0].mxu0
      %v685 = vadd.f32 0.0, %v684
      %v686 = vpop.f32.mrb[0].mxu0
      %v687 = vpop.f32.mrb[0].mxu0
      %v688 = vadd.f32 0.0, %v687
      %v689 = vpop.f32.mrb[0].mxu0
      %690 = vmatprep.mubr.bf16.mxu0 0
      %691 = vmatmul.mubr.bf16.gmra.mrb[0].mxu0 %v636
      %v692 = vpop.f32.mrb[0].mxu0
      %v693 = vadd.f32 0.0, %v692
      %v694 = vpop.f32.mrb[0].mxu0
      %v695 = vpop.f32.mrb[0].mxu0
      %v696 = vadd.f32 0.0, %v695
      %v697 = vpop.f32.mrb[0].mxu0
      %698 = vmatprep.mubr.bf16.mxu0 0
      %699 = vmatmul.mubr.bf16.gmra.mrb[0].mxu0 %v639
      %v700 = vpop.f32.mrb[0].mxu0
      %v701 = vadd.f32 0.0, %v700
      %v702 = vpop.f32.mrb[0].mxu0
      %v703 = vpop.f32.mrb[0].mxu0
      %v704 = vadd.f32 0.0, %v703
      %v705 = vpop.f32.mrb[0].mxu0
      %706 = vmatprep.mubr.bf16.mxu0 0
      %707 = vmatmul.mubr.bf16.gmra.mrb[0].mxu0 %v642
      %v708 = vpop.f32.mrb[0].mxu0
      %v709 = vadd.f32 0.0, %v708
      %v710 = vpop.f32.mrb[0].mxu0
      %v711 = vpop.f32.mrb[0].mxu0
      %v712 = vadd.f32 0.0, %v711
      %v713 = vpop.f32.mrb[0].mxu0
      %714 = vmatprep.mubr.bf16.mxu0 0
      %715 = vmatmul.mubr.bf16.gmra.mrb[0].mxu0 %v645
      %v716 = vpop.f32.mrb[0].mxu0
      %v717 = vadd.f32 0.0, %v716
      %v718 = vpop.f32.mrb[0].mxu0
      %v719 = vpop.f32.mrb[0].mxu0
      %v720 = vpop.f32.mrb[0].mxu0
      %721 = vdwg.mxu0
      %v722 = vadd.f32 %v600, %v685
      %v723 = vadd.f32 %v601, %v688
      %v724 = vadd.f32 %v602, %v693
      %v725 = vadd.f32 %v603, %v696
      %v726 = vadd.f32 %v604, %v701
      %v727 = vadd.f32 %v605, %v704
      %v728 = vadd.f32 %v606, %v709
      %v729 = vadd.f32 %v607, %v712
      %v730 = vadd.f32 %v608, %v717
      %v731 = vmax.f32 %v722, 0.0
      %v732 = vmax.f32 %v723, 0.0
      %v733 = vmax.f32 %v724, 0.0
      %v734 = vmax.f32 %v725, 0.0
      %v735 = vmax.f32 %v726, 0.0
      %v736 = vmax.f32 %v727, 0.0
      %v737 = vmax.f32 %v728, 0.0
      %v738 = vmax.f32 %v729, 0.0
      %v739 = vmax.f32 %v730, 0.0
      %v740 = vpack.c.bf16 %v732, %v731
      %v741 = vpack.c.bf16 %v734, %v733
      %v742 = vpack.c.bf16 %v736, %v735
      %v743 = vpack.c.bf16 %v738, %v737
      %v744 = vpack.c.bf16 %v739, %v739
      %v750 = vunpack.c.l.b16 %v740
      %v751 = vunpack.c.h.b16 %v740
      %v752 = vunpack.c.l.b16 %v741
      %v753 = vunpack.c.h.b16 %v741
      %v754 = vunpack.c.l.b16 %v742
      %v755 = vunpack.c.h.b16 %v742
      %v756 = vunpack.c.l.b16 %v743
      %v757 = vunpack.c.h.b16 %v743
      %v758 = vunpack.c.l.b16 %v744
      %v759 = vpack.c.b16 %v750, %v750
      %v760 = vpack.c.b16 %v751, %v751
      %v761 = vpack.c.b16 %v752, %v752
      %v762 = vpack.c.b16 %v753, %v753
      %v763 = vpack.c.b16 %v754, %v754
      %v764 = vpack.c.b16 %v755, %v755
      %v765 = vpack.c.b16 %v756, %v756
      %v766 = vpack.c.b16 %v757, %v757
      %v767 = vpack.c.b16 %v758, %v758
      %vm777 = vcmask 125952
      %778 = vst.msk [vmem:[%s170] sm:$0xf] %vm777, %v759
      %779 = vst.msk [vmem:[%s170 + $0x4] sm:$0xf] %vm777, %v760
      %780 = vst.msk [vmem:[%s170 + $0x8] sm:$0xf] %vm777, %v761
      %781 = vst.msk [vmem:[%s170 + $0xc] sm:$0xf] %vm777, %v762
      %782 = vst.msk [vmem:[%s170 + $0x10] sm:$0xf] %vm777, %v763
      %783 = vst.msk [vmem:[%s170 + $0x14] sm:$0xf] %vm777, %v764
      %784 = vst.msk [vmem:[%s170 + $0x18] sm:$0xf] %vm777, %v765
      %785 = vst.msk [vmem:[%s170 + $0x1c] sm:$0xf] %vm777, %v766
      %786 = vst.msk [vmem:[%s170 + $0x20] sm:$0xf] %vm777, %v767
      %p787 = scmp.lt.s32.totalorder %s14, 1
      %s788 = scalar_select %p787, %s14, 1
      %s789 = smul.addr %s788, 9
      %s790 = smul.addr %s789, 4
      %s791 = scalar_lea.vmem %s3, %s790
      // Predicated region
      $region33: #{encoder_forward.3} parent=31 // pred_check
        %p792 = pneg %p100
      $region34: #{encoder_forward.3} parent=31 // pred_check_branch
        %794 = sbr.rel (%p792) target = $region36
      $region35: #{encoder_forward.3} parent=31 // pred_region
        _
      $region36: #{encoder_forward.3} parent=31 // pred_fallthru
        _
    $region32: #{encoder_forward.3} parent=5 // pred_fallthru
      _
    %p795 = scmp.le.s32.totalorder 2, %s9
    // Predicated region
    $region37: #{encoder_forward.3} parent=5 // pred_check
      %p796 = pneg %p795
    $region38: #{encoder_forward.3} parent=5 // pred_check_branch
      %798 = sbr.rel (%p796) target = $region40
    $region39: #{encoder_forward.3} parent=5 // pred_region
      %s799 = ssub.s32 %s9, 2
      // Predicated region
      $region41: #{encoder_forward.3} parent=39 // pred_check
        %p800 = pneg %p106
      $region42: #{encoder_forward.3} parent=39 // pred_check_branch
        %802 = sbr.rel (%p800) target = $region44
      $region43: #{encoder_forward.3} parent=39 // pred_region
        %p803 = scmp.lt.s32.totalorder %s15, 1
        %s804 = scalar_select %p803, %s15, 1
        %s805 = smul.addr %s804, 9
        %s806 = smul.addr %s805, 4
        %s807 = scalar_lea.vmem %s3, %s806
      $region44: #{encoder_forward.3} parent=39 // pred_fallthru
        _
    $region40: #{encoder_forward.3} parent=5 // pred_fallthru
      _
  $region6: #{encoder_forward.3} parent=0 // loop_footer
    %s13 = sadd.s32 1, %s9
  $region7: #{encoder_forward.3} parent=0 // loop_footer_branch
    %8 = sbr.rel target = $region3
  $region8: #{encoder_forward.3} parent=0 // loop_exit
    _

// kernel: encoder_forward.4
$region0: #{encoder_forward.4}
  #allocation0 [shape = 'u32[]', space=smem, size = 0x4, offset = 0x4, fixed_abs, tag = 'smem constant byte address 0x4 - core index']
  #allocation1 [shape = 'u32[144,128]{1,0:T(1,128)}', space=vmem, size = 0x12000, scoped, tag = 'internal scratch']
  %s0 = inlined_call_operand.vmem [shape: bf16[2,26,64], index: 0, kind: input, shape index: {}]
  %s1 = inlined_call_operand.vmem [shape: bf16[2,2,64,32], index: 1, kind: input, shape index: {}]
  %s2 = inlined_call_operand.vmem [shape: f32[1,32], index: 2, kind: input, shape index: {}]
  %s3 = inlined_call_operand.vmem [shape: bf16[2,20,32], index: 3, kind: output, shape index: {}]
  %s4 = sld [smem:[#allocation0]]
  $region45: #{encoder_forward.4} parent=0
    _
  %s6 = ssub.s32 1, %s4
  %s7 = scalar_select 0, %s6, %s4
  loop: start=0, step=1, limit=4
  $region2: #{encoder_forward.4} parent=0 // loop_pre_header
    _
  $region3: #{encoder_forward.4} parent=0 // loop_header
    %s9 = sphi 0, %s13
    %p10 = scmp.ge.s32.totalorder %s9, 4
    %s19 = sphi 0, %s21
    %s22 = sphi 0, %s19
    %s23 = sphi 0, %s22
    %s39 = sphi 0, %s23
    %s43 = sphi 0, %s43
    %s45 = sphi 0, %s43
    %s46 = sphi 0, %s45
    %s60 = sphi 0, %s46
    %s64 = sphi 0, %s64
    %s66 = sphi 0, %s64
    %s67 = sphi 0, %s66
    %s81 = sphi 0, %s67
    %s87 = sphi 0, %s89
    %s90 = sphi 0, %s87
    %s91 = sphi 0, %s90
    %s107 = sphi 0, %s91
  $region4: #{encoder_forward.4} parent=0 // loop_header_branch
    %12 = sbr.rel (%p10) target = $region8
  $region5: #{encoder_forward.4} parent=0 // loop_body
    %s14 = ssub.s32 %s9, 1
    %s15 = ssub.s32 %s9, 2
    %s16 = sadd.s32 %s9, 1
    %s17 = ssub.s32 %s9, %s16
    %p18 = scmp.eq.s32.totalorder %s17, 0
    %s20 = sadd.s32 %s19, 1
    %s21 = scalar_select %p18, %s19, %s20
    %p24 = pneg %p18
    %p25 = scmp.eq.s32.totalorder %s9, 1
    %p26 = por %p24, %p25
    %p27 = scmp.ne.s32.totalorder %s19, %s22
    %p28 = scmp.eq.s32.totalorder %s9, 0
    %p29 = por %p27, %p28
    %p30 = scmp.ne.s32.totalorder %s19, %s22
    %p31 = scmp.eq.s32.totalorder %s14, 1
    %p32 = por %p30, %p31
    %p33 = scmp.ne.s32.totalorder %s22, %s23
    %p34 = scmp.eq.s32.totalorder %s14, 0
    %p35 = por %p33, %p34
    %p36 = scmp.ne.s32.totalorder %s22, %s23
    %p37 = scmp.eq.s32.totalorder %s15, 1
    %p38 = por %p36, %p37
    %p40 = scmp.ne.s32.totalorder %s23, %s39
    %p41 = scmp.eq.s32.totalorder %s15, 0
    %p42 = por %p40, %p41
    %s44 = sadd.s32 %s43, 1
    %p47 = scmp.eq.s32.totalorder %s9, 1
    %p48 = scmp.ne.s32.totalorder %s43, %s45
    %p49 = scmp.eq.s32.totalorder %s9, 0
    %p50 = por %p48, %p49
    %p51 = scmp.ne.s32.totalorder %s43, %s45
    %p52 = scmp.eq.s32.totalorder %s14, 1
    %p53 = por %p51, %p52
    %p54 = scmp.ne.s32.totalorder %s45, %s46
    %p55 = scmp.eq.s32.totalorder %s14, 0
    %p56 = por %p54, %p55
    %p57 = scmp.ne.s32.totalorder %s45, %s46
    %p58 = scmp.eq.s32.totalorder %s15, 1
    %p59 = por %p57, %p58
    %p61 = scmp.ne.s32.totalorder %s46, %s60
    %p62 = scmp.eq.s32.totalorder %s15, 0
    %p63 = por %p61, %p62
    %s65 = sadd.s32 %s64, 1
    %p68 = scmp.eq.s32.totalorder %s9, 1
    %p69 = scmp.ne.s32.totalorder %s64, %s66
    %p70 = scmp.eq.s32.totalorder %s9, 0
    %p71 = por %p69, %p70
    %p72 = scmp.ne.s32.totalorder %s64, %s66
    %p73 = scmp.eq.s32.totalorder %s14, 1
    %p74 = por %p72, %p73
    %p75 = scmp.ne.s32.totalorder %s66, %s67
    %p76 = scmp.eq.s32.totalorder %s14, 0
    %p77 = por %p75, %p76
    %p78 = scmp.ne.s32.totalorder %s66, %s67
    %p79 = scmp.eq.s32.totalorder %s15, 1
    %p80 = por %p78, %p79
    %p82 = scmp.ne.s32.totalorder %s67, %s81
    %p83 = scmp.eq.s32.totalorder %s15, 0
    %p84 = por %p82, %p83
    %s85 = ssub.s32 %s9, %s16
    %p86 = scmp.eq.s32.totalorder %s85, 0
    %s88 = sadd.s32 %s87, 1
    %s89 = scalar_select %p86, %s87, %s88
    %p92 = pneg %p86
    %p93 = scmp.eq.s32.totalorder %s9, 1
    %p94 = por %p92, %p93
    %p95 = scmp.ne.s32.totalorder %s87, %s90
    %p96 = scmp.eq.s32.totalorder %s9, 0
    %p97 = por %p95, %p96
    %p98 = scmp.ne.s32.totalorder %s87, %s90
    %p99 = scmp.eq.s32.totalorder %s14, 1
    %p100 = por %p98, %p99
    %p101 = scmp.ne.s32.totalorder %s90, %s91
    %p102 = scmp.eq.s32.totalorder %s14, 0
    %p103 = por %p101, %p102
    %p104 = scmp.ne.s32.totalorder %s90, %s91
    %p105 = scmp.eq.s32.totalorder %s15, 1
    %p106 = por %p104, %p105
    %p108 = scmp.ne.s32.totalorder %s91, %s107
    %p109 = scmp.eq.s32.totalorder %s15, 0
    %p110 = por %p108, %p109
    %p111 = scmp.le.s32.totalorder 1, %s9
    %p112 = scmp.lt.s32.totalorder %s9, 3
    %p113 = pnand %p111, %p112
    %p114 = pneg %p113
    // Predicated region
    $region9: #{encoder_forward.4} parent=5 // pred_check
      _
    $region10: #{encoder_forward.4} parent=5 // pred_check_branch
      %116 = sbr.rel (%p113) target = $region12
    $region11: #{encoder_forward.4} parent=5 // pred_region
      %s117 = ssub.s32 %s9, 1
      // Predicated region
      $region13: #{encoder_forward.4} parent=11 // pred_check
        %p118 = pneg %p56
      $region14: #{encoder_forward.4} parent=11 // pred_check_branch
        %120 = sbr.rel (%p118) target = $region16
      $region15: #{encoder_forward.4} parent=11 // pred_region
        _
      $region16: #{encoder_forward.4} parent=11 // pred_fallthru
        _
      // Predicated region
      $region17: #{encoder_forward.4} parent=11 // pred_check
        %p121 = pneg %p77
      $region18: #{encoder_forward.4} parent=11 // pred_check_branch
        %123 = sbr.rel (%p121) target = $region20
      $region19: #{encoder_forward.4} parent=11 // pred_region
        _
      $region20: #{encoder_forward.4} parent=11 // pred_fallthru
        _
    $region12: #{encoder_forward.4} parent=5 // pred_fallthru
      _
    %p124 = scmp.lt.s32.totalorder %s9, 2
    // Predicated region
    $region21: #{encoder_forward.4} parent=5 // pred_check
      %p125 = pneg %p124
    $region22: #{encoder_forward.4} parent=5 // pred_check_branch
      %127 = sbr.rel (%p125) target = $region24
    $region23: #{encoder_forward.4} parent=5 // pred_region
      // Predicated region
      $region25: #{encoder_forward.4} parent=23 // pred_check
        %p128 = pneg %p29
      $region26: #{encoder_forward.4} parent=23 // pred_check_branch
        %130 = sbr.rel (%p128) target = $region28
      $region27: #{encoder_forward.4} parent=23 // pred_region
        %p131 = scmp.lt.s32.totalorder %s9, 1
        %s132 = scalar_select %p131, %s9, 1
        %s133 = smul.addr %s132, 4
        %s134 = smul.addr %s133, 4
        %s135 = scalar_lea.vmem %s0, %s134
      $region28: #{encoder_forward.4} parent=23 // pred_fallthru
        _
    $region24: #{encoder_forward.4} parent=5 // pred_fallthru
      _
    %p136 = scmp.le.s32.totalorder 1, %s9
    %p137 = scmp.lt.s32.totalorder %s9, 3
    %p138 = pnand %p136, %p137
    %p139 = pneg %p138
    // Predicated region
    $region29: #{encoder_forward.4} parent=5 // pred_check
      _
    $region30: #{encoder_forward.4} parent=5 // pred_check_branch
      %141 = sbr.rel (%p138) target = $region32
    $region31: #{encoder_forward.4} parent=5 // pred_region
      %s142 = ssub.s32 %s9, 1
      %p143 = scmp.lt.s32.totalorder %s14, 1
      %s144 = scalar_select %p143, %s14, 1
      %s145 = smul.addr %s144, 4
      %s146 = smul.addr %s145, 4
      %s147 = scalar_lea.vmem %s0, %s146
      %p148 = pneg %p35
      %p149 = pneg %p32
      %p150 = pneg %p56
      %p151 = pneg %p53
      %p152 = pneg %p77
      %p153 = pneg %p74
      %p154 = pneg %p103
      %p155 = pneg %p100
      %p156 = scmp.lt.s32.totalorder %s14, 1
      %s157 = scalar_select %p156, %s14, 1
      %s158 = smul.addr %s157, 3
      %s159 = smul.addr %s158, 4
      %s160 = scalar_lea.vmem %s3, %s159
      %p161 = scmp.lt.s32.totalorder %s14, 1
      %s162 = scalar_select %p161, %s14, 1
      %s163 = smul.addr %s162, 4
      %s164 = smul.addr %s163, 4
      %s165 = scalar_lea.vmem %s0, %s164
      %p166 = scmp.lt.s32.totalorder %s14, 1
      %s167 = scalar_select %p166, %s14, 1
      %s168 = smul.addr %s167, 3
      %s169 = smul.addr %s168, 4
      %s170 = scalar_lea.vmem %s3, %s169
      %v172 = vld [vmem:[%s165] sm:$0xf]
      %v173 = vld [vmem:[%s165 + $0x4] sm:$0xf]
      %v174 = vld [vmem:[%s165 + $0x8] sm:$0xf]
      %v175 = vld [vmem:[%s165 + $0xc] sm:$0x1]
      %v176 = vunpack.c.l.bf16 %v172
      %v177 = vunpack.c.l.bf16 %v173
      %v178 = vunpack.c.l.bf16 %v174
      %v179 = vunpack.c.l.bf16 %v175
      %v180 = vld [vmem:[%s2] sm:$0x1]
      %v182 = vlaneseq
      %v183 = vshrl.u32 %v182, 7
      %v184 = vsub.s32 0, %v183
      %v185 = vrot.slane %v180, %v184
      %v187 = vpack.c.bf16 %v177, %v176
      %v188 = vpack.c.bf16 %v178, %v178
      %v189 = vld [vmem:[%s1] sm:$0xf]
      %v190 = vld [vmem:[%s1 + $0x4] sm:$0xf]
      %v191 = vld [vmem:[%s1 + $0x8] sm:$0xf]
      %v192 = vld [vmem:[%s1 + $0xc] sm:$0xf]
      %v193 = vld [vmem:[%s1 + $0x10] sm:$0xf]
      %v194 = vld [vmem:[%s1 + $0x14] sm:$0xf]
      %v195 = vld [vmem:[%s1 + $0x18] sm:$0xf]
      %v196 = vld [vmem:[%s1 + $0x1c] sm:$0xf]
      %v205 = vunpack.c.l.b16 %v189
      %v206 = vunpack.c.l.b16 %v190
      %v207 = vunpack.c.l.b16 %v191
      %v208 = vunpack.c.l.b16 %v192
      %v209 = vunpack.c.l.b16 %v193
      %v210 = vunpack.c.l.b16 %v194
      %v211 = vunpack.c.l.b16 %v195
      %v212 = vunpack.c.l.b16 %v196
      %v213 = vpack.c.b16 %v206, %v205
      %v214 = vpack.c.b16 %v208, %v207
      %v215 = vpack.c.b16 %v210, %v209
      %v216 = vpack.c.b16 %v212, %v211
      %vm221 = vcmask 523264
      %v223 = vsel %vm221, %v187, 0
      %v226 = vsel %vm221, %v188, 0
      %228 = vmatprep.subr.bf16.mxu0 0
      %229 = vmatpush1.bf16.msra.mxu0 %v213
      %230 = vmatprep.subr.bf16.mxu0 0
      %231 = vmatpush1.bf16.msra.mxu0 %v214
      %232 = vmatprep.subr.bf16.mxu0 0
      %233 = vmatpush1.bf16.msra.mxu0 %v215
      %234 = vmatprep.subr.bf16.mxu0 0
      %235 = vmatpush1.bf16.msra.mxu0 %v216
      %236 = vmatprep.subr.bf16.mxu0 0
      %237 = vmatpush1.bf16.msra.mxu0 0
      %238 = vmatprep.subr.bf16.mxu0 0
      %239 = vmatpush1.bf16.msra.mxu0 0
      %240 = vmatprep.subr.bf16.mxu0 0
      %241 = vmatpush1.bf16.msra.mxu0 0
      %242 = vmatprep.subr.bf16.mxu0 0
      %243 = vmatpush1.bf16.msra.mxu0 0
      %244 = vmatprep.subr.bf16.mxu0 0
      %245 = vmatpush1.bf16.msra.mxu0 0
      %246 = vmatprep.subr.bf16.mxu0 0
      %247 = vmatpush1.bf16.msra.mxu0 0
      %248 = vmatprep.subr.bf16.mxu0 0
      %249 = vmatpush1.bf16.msra.mxu0 0
      %250 = vmatprep.subr.bf16.mxu0 0
      %251 = vmatpush1.bf16.msra.mxu0 0
      %252 = vmatprep.subr.bf16.mxu0 0
      %253 = vmatpush1.bf16.msra.mxu0 0
      %254 = vmatprep.subr.bf16.mxu0 0
      %255 = vmatpush1.bf16.msra.mxu0 0
      %256 = vmatprep.subr.bf16.mxu0 0
      %257 = vmatpush1.bf16.msra.mxu0 0
      %258 = vmatprep.subr.bf16.mxu0 0
      %259 = vmatpush1.bf16.msra.mxu0 0
      %260 = vmatprep.mubr.bf16.mxu0 0
      %261 = vmatmul.mubr.bf16.gmra.mrb[0].mxu0 %v223
      %v262 = vpop.f32.mrb[0].mxu0
      %v263 = vadd.f32 0.0, %v262
      %v264 = vpop.f32.mrb[0].mxu0
      %v265 = vpop.f32.mrb[0].mxu0
      %v266 = vadd.f32 0.0, %v265
      %v267 = vpop.f32.mrb[0].mxu0
      %268 = vmatprep.mubr.bf16.mxu0 0
      %269 = vmatmul.mubr.bf16.gmra.mrb[0].mxu0 %v226
      %v270 = vpop.f32.mrb[0].mxu0
      %v271 = vadd.f32 0.0, %v270
      %v272 = vpop.f32.mrb[0].mxu0
      %v273 = vpop.f32.mrb[0].mxu0
      %v274 = vpop.f32.mrb[0].mxu0
      %275 = vdwg.mxu0
      %v276 = vadd.f32 %v185, %v263
      %v277 = vadd.f32 %v185, %v266
      %v278 = vadd.f32 %v185, %v271
      %s279 = scalar_lea.vmem %s1, 32
      %v280 = vld [vmem:[%s279] sm:$0xf]
      %v281 = vld [vmem:[%s279 + $0x4] sm:$0xf]
      %v282 = vld [vmem:[%s279 + $0x8] sm:$0xf]
      %v283 = vld [vmem:[%s279 + $0xc] sm:$0xf]
      %v284 = vld [vmem:[%s279 + $0x10] sm:$0xf]
      %v285 = vld [vmem:[%s279 + $0x14] sm:$0xf]
      %v286 = vld [vmem:[%s279 + $0x18] sm:$0xf]
      %v287 = vld [vmem:[%s279 + $0x1c] sm:$0xf]
      %vm288 = vsmask.f32 7424
      %v289 = vshrl.u32 %v187, 16
      %v291 = vshll.u32 %v187, 16
      %v293 = vrot.slane %v291, 1
      %v294 = vor.u32 %v289, %v293
      %v295 = vshll.u32 %v188, 16
      %v297 = vrot.slane %v295, 1
      %v298 = vsel %vm288, %v294, %v297
      %v299 = vshrl.u32 %v188, 16
      %v301 = vor.u32 %v299, %v297
      %v310 = vunpack.c.l.b16 %v280
      %v311 = vunpack.c.l.b16 %v281
      %v312 = vunpack.c.l.b16 %v282
      %v313 = vunpack.c.l.b16 %v283
      %v314 = vunpack.c.l.b16 %v284
      %v315 = vunpack.c.l.b16 %v285
      %v316 = vunpack.c.l.b16 %v286
      %v317 = vunpack.c.l.b16 %v287
      %v318 = vpack.c.b16 %v311, %v310
      %v319 = vpack.c.b16 %v313, %v312
      %v320 = vpack.c.b16 %v315, %v314
      %v321 = vpack.c.b16 %v317, %v316
      %v327 = vsel %vm221, %v298, 0
      %v330 = vsel %vm221, %v301, 0
      %332 = vmatprep.subr.bf16.mxu0 0
      %333 = vmatpush1.bf16.msra.mxu0 %v318
      %334 = vmatprep.subr.bf16.mxu0 0
      %335 = vmatpush1.bf16.msra.mxu0 %v319
      %336 = vmatprep.subr.bf16.mxu0 0
      %337 = vmatpush1.bf16.msra.mxu0 %v320
      %338 = vmatprep.subr.bf16.mxu0 0
      %339 = vmatpush1.bf16.msra.mxu0 %v321
      %340 = vmatprep.subr.bf16.mxu0 0
      %341 = vmatpush1.bf16.msra.mxu0 0
      %342 = vmatprep.subr.bf16.mxu0 0
      %343 = vmatpush1.bf16.msra.mxu0 0
      %344 = vmatprep.subr.bf16.mxu0 0
      %345 = vmatpush1.bf16.msra.mxu0 0
      %346 = vmatprep.subr.bf16.mxu0 0
      %347 = vmatpush1.bf16.msra.mxu0 0
      %348 = vmatprep.subr.bf16.mxu0 0
      %349 = vmatpush1.bf16.msra.mxu0 0
      %350 = vmatprep.subr.bf16.mxu0 0
      %351 = vmatpush1.bf16.msra.mxu0 0
      %352 = vmatprep.subr.bf16.mxu0 0
      %353 = vmatpush1.bf16.msra.mxu0 0
      %354 = vmatprep.subr.bf16.mxu0 0
      %355 = vmatpush1.bf16.msra.mxu0 0
      %356 = vmatprep.subr.bf16.mxu0 0
      %357 = vmatpush1.bf16.msra.mxu0 0
      %358 = vmatprep.subr.bf16.mxu0 0
      %359 = vmatpush1.bf16.msra.mxu0 0
      %360 = vmatprep.subr.bf16.mxu0 0
      %361 = vmatpush1.bf16.msra.mxu0 0
      %362 = vmatprep.subr.bf16.mxu0 0
      %363 = vmatpush1.bf16.msra.mxu0 0
      %364 = vmatprep.mubr.bf16.mxu0 0
      %365 = vmatmul.mubr.bf16.gmra.mrb[0].mxu0 %v327
      %v366 = vpop.f32.mrb[0].mxu0
      %v367 = vadd.f32 0.0, %v366
      %v368 = vpop.f32.mrb[0].mxu0
      %v369 = vpop.f32.mrb[0].mxu0
      %v370 = vadd.f32 0.0, %v369
      %v371 = vpop.f32.mrb[0].mxu0
      %372 = vmatprep.mubr.bf16.mxu0 0
      %373 = vmatmul.mubr.bf16.gmra.mrb[0].mxu0 %v330
      %v374 = vpop.f32.mrb[0].mxu0
      %v375 = vadd.f32 0.0, %v374
      %v376 = vpop.f32.mrb[0].mxu0
      %v377 = vpop.f32.mrb[0].mxu0
      %v378 = vpop.f32.mrb[0].mxu0
      %379 = vdwg.mxu0
      %v380 = vadd.f32 %v276, %v367
      %v381 = vadd.f32 %v277, %v370
      %v382 = vadd.f32 %v278, %v375
      %v383 = vpack.c.bf16 %v179, %v178
      %s384 = scalar_lea.vmem %s1, 64
      %v385 = vld [vmem:[%s384] sm:$0xf]
      %v386 = vld [vmem:[%s384 + $0x4] sm:$0xf]
      %v387 = vld [vmem:[%s384 + $0x8] sm:$0xf]
      %v388 = vld [vmem:[%s384 + $0xc] sm:$0xf]
      %v389 = vld [vmem:[%s384 + $0x10] sm:$0xf]
      %v390 = vld [vmem:[%s384 + $0x14] sm:$0xf]
      %v391 = vld [vmem:[%s384 + $0x18] sm:$0xf]
      %v392 = vld [vmem:[%s384 + $0x1c] sm:$0xf]
      %vm393 = vsmask.f32 5376
      %v394 = vrot.slane %v289, 2
      %v395 = vrot.slane %v291, 3
      %v396 = vor.u32 %v394, %v395
      %v398 = vshrl.u32 %v383, 16
      %v400 = vrot.slane %v398, 2
      %v401 = vshll.u32 %v383, 16
      %v403 = vrot.slane %v401, 3
      %v404 = vor.u32 %v400, %v403
      %v405 = vsel %vm393, %v396, %v404
      %v414 = vunpack.c.l.b16 %v385
      %v415 = vunpack.c.l.b16 %v386
      %v416 = vunpack.c.l.b16 %v387
      %v417 = vunpack.c.l.b16 %v388
      %v418 = vunpack.c.l.b16 %v389
      %v419 = vunpack.c.l.b16 %v390
      %v420 = vunpack.c.l.b16 %v391
      %v421 = vunpack.c.l.b16 %v392
      %v422 = vpack.c.b16 %v415, %v414
      %v423 = vpack.c.b16 %v417, %v416
      %v424 = vpack.c.b16 %v419, %v418
      %v425 = vpack.c.b16 %v421, %v420
      %v431 = vsel %vm221, %v405, 0
      %v434 = vsel %vm221, %v404, 0
      %436 = vmatprep.subr.bf16.mxu0 0
      %437 = vmatpush1.bf16.msra.mxu0 %v422
      %438 = vmatprep.subr.bf16.mxu0 0
      %439 = vmatpush1.bf16.msra.mxu0 %v423
      %440 = vmatprep.subr.bf16.mxu0 0
      %441 = vmatpush1.bf16.msra.mxu0 %v424
      %442 = vmatprep.subr.bf16.mxu0 0
      %443 = vmatpush1.bf16.msra.mxu0 %v425
      %444 = vmatprep.subr.bf16.mxu0 0
      %445 = vmatpush1.bf16.msra.mxu0 0
      %446 = vmatprep.subr.bf16.mxu0 0
      %447 = vmatpush1.bf16.msra.mxu0 0
      %448 = vmatprep.subr.bf16.mxu0 0
      %449 = vmatpush1.bf16.msra.mxu0 0
      %450 = vmatprep.subr.bf16.mxu0 0
      %451 = vmatpush1.bf16.msra.mxu0 0
      %452 = vmatprep.subr.bf16.mxu0 0
      %453 = vmatpush1.bf16.msra.mxu0 0
      %454 = vmatprep.subr.bf16.mxu0 0
      %455 = vmatpush1.bf16.msra.mxu0 0
      %456 = vmatprep.subr.bf16.mxu0 0
      %457 = vmatpush1.bf16.msra.mxu0 0
      %458 = vmatprep.subr.bf16.mxu0 0
      %459 = vmatpush1.bf16.msra.mxu0 0
      %460 = vmatprep.subr.bf16.mxu0 0
      %461 = vmatpush1.bf16.msra.mxu0 0
      %462 = vmatprep.subr.bf16.mxu0 0
      %463 = vmatpush1.bf16.msra.mxu0 0
      %464 = vmatprep.subr.bf16.mxu0 0
      %465 = vmatpush1.bf16.msra.mxu0 0
      %466 = vmatprep.subr.bf16.mxu0 0
      %467 = vmatpush1.bf16.msra.mxu0 0
      %468 = vmatprep.mubr.bf16.mxu0 0
      %469 = vmatmul.mubr.bf16.gmra.mrb[0].mxu0 %v431
      %v470 = vpop.f32.mrb[0].mxu0
      %v471 = vadd.f32 0.0, %v470
      %v472 = vpop.f32.mrb[0].mxu0
      %v473 = vpop.f32.mrb[0].mxu0
      %v474 = vadd.f32 0.0, %v473
      %v475 = vpop.f32.mrb[0].mxu0
      %476 = vmatprep.mubr.bf16.mxu0 0
      %477 = vmatmul.mubr.bf16.gmra.mrb[0].mxu0 %v434
      %v478 = vpop.f32.mrb[0].mxu0
      %v479 = vadd.f32 0.0, %v478
      %v480 = vpop.f32.mrb[0].mxu0
      %v481 = vpop.f32.mrb[0].mxu0
      %v482 = vpop.f32.mrb[0].mxu0
      %483 = vdwg.mxu0
      %v484 = vadd.f32 %v380, %v471
      %v485 = vadd.f32 %v381, %v474
      %v486 = vadd.f32 %v382, %v479
      %s487 = scalar_lea.vmem %s1, 96
      %v488 = vld [vmem:[%s487] sm:$0xf]
      %v489 = vld [vmem:[%s487 + $0x4] sm:$0xf]
      %v490 = vld [vmem:[%s487 + $0x8] sm:$0xf]
      %v491 = vld [vmem:[%s487 + $0xc] sm:$0xf]
      %v492 = vld [vmem:[%s487 + $0x10] sm:$0xf]
      %v493 = vld [vmem:[%s487 + $0x14] sm:$0xf]
      %v494 = vld [vmem:[%s487 + $0x18] sm:$0xf]
      %v495 = vld [vmem:[%s487 + $0x1c] sm:$0xf]
      %vm498 = vcmask 1044480
      %v499 = vrot.slane %v187, 3
      %v500 = vrot.slane %v383, 3
      %v501 = vsel %vm498, %v499, %v500
      %v510 = vunpack.c.l.b16 %v488
      %v511 = vunpack.c.l.b16 %v489
      %v512 = vunpack.c.l.b16 %v490
      %v513 = vunpack.c.l.b16 %v491
      %v514 = vunpack.c.l.b16 %v492
      %v515 = vunpack.c.l.b16 %v493
      %v516 = vunpack.c.l.b16 %v494
      %v517 = vunpack.c.l.b16 %v495
      %v518 = vpack.c.b16 %v511, %v510
      %v519 = vpack.c.b16 %v513, %v512
      %v520 = vpack.c.b16 %v515, %v514
      %v521 = vpack.c.b16 %v517, %v516
      %v527 = vsel %vm221, %v501, 0
      %v530 = vsel %vm221, %v500, 0
      %532 = vmatprep.subr.bf16.mxu0 0
      %533 = vmatpush1.bf16.msra.mxu0 %v518
      %534 = vmatprep.subr.bf16.mxu0 0
      %535 = vmatpush1.bf16.msra.mxu0 %v519
      %536 = vmatprep.subr.bf16.mxu0 0
      %537 = vmatpush1.bf16.msra.mxu0 %v520
      %538 = vmatprep.subr.bf16.mxu0 0
      %539 = vmatpush1.bf16.msra.mxu0 %v521
      %540 = vmatprep.subr.bf16.mxu0 0
      %541 = vmatpush1.bf16.msra.mxu0 0
      %542 = vmatprep.subr.bf16.mxu0 0
      %543 = vmatpush1.bf16.msra.mxu0 0
      %544 = vmatprep.subr.bf16.mxu0 0
      %545 = vmatpush1.bf16.msra.mxu0 0
      %546 = vmatprep.subr.bf16.mxu0 0
      %547 = vmatpush1.bf16.msra.mxu0 0
      %548 = vmatprep.subr.bf16.mxu0 0
      %549 = vmatpush1.bf16.msra.mxu0 0
      %550 = vmatprep.subr.bf16.mxu0 0
      %551 = vmatpush1.bf16.msra.mxu0 0
      %552 = vmatprep.subr.bf16.mxu0 0
      %553 = vmatpush1.bf16.msra.mxu0 0
      %554 = vmatprep.subr.bf16.mxu0 0
      %555 = vmatpush1.bf16.msra.mxu0 0
      %556 = vmatprep.subr.bf16.mxu0 0
      %557 = vmatpush1.bf16.msra.mxu0 0
      %558 = vmatprep.subr.bf16.mxu0 0
      %559 = vmatpush1.bf16.msra.mxu0 0
      %560 = vmatprep.subr.bf16.mxu0 0
      %561 = vmatpush1.bf16.msra.mxu0 0
      %562 = vmatprep.subr.bf16.mxu0 0
      %563 = vmatpush1.bf16.msra.mxu0 0
      %564 = vmatprep.mubr.bf16.mxu0 0
      %565 = vmatmul.mubr.bf16.gmra.mrb[0].mxu0 %v527
      %v566 = vpop.f32.mrb[0].mxu0
      %v567 = vadd.f32 0.0, %v566
      %v568 = vpop.f32.mrb[0].mxu0
      %v569 = vpop.f32.mrb[0].mxu0
      %v570 = vadd.f32 0.0, %v569
      %v571 = vpop.f32.mrb[0].mxu0
      %572 = vmatprep.mubr.bf16.mxu0 0
      %573 = vmatmul.mubr.bf16.gmra.mrb[0].mxu0 %v530
      %v574 = vpop.f32.mrb[0].mxu0
      %v575 = vadd.f32 0.0, %v574
      %v576 = vpop.f32.mrb[0].mxu0
      %v577 = vpop.f32.mrb[0].mxu0
      %v578 = vpop.f32.mrb[0].mxu0
      %579 = vdwg.mxu0
      %v580 = vadd.f32 %v484, %v567
      %v581 = vadd.f32 %v485, %v570
      %v582 = vadd.f32 %v486, %v575
      %v583 = vmax.f32 %v580, 0.0
      %v584 = vmax.f32 %v581, 0.0
      %v585 = vmax.f32 %v582, 0.0
      %v586 = vpack.c.bf16 %v584, %v583
      %v587 = vpack.c.bf16 %v585, %v585
      %v590 = vunpack.c.l.b16 %v586
      %v591 = vunpack.c.h.b16 %v586
      %v592 = vunpack.c.l.b16 %v587
      %v593 = vpack.c.b16 %v590, %v590
      %v594 = vpack.c.b16 %v591, %v591
      %v595 = vpack.c.b16 %v592, %v592
      %vm599 = vcmask 257024
      %600 = vst.msk [vmem:[%s170] sm:$0xf] %vm599, %v593
      %601 = vst.msk [vmem:[%s170 + $0x4] sm:$0xf] %vm599, %v594
      %vm602 = vcmask 254976
      %603 = vst.msk [vmem:[%s170 + $0x8] sm:$0x3] %vm602, %v595
      %p604 = scmp.lt.s32.totalorder %s14, 1
      %s605 = scalar_select %p604, %s14, 1
      %s606 = smul.addr %s605, 3
      %s607 = smul.addr %s606, 4
      %s608 = scalar_lea.vmem %s3, %s607
      // Predicated region
      $region33: #{encoder_forward.4} parent=31 // pred_check
        %p609 = pneg %p100
      $region34: #{encoder_forward.4} parent=31 // pred_check_branch
        %611 = sbr.rel (%p609) target = $region36
      $region35: #{encoder_forward.4} parent=31 // pred_region
        _
      $region36: #{encoder_forward.4} parent=31 // pred_fallthru
        _
    $region32: #{encoder_forward.4} parent=5 // pred_fallthru
      _
    %p612 = scmp.le.s32.totalorder 2, %s9
    // Predicated region
    $region37: #{encoder_forward.4} parent=5 // pred_check
      %p613 = pneg %p612
    $region38: #{encoder_forward.4} parent=5 // pred_check_branch
      %615 = sbr.rel (%p613) target = $region40
    $region39: #{encoder_forward.4} parent=5 // pred_region
      %s616 = ssub.s32 %s9, 2
      // Predicated region
      $region41: #{encoder_forward.4} parent=39 // pred_check
        %p617 = pneg %p106
      $region42: #{encoder_forward.4} parent=39 // pred_check_branch
        %619 = sbr.rel (%p617) target = $region44
      $region43: #{encoder_forward.4} parent=39 // pred_region
        %p620 = scmp.lt.s32.totalorder %s15, 1
        %s621 = scalar_select %p620, %s15, 1
        %s622 = smul.addr %s621, 3
        %s623 = smul.addr %s622, 4
        %s624 = scalar_lea.vmem %s3, %s623
      $region44: #{encoder_forward.4} parent=39 // pred_fallthru
        _
    $region40: #{encoder_forward.4} parent=5 // pred_fallthru
      _
  $region6: #{encoder_forward.4} parent=0 // loop_footer
    %s13 = sadd.s32 1, %s9
  $region7: #{encoder_forward.4} parent=0 // loop_footer_branch
    %8 = sbr.rel target = $region3
  $region8: #{encoder_forward.4} parent=0 // loop_exit
    _

// kernel: encoder_forward.5
$region0: #{encoder_forward.5}
  #allocation0 [shape = 'u32[]', space=smem, size = 0x4, offset = 0x4, fixed_abs, tag = 'smem constant byte address 0x4 - core index']
  #allocation1 [shape = 'u32[144,128]{1,0:T(1,128)}', space=vmem, size = 0x12000, scoped, tag = 'internal scratch']
  #allocation2 [shape = 'f32[38,32]{1,0:T(8,128)}', space=vmem, size = 0x5000, scoped, tag = 'scratch operand']
  %s0 = inlined_call_operand.vmem [shape: bf16[2,38,32], index: 0, kind: input, shape index: {}]
  %s1 = inlined_call_operand.vmem [shape: bf16[3,3,32,32], index: 1, kind: input, shape index: {}]
  %s2 = inlined_call_operand.vmem [shape: f32[1,32], index: 2, kind: input, shape index: {}]
  %s3 = inlined_call_operand.vmem [shape: bf16[3,3,32,8], index: 3, kind: input, shape index: {}]
  %s4 = inlined_call_operand.vmem [shape: bf16[8,32], index: 4, kind: input, shape index: {}]
  %s5 = inlined_call_operand.vmem [shape: f32[24,1], index: 5, kind: input, shape index: {}]
  %s6 = inlined_call_operand.vmem [shape: f32[2,24,32], index: 6, kind: output, shape index: {}]
  %s7 = sld [smem:[#allocation0]]
  $region65: #{encoder_forward.5} parent=0
    _
  %s9 = ssub.s32 1, %s7
  %s10 = scalar_select 0, %s9, %s7
  loop: start=0, step=1, limit=6
  $region2: #{encoder_forward.5} parent=0 // loop_pre_header
    _
  $region3: #{encoder_forward.5} parent=0 // loop_header
    %s12 = sphi 0, %s16
    %p13 = scmp.ge.s32.totalorder %s12, 6
    %s19 = sphi 0, %s31
    %s20 = sphi 0, %s27
    %s21 = sphi 0, %s19
    %s22 = sphi 0, %s20
    %s23 = sphi 0, %s21
    %s24 = sphi 0, %s22
    %s34 = sphi 0, %s36
    %s37 = sphi 0, %s34
    %s38 = sphi 0, %s37
    %s54 = sphi 0, %s38
    %s58 = sphi 0, %s58
    %s60 = sphi 0, %s58
    %s61 = sphi 0, %s60
    %s75 = sphi 0, %s61
    %s79 = sphi 0, %s79
    %s81 = sphi 0, %s79
    %s82 = sphi 0, %s81
    %s96 = sphi 0, %s82
    %s100 = sphi 0, %s100
    %s102 = sphi 0, %s100
    %s103 = sphi 0, %s102
    %s117 = sphi 0, %s103
    %s121 = sphi 0, %s121
    %s123 = sphi 0, %s121
    %s124 = sphi 0, %s123
    %s138 = sphi 0, %s124
    %s142 = sphi 0, %s142
    %s144 = sphi 0, %s142
    %s145 = sphi 0, %s144
    %s159 = sphi 0, %s145
    %s165 = sphi 0, %s167
    %s168 = sphi 0, %s165
    %s169 = sphi 0, %s168
    %s185 = sphi 0, %s169
  $region4: #{encoder_forward.5} parent=0 // loop_header_branch
    %15 = sbr.rel (%p13) target = $region8
  $region5: #{encoder_forward.5} parent=0 // loop_body
    %s17 = ssub.s32 %s12, 1
    %s18 = ssub.s32 %s12, 2
    %s25 = sadd.s32 1, %s20
    %p26 = scmp.ge.s32.totalorder %s25, 2
    %s27 = scalar_select %p26, 0, %s25
    %s28 = sadd.s32 1, %s19
    %s29 = scalar_select %p26, %s28, %s19
    %p30 = scmp.ge.s32.totalorder %s29, 2
    %s31 = scalar_select %p30, 0, %s29
    %s32 = ssub.s32 %s19, %s31
    %p33 = scmp.eq.s32.totalorder %s32, 0
    %s35 = sadd.s32 %s34, 1
    %s36 = scalar_select %p33, %s34, %s35
    %p39 = pneg %p33
    %p40 = scmp.eq.s32.totalorder %s12, 3
    %p41 = por %p39, %p40
    %p42 = scmp.ne.s32.totalorder %s34, %s37
    %p43 = scmp.eq.s32.totalorder %s12, 0
    %p44 = por %p42, %p43
    %p45 = scmp.ne.s32.totalorder %s34, %s37
    %p46 = scmp.eq.s32.totalorder %s17, 3
    %p47 = por %p45, %p46
    %p48 = scmp.ne.s32.totalorder %s37, %s38
    %p49 = scmp.eq.s32.totalorder %s17, 0
    %p50 = por %p48, %p49
    %p51 = scmp.ne.s32.totalorder %s37, %s38
    %p52 = scmp.eq.s32.totalorder %s18, 3
    %p53 = por %p51, %p52
    %p55 = scmp.ne.s32.totalorder %s38, %s54
    %p56 = scmp.eq.s32.totalorder %s18, 0
    %p57 = por %p55, %p56
    %s59 = sadd.s32 %s58, 1
    %p62 = scmp.eq.s32.totalorder %s12, 3
    %p63 = scmp.ne.s32.totalorder %s58, %s60
    %p64 = scmp.eq.s32.totalorder %s12, 0
    %p65 = por %p63, %p64
    %p66 = scmp.ne.s32.totalorder %s58, %s60
    %p67 = scmp.eq.s32.totalorder %s17, 3
    %p68 = por %p66, %p67
    %p69 = scmp.ne.s32.totalorder %s60, %s61
    %p70 = scmp.eq.s32.totalorder %s17, 0
    %p71 = por %p69, %p70
    %p72 = scmp.ne.s32.totalorder %s60, %s61
    %p73 = scmp.eq.s32.totalorder %s18, 3
    %p74 = por %p72, %p73
    %p76 = scmp.ne.s32.totalorder %s61, %s75
    %p77 = scmp.eq.s32.totalorder %s18, 0
    %p78 = por %p76, %p77
    %s80 = sadd.s32 %s79, 1
    %p83 = scmp.eq.s32.totalorder %s12, 3
    %p84 = scmp.ne.s32.totalorder %s79, %s81
    %p85 = scmp.eq.s32.totalorder %s12, 0
    %p86 = por %p84, %p85
    %p87 = scmp.ne.s32.totalorder %s79, %s81
    %p88 = scmp.eq.s32.totalorder %s17, 3
    %p89 = por %p87, %p88
    %p90 = scmp.ne.s32.totalorder %s81, %s82
    %p91 = scmp.eq.s32.totalorder %s17, 0
    %p92 = por %p90, %p91
    %p93 = scmp.ne.s32.totalorder %s81, %s82
    %p94 = scmp.eq.s32.totalorder %s18, 3
    %p95 = por %p93, %p94
    %p97 = scmp.ne.s32.totalorder %s82, %s96
    %p98 = scmp.eq.s32.totalorder %s18, 0
    %p99 = por %p97, %p98
    %s101 = sadd.s32 %s100, 1
    %p104 = scmp.eq.s32.totalorder %s12, 3
    %p105 = scmp.ne.s32.totalorder %s100, %s102
    %p106 = scmp.eq.s32.totalorder %s12, 0
    %p107 = por %p105, %p106
    %p108 = scmp.ne.s32.totalorder %s100, %s102
    %p109 = scmp.eq.s32.totalorder %s17, 3
    %p110 = por %p108, %p109
    %p111 = scmp.ne.s32.totalorder %s102, %s103
    %p112 = scmp.eq.s32.totalorder %s17, 0
    %p113 = por %p111, %p112
    %p114 = scmp.ne.s32.totalorder %s102, %s103
    %p115 = scmp.eq.s32.totalorder %s18, 3
    %p116 = por %p114, %p115
    %p118 = scmp.ne.s32.totalorder %s103, %s117
    %p119 = scmp.eq.s32.totalorder %s18, 0
    %p120 = por %p118, %p119
    %s122 = sadd.s32 %s121, 1
    %p125 = scmp.eq.s32.totalorder %s12, 3
    %p126 = scmp.ne.s32.totalorder %s121, %s123
    %p127 = scmp.eq.s32.totalorder %s12, 0
    %p128 = por %p126, %p127
    %p129 = scmp.ne.s32.totalorder %s121, %s123
    %p130 = scmp.eq.s32.totalorder %s17, 3
    %p131 = por %p129, %p130
    %p132 = scmp.ne.s32.totalorder %s123, %s124
    %p133 = scmp.eq.s32.totalorder %s17, 0
    %p134 = por %p132, %p133
    %p135 = scmp.ne.s32.totalorder %s123, %s124
    %p136 = scmp.eq.s32.totalorder %s18, 3
    %p137 = por %p135, %p136
    %p139 = scmp.ne.s32.totalorder %s124, %s138
    %p140 = scmp.eq.s32.totalorder %s18, 0
    %p141 = por %p139, %p140
    %s143 = sadd.s32 %s142, 1
    %p146 = scmp.eq.s32.totalorder %s12, 3
    %p147 = scmp.ne.s32.totalorder %s142, %s144
    %p148 = scmp.eq.s32.totalorder %s12, 0
    %p149 = por %p147, %p148
    %p150 = scmp.ne.s32.totalorder %s142, %s144
    %p151 = scmp.eq.s32.totalorder %s17, 3
    %p152 = por %p150, %p151
    %p153 = scmp.ne.s32.totalorder %s144, %s145
    %p154 = scmp.eq.s32.totalorder %s17, 0
    %p155 = por %p153, %p154
    %p156 = scmp.ne.s32.totalorder %s144, %s145
    %p157 = scmp.eq.s32.totalorder %s18, 3
    %p158 = por %p156, %p157
    %p160 = scmp.ne.s32.totalorder %s145, %s159
    %p161 = scmp.eq.s32.totalorder %s18, 0
    %p162 = por %p160, %p161
    %s163 = ssub.s32 %s19, %s31
    %p164 = scmp.eq.s32.totalorder %s163, 0
    %s166 = sadd.s32 %s165, 1
    %s167 = scalar_select %p164, %s165, %s166
    %p170 = pneg %p164
    %p171 = scmp.eq.s32.totalorder %s12, 3
    %p172 = por %p170, %p171
    %p173 = scmp.ne.s32.totalorder %s165, %s168
    %p174 = scmp.eq.s32.totalorder %s12, 0
    %p175 = por %p173, %p174
    %p176 = scmp.ne.s32.totalorder %s165, %s168
    %p177 = scmp.eq.s32.totalorder %s17, 3
    %p178 = por %p176, %p177
    %p179 = scmp.ne.s32.totalorder %s168, %s169
    %p180 = scmp.eq.s32.totalorder %s17, 0
    %p181 = por %p179, %p180
    %p182 = scmp.ne.s32.totalorder %s168, %s169
    %p183 = scmp.eq.s32.totalorder %s18, 3
    %p184 = por %p182, %p183
    %p186 = scmp.ne.s32.totalorder %s169, %s185
    %p187 = scmp.eq.s32.totalorder %s18, 0
    %p188 = por %p186, %p187
    %p189 = scmp.le.s32.totalorder 1, %s12
    %p190 = scmp.lt.s32.totalorder %s12, 5
    %p191 = pnand %p189, %p190
    %p192 = pneg %p191
    // Predicated region
    $region9: #{encoder_forward.5} parent=5 // pred_check
      _
    $region10: #{encoder_forward.5} parent=5 // pred_check_branch
      %194 = sbr.rel (%p191) target = $region12
    $region11: #{encoder_forward.5} parent=5 // pred_region
      %s195 = ssub.s32 %s12, 1
      // Predicated region
      $region13: #{encoder_forward.5} parent=11 // pred_check
        %p196 = pneg %p71
      $region14: #{encoder_forward.5} parent=11 // pred_check_branch
        %198 = sbr.rel (%p196) target = $region16
      $region15: #{encoder_forward.5} parent=11 // pred_region
        _
      $region16: #{encoder_forward.5} parent=11 // pred_fallthru
        _
      // Predicated region
      $region17: #{encoder_forward.5} parent=11 // pred_check
        %p199 = pneg %p92
      $region18: #{encoder_forward.5} parent=11 // pred_check_branch
        %201 = sbr.rel (%p199) target = $region20
      $region19: #{encoder_forward.5} parent=11 // pred_region
        _
      $region20: #{encoder_forward.5} parent=11 // pred_fallthru
        _
      // Predicated region
      $region21: #{encoder_forward.5} parent=11 // pred_check
        %p202 = pneg %p113
      $region22: #{encoder_forward.5} parent=11 // pred_check_branch
        %204 = sbr.rel (%p202) target = $region24
      $region23: #{encoder_forward.5} parent=11 // pred_region
        _
      $region24: #{encoder_forward.5} parent=11 // pred_fallthru
        _
      // Predicated region
      $region25: #{encoder_forward.5} parent=11 // pred_check
        %p205 = pneg %p134
      $region26: #{encoder_forward.5} parent=11 // pred_check_branch
        %207 = sbr.rel (%p205) target = $region28
      $region27: #{encoder_forward.5} parent=11 // pred_region
        _
      $region28: #{encoder_forward.5} parent=11 // pred_fallthru
        _
      // Predicated region
      $region29: #{encoder_forward.5} parent=11 // pred_check
        %p208 = pneg %p155
      $region30: #{encoder_forward.5} parent=11 // pred_check_branch
        %210 = sbr.rel (%p208) target = $region32
      $region31: #{encoder_forward.5} parent=11 // pred_region
        _
      $region32: #{encoder_forward.5} parent=11 // pred_fallthru
        _
    $region12: #{encoder_forward.5} parent=5 // pred_fallthru
      _
    %p211 = scmp.lt.s32.totalorder %s12, 4
    // Predicated region
    $region33: #{encoder_forward.5} parent=5 // pred_check
      %p212 = pneg %p211
    $region34: #{encoder_forward.5} parent=5 // pred_check_branch
      %214 = sbr.rel (%p212) target = $region36
    $region35: #{encoder_forward.5} parent=5 // pred_region
      // Predicated region
      $region37: #{encoder_forward.5} parent=35 // pred_check
        %p215 = pneg %p44
      $region38: #{encoder_forward.5} parent=35 // pred_check_branch
        %217 = sbr.rel (%p215) target = $region40
      $region39: #{encoder_forward.5} parent=35 // pred_region
        %p218 = scmp.lt.s32.totalorder %s19, 1
        %s219 = scalar_select %p218, %s19, 1
        %s220 = smul.addr %s219, 5
        %s221 = smul.addr %s220, 4
        %s222 = scalar_lea.vmem %s0, %s221
      $region40: #{encoder_forward.5} parent=35 // pred_fallthru
        _
    $region36: #{encoder_forward.5} parent=5 // pred_fallthru
      _
    %p223 = scmp.le.s32.totalorder 1, %s12
    %p224 = scmp.lt.s32.totalorder %s12, 5
    %p225 = pnand %p223, %p224
    %p226 = pneg %p225
    // Predicated region
    $region41: #{encoder_forward.5} parent=5 // pred_check
      _
    $region42: #{encoder_forward.5} parent=5 // pred_check_branch
      %228 = sbr.rel (%p225) target = $region44
    $region43: #{encoder_forward.5} parent=5 // pred_region
      %s229 = ssub.s32 %s12, 1
      %p230 = scmp.lt.s32.totalorder %s21, 1
      %s231 = scalar_select %p230, %s21, 1
      %s232 = smul.addr %s231, 5
      %s233 = smul.addr %s232, 4
      %s234 = scalar_lea.vmem %s0, %s233
      %p235 = pneg %p50
      %p236 = pneg %p47
      %p237 = pneg %p71
      %p238 = pneg %p68
      %p239 = pneg %p92
      %p240 = pneg %p89
      %p241 = pneg %p113
      %p242 = pneg %p110
      %p243 = pneg %p134
      %p244 = pneg %p131
      %p245 = pneg %p155
      %p246 = pneg %p152
      %p247 = pneg %p181
      %p248 = pneg %p178
      %p249 = scmp.lt.s32.totalorder %s21, 1
      %s250 = scalar_select %p249, %s21, 1
      %s251 = smul.addr %s250, 3
      %s252 = smul.addr %s251, 8
      %s253 = scalar_lea.vmem %s6, %s252
      %p254 = scmp.lt.s32.totalorder %s21, 1
      %s255 = scalar_select %p254, %s21, 1
      %s256 = smul.addr %s255, 5
      %s257 = smul.addr %s256, 4
      %s258 = scalar_lea.vmem %s0, %s257
      %p259 = scmp.lt.s32.totalorder %s21, 1
      %s260 = scalar_select %p259, %s21, 1
      %s261 = smul.addr %s260, 3
      %s262 = smul.addr %s261, 8
      %s263 = scalar_lea.vmem %s6, %s262
      %v265 = vld [vmem:[%s5] sm:$0xff]
      %v266 = vld [vmem:[%s5 + $0x8] sm:$0xff]
      %v267 = vld [vmem:[%s5 + $0x10] sm:$0xff]
      %p268 = scmp.eq.s32.totalorder %s22, 0
      // Predicated region
      $region45: #{encoder_forward.5} parent=43 // pred_check
        %p269 = pneg %p268
      $region46: #{encoder_forward.5} parent=43 // pred_check_branch
        %271 = sbr.rel (%p269) target = $region48
      $region47: #{encoder_forward.5} parent=43 // pred_region
        %vm272 = vcmask 261120
        %273 = vst.msk [vmem:[#allocation2] sm:$0xff] %vm272, 0.0
        %274 = vst.msk [vmem:[#allocation2 + $0x8] sm:$0xff] %vm272, 0.0
        %275 = vst.msk [vmem:[#allocation2 + $0x10] sm:$0xff] %vm272, 0.0
        %276 = vst.msk [vmem:[#allocation2 + $0x18] sm:$0xff] %vm272, 0.0
        %vm277 = vcmask 259072
        %278 = vst.msk [vmem:[#allocation2 + $0x20] sm:$0x3f] %vm277, 0.0
        %v279 = vld [vmem:[%s258] sm:$0xf]
        %v280 = vld [vmem:[%s258 + $0x4] sm:$0xf]
        %v281 = vld [vmem:[%s258 + $0x8] sm:$0xf]
        %v282 = vld [vmem:[%s258 + $0xc] sm:$0xf]
        %v283 = vld [vmem:[%s258 + $0x10] sm:$0x7]
        %v284 = vunpack.c.l.bf16 %v279
        %v285 = vunpack.c.l.bf16 %v280
        %v286 = vunpack.c.l.bf16 %v281
        %v287 = vunpack.c.l.bf16 %v282
        %v288 = vunpack.c.l.bf16 %v283
        %v289 = vld [vmem:[%s2] sm:$0x1]
        %v291 = vlaneseq
        %v292 = vshrl.u32 %v291, 7
        %v293 = vsub.s32 0, %v292
        %v294 = vrot.slane %v289, %v293
        %v296 = vpack.c.bf16 %v285, %v284
        %v297 = vpack.c.bf16 %v286, %v286
        %v298 = vld [vmem:[%s1] sm:$0xf]
        %v299 = vld [vmem:[%s1 + $0x4] sm:$0xf]
        %v300 = vld [vmem:[%s1 + $0x8] sm:$0xf]
        %v301 = vld [vmem:[%s1 + $0xc] sm:$0xf]
        %v306 = vunpack.c.l.b16 %v298
        %v307 = vunpack.c.l.b16 %v299
        %v308 = vunpack.c.l.b16 %v300
        %v309 = vunpack.c.l.b16 %v301
        %v310 = vpack.c.b16 %v307, %v306
        %v311 = vpack.c.b16 %v309, %v308
        %v315 = vsel %vm272, %v296, 0
        %v318 = vsel %vm272, %v297, 0
        %320 = vmatprep.subr.bf16.mxu0 0
        %321 = vmatpush1.bf16.msra.mxu0 %v310
        %322 = vmatprep.subr.bf16.mxu0 0
        %323 = vmatpush1.bf16.msra.mxu0 %v311
        %324 = vmatprep.subr.bf16.mxu0 0
        %325 = vmatpush1.bf16.msra.mxu0 0
        %326 = vmatprep.subr.bf16.mxu0 0
        %327 = vmatpush1.bf16.msra.mxu0 0
        %328 = vmatprep.subr.bf16.mxu0 0
        %329 = vmatpush1.bf16.msra.mxu0 0
        %330 = vmatprep.subr.bf16.mxu0 0
        %331 = vmatpush1.bf16.msra.mxu0 0
        %332 = vmatprep.subr.bf16.mxu0 0
        %333 = vmatpush1.bf16.msra.mxu0 0
        %334 = vmatprep.subr.bf16.mxu0 0
        %335 = vmatpush1.bf16.msra.mxu0 0
        %336 = vmatprep.subr.bf16.mxu0 0
        %337 = vmatpush1.bf16.msra.mxu0 0
        %338 = vmatprep.subr.bf16.mxu0 0
        %339 = vmatpush1.bf16.msra.mxu0 0
        %340 = vmatprep.subr.bf16.mxu0 0
        %341 = vmatpush1.bf16.msra.mxu0 0
        %342 = vmatprep.subr.bf16.mxu0 0
        %343 = vmatpush1.bf16.msra.mxu0 0
        %344 = vmatprep.subr.bf16.mxu0 0
        %345 = vmatpush1.bf16.msra.mxu0 0
        %346 = vmatprep.subr.bf16.mxu0 0
        %347 = vmatpush1.bf16.msra.mxu0 0
        %348 = vmatprep.subr.bf16.mxu0 0
        %349 = vmatpush1.bf16.msra.mxu0 0
        %350 = vmatprep.subr.bf16.mxu0 0
        %351 = vmatpush1.bf16.msra.mxu0 0
        %352 = vmatprep.mubr.bf16.mxu0 0
        %353 = vmatmul.mubr.bf16.gmra.mrb[0].mxu0 %v315
        %v354 = vpop.f32.mrb[0].mxu0
        %v355 = vadd.f32 0.0, %v354
        %v356 = vpop.f32.mrb[0].mxu0
        %v357 = vpop.f32.mrb[0].mxu0
        %v358 = vadd.f32 0.0, %v357
        %v359 = vpop.f32.mrb[0].mxu0
        %360 = vmatprep.mubr.bf16.mxu0 0
        %361 = vmatmul.mubr.bf16.gmra.mrb[0].mxu0 %v318
        %v362 = vpop.f32.mrb[0].mxu0
        %v363 = vadd.f32 0.0, %v362
        %v364 = vpop.f32.mrb[0].mxu0
        %v365 = vpop.f32.mrb[0].mxu0
        %v366 = vpop.f32.mrb[0].mxu0
        %367 = vdwg.mxu0
        %v368 = vadd.f32 %v294, %v355
        %v369 = vadd.f32 %v294, %v358
        %v370 = vadd.f32 %v294, %v363
        %v371 = vpack.c.bf16 %v287, %v286
        %s372 = scalar_lea.vmem %s1, 16
        %v373 = vld [vmem:[%s372] sm:$0xf]
        %v374 = vld [vmem:[%s372 + $0x4] sm:$0xf]
        %v375 = vld [vmem:[%s372 + $0x8] sm:$0xf]
        %v376 = vld [vmem:[%s372 + $0xc] sm:$0xf]
        %vm377 = vsmask.f32 7424
        %v378 = vshrl.u32 %v296, 16
        %v380 = vshll.u32 %v296, 16
        %v382 = vrot.slane %v380, 1
        %v383 = vor.u32 %v378, %v382
        %v385 = vshll.u32 %v371, 16
        %v387 = vrot.slane %v385, 1
        %v388 = vsel %vm377, %v383, %v387
        %v389 = vshrl.u32 %v371, 16
        %v391 = vor.u32 %v389, %v387
        %v396 = vunpack.c.l.b16 %v373
        %v397 = vunpack.c.l.b16 %v374
        %v398 = vunpack.c.l.b16 %v375
        %v399 = vunpack.c.l.b16 %v376
        %v400 = vpack.c.b16 %v397, %v396
        %v401 = vpack.c.b16 %v399, %v398
        %v405 = vsel %vm272, %v388, 0
        %v408 = vsel %vm272, %v391, 0
        %410 = vmatprep.subr.bf16.mxu0 0
        %411 = vmatpush1.bf16.msra.mxu0 %v400
        %412 = vmatprep.subr.bf16.mxu0 0
        %413 = vmatpush1.bf16.msra.mxu0 %v401
        %414 = vmatprep.subr.bf16.mxu0 0
        %415 = vmatpush1.bf16.msra.mxu0 0
        %416 = vmatprep.subr.bf16.mxu0 0
        %417 = vmatpush1.bf16.msra.mxu0 0
        %418 = vmatprep.subr.bf16.mxu0 0
        %419 = vmatpush1.bf16.msra.mxu0 0
        %420 = vmatprep.subr.bf16.mxu0 0
        %421 = vmatpush1.bf16.msra.mxu0 0
        %422 = vmatprep.subr.bf16.mxu0 0
        %423 = vmatpush1.bf16.msra.mxu0 0
        %424 = vmatprep.subr.bf16.mxu0 0
        %425 = vmatpush1.bf16.msra.mxu0 0
        %426 = vmatprep.subr.bf16.mxu0 0
        %427 = vmatpush1.bf16.msra.mxu0 0
        %428 = vmatprep.subr.bf16.mxu0 0
        %429 = vmatpush1.bf16.msra.mxu0 0
        %430 = vmatprep.subr.bf16.mxu0 0
        %431 = vmatpush1.bf16.msra.mxu0 0
        %432 = vmatprep.subr.bf16.mxu0 0
        %433 = vmatpush1.bf16.msra.mxu0 0
        %434 = vmatprep.subr.bf16.mxu0 0
        %435 = vmatpush1.bf16.msra.mxu0 0
        %436 = vmatprep.subr.bf16.mxu0 0
        %437 = vmatpush1.bf16.msra.mxu0 0
        %438 = vmatprep.subr.bf16.mxu0 0
        %439 = vmatpush1.bf16.msra.mxu0 0
        %440 = vmatprep.subr.bf16.mxu0 0
        %441 = vmatpush1.bf16.msra.mxu0 0
        %442 = vmatprep.mubr.bf16.mxu0 0
        %443 = vmatmul.mubr.bf16.gmra.mrb[0].mxu0 %v405
        %v444 = vpop.f32.mrb[0].mxu0
        %v445 = vadd.f32 0.0, %v444
        %v446 = vpop.f32.mrb[0].mxu0
        %v447 = vpop.f32.mrb[0].mxu0
        %v448 = vadd.f32 0.0, %v447
        %v449 = vpop.f32.mrb[0].mxu0
        %450 = vmatprep.mubr.bf16.mxu0 0
        %451 = vmatmul.mubr.bf16.gmra.mrb[0].mxu0 %v408
        %v452 = vpop.f32.mrb[0].mxu0
        %v453 = vadd.f32 0.0, %v452
        %v454 = vpop.f32.mrb[0].mxu0
        %v455 = vpop.f32.mrb[0].mxu0
        %v456 = vpop.f32.mrb[0].mxu0
        %457 = vdwg.mxu0
        %v458 = vadd.f32 %v368, %v445
        %v459 = vadd.f32 %v369, %v448
        %v460 = vadd.f32 %v370, %v453
        %s461 = scalar_lea.vmem %s1, 32
        %v462 = vld [vmem:[%s461] sm:$0xf]
        %v463 = vld [vmem:[%s461 + $0x4] sm:$0xf]
        %v464 = vld [vmem:[%s461 + $0x8] sm:$0xf]
        %v465 = vld [vmem:[%s461 + $0xc] sm:$0xf]
        %vm468 = vcmask 1046528
        %v469 = vrot.slane %v296, 1
        %v470 = vrot.slane %v371, 1
        %v471 = vsel %vm468, %v469, %v470
        %v476 = vunpack.c.l.b16 %v462
        %v477 = vunpack.c.l.b16 %v463
        %v478 = vunpack.c.l.b16 %v464
        %v479 = vunpack.c.l.b16 %v465
        %v480 = vpack.c.b16 %v477, %v476
        %v481 = vpack.c.b16 %v479, %v478
        %v485 = vsel %vm272, %v471, 0
        %v488 = vsel %vm272, %v470, 0
        %490 = vmatprep.subr.bf16.mxu0 0
        %491 = vmatpush1.bf16.msra.mxu0 %v480
        %492 = vmatprep.subr.bf16.mxu0 0
        %493 = vmatpush1.bf16.msra.mxu0 %v481
        %494 = vmatprep.subr.bf16.mxu0 0
        %495 = vmatpush1.bf16.msra.mxu0 0
        %496 = vmatprep.subr.bf16.mxu0 0
        %497 = vmatpush1.bf16.msra.mxu0 0
        %498 = vmatprep.subr.bf16.mxu0 0
        %499 = vmatpush1.bf16.msra.mxu0 0
        %500 = vmatprep.subr.bf16.mxu0 0
        %501 = vmatpush1.bf16.msra.mxu0 0
        %502 = vmatprep.subr.bf16.mxu0 0
        %503 = vmatpush1.bf16.msra.mxu0 0
        %504 = vmatprep.subr.bf16.mxu0 0
        %505 = vmatpush1.bf16.msra.mxu0 0
        %506 = vmatprep.subr.bf16.mxu0 0
        %507 = vmatpush1.bf16.msra.mxu0 0
        %508 = vmatprep.subr.bf16.mxu0 0
        %509 = vmatpush1.bf16.msra.mxu0 0
        %510 = vmatprep.subr.bf16.mxu0 0
        %511 = vmatpush1.bf16.msra.mxu0 0
        %512 = vmatprep.subr.bf16.mxu0 0
        %513 = vmatpush1.bf16.msra.mxu0 0
        %514 = vmatprep.subr.bf16.mxu0 0
        %515 = vmatpush1.bf16.msra.mxu0 0
        %516 = vmatprep.subr.bf16.mxu0 0
        %517 = vmatpush1.bf16.msra.mxu0 0
        %518 = vmatprep.subr.bf16.mxu0 0
        %519 = vmatpush1.bf16.msra.mxu0 0
        %520 = vmatprep.subr.bf16.mxu0 0
        %521 = vmatpush1.bf16.msra.mxu0 0
        %522 = vmatprep.mubr.bf16.mxu0 0
        %523 = vmatmul.mubr.bf16.gmra.mrb[0].mxu0 %v485
        %v524 = vpop.f32.mrb[0].mxu0
        %v525 = vadd.f32 0.0, %v524
        %v526 = vpop.f32.mrb[0].mxu0
        %v527 = vpop.f32.mrb[0].mxu0
        %v528 = vadd.f32 0.0, %v527
        %v529 = vpop.f32.mrb[0].mxu0
        %530 = vmatprep.mubr.bf16.mxu0 0
        %531 = vmatmul.mubr.bf16.gmra.mrb[0].mxu0 %v488
        %v532 = vpop.f32.mrb[0].mxu0
        %v533 = vadd.f32 0.0, %v532
        %v534 = vpop.f32.mrb[0].mxu0
        %v535 = vpop.f32.mrb[0].mxu0
        %v536 = vpop.f32.mrb[0].mxu0
        %537 = vdwg.mxu0
        %v538 = vadd.f32 %v458, %v525
        %v539 = vadd.f32 %v459, %v528
        %v540 = vadd.f32 %v460, %v533
        %s541 = scalar_lea.vmem %s1, 48
        %v542 = vld [vmem:[%s541] sm:$0xf]
        %v543 = vld [vmem:[%s541 + $0x4] sm:$0xf]
        %v544 = vld [vmem:[%s541 + $0x8] sm:$0xf]
        %v545 = vld [vmem:[%s541 + $0xc] sm:$0xf]
        %vm546 = vcmask 1044480
        %v547 = vrot.slane %v296, 3
        %v548 = vrot.slane %v371, 3
        %v549 = vsel %vm546, %v547, %v548
        %v554 = vunpack.c.l.b16 %v542
        %v555 = vunpack.c.l.b16 %v543
        %v556 = vunpack.c.l.b16 %v544
        %v557 = vunpack.c.l.b16 %v545
        %v558 = vpack.c.b16 %v555, %v554
        %v559 = vpack.c.b16 %v557, %v556
        %v563 = vsel %vm272, %v549, 0
        %v566 = vsel %vm272, %v548, 0
        %568 = vmatprep.subr.bf16.mxu0 0
        %569 = vmatpush1.bf16.msra.mxu0 %v558
        %570 = vmatprep.subr.bf16.mxu0 0
        %571 = vmatpush1.bf16.msra.mxu0 %v559
        %572 = vmatprep.subr.bf16.mxu0 0
        %573 = vmatpush1.bf16.msra.mxu0 0
        %574 = vmatprep.subr.bf16.mxu0 0
        %575 = vmatpush1.bf16.msra.mxu0 0
        %576 = vmatprep.subr.bf16.mxu0 0
        %577 = vmatpush1.bf16.msra.mxu0 0
        %578 = vmatprep.subr.bf16.mxu0 0
        %579 = vmatpush1.bf16.msra.mxu0 0
        %580 = vmatprep.subr.bf16.mxu0 0
        %581 = vmatpush1.bf16.msra.mxu0 0
        %582 = vmatprep.subr.bf16.mxu0 0
        %583 = vmatpush1.bf16.msra.mxu0 0
        %584 = vmatprep.subr.bf16.mxu0 0
        %585 = vmatpush1.bf16.msra.mxu0 0
        %586 = vmatprep.subr.bf16.mxu0 0
        %587 = vmatpush1.bf16.msra.mxu0 0
        %588 = vmatprep.subr.bf16.mxu0 0
        %589 = vmatpush1.bf16.msra.mxu0 0
        %590 = vmatprep.subr.bf16.mxu0 0
        %591 = vmatpush1.bf16.msra.mxu0 0
        %592 = vmatprep.subr.bf16.mxu0 0
        %593 = vmatpush1.bf16.msra.mxu0 0
        %594 = vmatprep.subr.bf16.mxu0 0
        %595 = vmatpush1.bf16.msra.mxu0 0
        %596 = vmatprep.subr.bf16.mxu0 0
        %597 = vmatpush1.bf16.msra.mxu0 0
        %598 = vmatprep.subr.bf16.mxu0 0
        %599 = vmatpush1.bf16.msra.mxu0 0
        %600 = vmatprep.mubr.bf16.mxu0 0
        %601 = vmatmul.mubr.bf16.gmra.mrb[0].mxu0 %v563
        %v602 = vpop.f32.mrb[0].mxu0
        %v603 = vadd.f32 0.0, %v602
        %v604 = vpop.f32.mrb[0].mxu0
        %v605 = vpop.f32.mrb[0].mxu0
        %v606 = vadd.f32 0.0, %v605
        %v607 = vpop.f32.mrb[0].mxu0
        %608 = vmatprep.mubr.bf16.mxu0 0
        %609 = vmatmul.mubr.bf16.gmra.mrb[0].mxu0 %v566
        %v610 = vpop.f32.mrb[0].mxu0
        %v611 = vadd.f32 0.0, %v610
        %v612 = vpop.f32.mrb[0].mxu0
        %v613 = vpop.f32.mrb[0].mxu0
        %v614 = vpop.f32.mrb[0].mxu0
        %615 = vdwg.mxu0
        %v616 = vadd.f32 %v538, %v603
        %v617 = vadd.f32 %v539, %v606
        %v618 = vadd.f32 %v540, %v611
        %s619 = scalar_lea.vmem %s1, 64
        %v620 = vld [vmem:[%s619] sm:$0xf]
        %v621 = vld [vmem:[%s619 + $0x4] sm:$0xf]
        %v622 = vld [vmem:[%s619 + $0x8] sm:$0xf]
        %v623 = vld [vmem:[%s619 + $0xc] sm:$0xf]
        %vm624 = vsmask.f32 4352
        %v625 = vrot.slane %v378, 3
        %v626 = vrot.slane %v380, 4
        %v627 = vor.u32 %v625, %v626
        %v628 = vrot.slane %v389, 3
        %v629 = vrot.slane %v385, 4
        %v630 = vor.u32 %v628, %v629
        %v631 = vsel %vm624, %v627, %v630
        %v636 = vunpack.c.l.b16 %v620
        %v637 = vunpack.c.l.b16 %v621
        %v638 = vunpack.c.l.b16 %v622
        %v639 = vunpack.c.l.b16 %v623
        %v640 = vpack.c.b16 %v637, %v636
        %v641 = vpack.c.b16 %v639, %v638
        %v645 = vsel %vm272, %v631, 0
        %v648 = vsel %vm272, %v630, 0
        %650 = vmatprep.subr.bf16.mxu0 0
        %651 = vmatpush1.bf16.msra.mxu0 %v640
        %652 = vmatprep.subr.bf16.mxu0 0
        %653 = vmatpush1.bf16.msra.mxu0 %v641
        %654 = vmatprep.subr.bf16.mxu0 0
        %655 = vmatpush1.bf16.msra.mxu0 0
        %656 = vmatprep.subr.bf16.mxu0 0
        %657 = vmatpush1.bf16.msra.mxu0 0
        %658 = vmatprep.subr.bf16.mxu0 0
        %659 = vmatpush1.bf16.msra.mxu0 0
        %660 = vmatprep.subr.bf16.mxu0 0
        %661 = vmatpush1.bf16.msra.mxu0 0
        %662 = vmatprep.subr.bf16.mxu0 0
        %663 = vmatpush1.bf16.msra.mxu0 0
        %664 = vmatprep.subr.bf16.mxu0 0
        %665 = vmatpush1.bf16.msra.mxu0 0
        %666 = vmatprep.subr.bf16.mxu0 0
        %667 = vmatpush1.bf16.msra.mxu0 0
        %668 = vmatprep.subr.bf16.mxu0 0
        %669 = vmatpush1.bf16.msra.mxu0 0
        %670 = vmatprep.subr.bf16.mxu0 0
        %671 = vmatpush1.bf16.msra.mxu0 0
        %672 = vmatprep.subr.bf16.mxu0 0
        %673 = vmatpush1.bf16.msra.mxu0 0
        %674 = vmatprep.subr.bf16.mxu0 0
        %675 = vmatpush1.bf16.msra.mxu0 0
        %676 = vmatprep.subr.bf16.mxu0 0
        %677 = vmatpush1.bf16.msra.mxu0 0
        %678 = vmatprep.subr.bf16.mxu0 0
        %679 = vmatpush1.bf16.msra.mxu0 0
        %680 = vmatprep.subr.bf16.mxu0 0
        %681 = vmatpush1.bf16.msra.mxu0 0
        %682 = vmatprep.mubr.bf16.mxu0 0
        %683 = vmatmul.mubr.bf16.gmra.mrb[0].mxu0 %v645
        %v684 = vpop.f32.mrb[0].mxu0
        %v685 = vadd.f32 0.0, %v684
        %v686 = vpop.f32.mrb[0].mxu0
        %v687 = vpop.f32.mrb[0].mxu0
        %v688 = vadd.f32 0.0, %v687
        %v689 = vpop.f32.mrb[0].mxu0
        %690 = vmatprep.mubr.bf16.mxu0 0
        %691 = vmatmul.mubr.bf16.gmra.mrb[0].mxu0 %v648
        %v692 = vpop.f32.mrb[0].mxu0
        %v693 = vadd.f32 0.0, %v692
        %v694 = vpop.f32.mrb[0].mxu0
        %v695 = vpop.f32.mrb[0].mxu0
        %v696 = vpop.f32.mrb[0].mxu0
        %697 = vdwg.mxu0
        %v698 = vadd.f32 %v616, %v685
        %v699 = vadd.f32 %v617, %v688
        %v700 = vadd.f32 %v618, %v693
        %v701 = vpack.c.bf16 %v286, %v285
        %v702 = vpack.c.bf16 %v287, %v287
        %s703 = scalar_lea.vmem %s1, 80
        %v704 = vld [vmem:[%s703] sm:$0xf]
        %v705 = vld [vmem:[%s703 + $0x4] sm:$0xf]
        %v706 = vld [vmem:[%s703 + $0x8] sm:$0xf]
        %v707 = vld [vmem:[%s703 + $0xc] sm:$0xf]
        %v712 = vunpack.c.l.b16 %v704
        %v713 = vunpack.c.l.b16 %v705
        %v714 = vunpack.c.l.b16 %v706
        %v715 = vunpack.c.l.b16 %v707
        %v716 = vpack.c.b16 %v713, %v712
        %v717 = vpack.c.b16 %v715, %v714
        %v721 = vsel %vm272, %v701, 0
        %v724 = vsel %vm272, %v702, 0
        %726 = vmatprep.subr.bf16.mxu0 0
        %727 = vmatpush1.bf16.msra.mxu0 %v716
        %728 = vmatprep.subr.bf16.mxu0 0
        %729 = vmatpush1.bf16.msra.mxu0 %v717
        %730 = vmatprep.subr.bf16.mxu0 0
        %731 = vmatpush1.bf16.msra.mxu0 0
        %732 = vmatprep.subr.bf16.mxu0 0
        %733 = vmatpush1.bf16.msra.mxu0 0
        %734 = vmatprep.subr.bf16.mxu0 0
        %735 = vmatpush1.bf16.msra.mxu0 0
        %736 = vmatprep.subr.bf16.mxu0 0
        %737 = vmatpush1.bf16.msra.mxu0 0
        %738 = vmatprep.subr.bf16.mxu0 0
        %739 = vmatpush1.bf16.msra.mxu0 0
        %740 = vmatprep.subr.bf16.mxu0 0
        %741 = vmatpush1.bf16.msra.mxu0 0
        %742 = vmatprep.subr.bf16.mxu0 0
        %743 = vmatpush1.bf16.msra.mxu0 0
        %744 = vmatprep.subr.bf16.mxu0 0
        %745 = vmatpush1.bf16.msra.mxu0 0
        %746 = vmatprep.subr.bf16.mxu0 0
        %747 = vmatpush1.bf16.msra.mxu0 0
        %748 = vmatprep.subr.bf16.mxu0 0
        %749 = vmatpush1.bf16.msra.mxu0 0
        %750 = vmatprep.subr.bf16.mxu0 0
        %751 = vmatpush1.bf16.msra.mxu0 0
        %752 = vmatprep.subr.bf16.mxu0 0
        %753 = vmatpush1.bf16.msra.mxu0 0
        %754 = vmatprep.subr.bf16.mxu0 0
        %755 = vmatpush1.bf16.msra.mxu0 0
        %756 = vmatprep.subr.bf16.mxu0 0
        %757 = vmatpush1.bf16.msra.mxu0 0
        %758 = vmatprep.mubr.bf16.mxu0 0
        %759 = vmatmul.mubr.bf16.gmra.mrb[0].mxu0 %v721
        %v760 = vpop.f32.mrb[0].mxu0
        %v761 = vadd.f32 0.0, %v760
        %v762 = vpop.f32.mrb[0].mxu0
        %v763 = vpop.f32.mrb[0].mxu0
        %v764 = vadd.f32 0.0, %v763
        %v765 = vpop.f32.mrb[0].mxu0
        %766 = vmatprep.mubr.bf16.mxu0 0
        %767 = vmatmul.mubr.bf16.gmra.mrb[0].mxu0 %v724
        %v768 = vpop.f32.mrb[0].mxu0
        %v769 = vadd.f32 0.0, %v768
        %v770 = vpop.f32.mrb[0].mxu0
        %v771 = vpop.f32.mrb[0].mxu0
        %v772 = vpop.f32.mrb[0].mxu0
        %773 = vdwg.mxu0
        %v774 = vadd.f32 %v698, %v761
        %v775 = vadd.f32 %v699, %v764
        %v776 = vadd.f32 %v700, %v769
        %v777 = vpack.c.bf16 %v288, %v287
        %s778 = scalar_lea.vmem %s1, 96
        %v779 = vld [vmem:[%s778] sm:$0xf]
        %v780 = vld [vmem:[%s778 + $0x4] sm:$0xf]
        %v781 = vld [vmem:[%s778 + $0x8] sm:$0xf]
        %v782 = vld [vmem:[%s778 + $0xc] sm:$0xf]
        %vm785 = vcmask 1045504
        %v786 = vrot.slane %v701, 2
        %v787 = vrot.slane %v777, 2
        %v788 = vsel %vm785, %v786, %v787
        %v793 = vunpack.c.l.b16 %v779
        %v794 = vunpack.c.l.b16 %v780
        %v795 = vunpack.c.l.b16 %v781
        %v796 = vunpack.c.l.b16 %v782
        %v797 = vpack.c.b16 %v794, %v793
        %v798 = vpack.c.b16 %v796, %v795
        %v802 = vsel %vm272, %v788, 0
        %v805 = vsel %vm272, %v787, 0
        %807 = vmatprep.subr.bf16.mxu0 0
        %808 = vmatpush1.bf16.msra.mxu0 %v797
        %809 = vmatprep.subr.bf16.mxu0 0
        %810 = vmatpush1.bf16.msra.mxu0 %v798
        %811 = vmatprep.subr.bf16.mxu0 0
        %812 = vmatpush1.bf16.msra.mxu0 0
        %813 = vmatprep.subr.bf16.mxu0 0
        %814 = vmatpush1.bf16.msra.mxu0 0
        %815 = vmatprep.subr.bf16.mxu0 0
        %816 = vmatpush1.bf16.msra.mxu0 0
        %817 = vmatprep.subr.bf16.mxu0 0
        %818 = vmatpush1.bf16.msra.mxu0 0
        %819 = vmatprep.subr.bf16.mxu0 0
        %820 = vmatpush1.bf16.msra.mxu0 0
        %821 = vmatprep.subr.bf16.mxu0 0
        %822 = vmatpush1.bf16.msra.mxu0 0
        %823 = vmatprep.subr.bf16.mxu0 0
        %824 = vmatpush1.bf16.msra.mxu0 0
        %825 = vmatprep.subr.bf16.mxu0 0
        %826 = vmatpush1.bf16.msra.mxu0 0
        %827 = vmatprep.subr.bf16.mxu0 0
        %828 = vmatpush1.bf16.msra.mxu0 0
        %829 = vmatprep.subr.bf16.mxu0 0
        %830 = vmatpush1.bf16.msra.mxu0 0
        %831 = vmatprep.subr.bf16.mxu0 0
        %832 = vmatpush1.bf16.msra.mxu0 0
        %833 = vmatprep.subr.bf16.mxu0 0
        %834 = vmatpush1.bf16.msra.mxu0 0
        %835 = vmatprep.subr.bf16.mxu0 0
        %836 = vmatpush1.bf16.msra.mxu0 0
        %837 = vmatprep.subr.bf16.mxu0 0
        %838 = vmatpush1.bf16.msra.mxu0 0
        %839 = vmatprep.mubr.bf16.mxu0 0
        %840 = vmatmul.mubr.bf16.gmra.mrb[0].mxu0 %v802
        %v841 = vpop.f32.mrb[0].mxu0
        %v842 = vadd.f32 0.0, %v841
        %v843 = vpop.f32.mrb[0].mxu0
        %v844 = vpop.f32.mrb[0].mxu0
        %v845 = vadd.f32 0.0, %v844
        %v846 = vpop.f32.mrb[0].mxu0
        %847 = vmatprep.mubr.bf16.mxu0 0
        %848 = vmatmul.mubr.bf16.gmra.mrb[0].mxu0 %v805
        %v849 = vpop.f32.mrb[0].mxu0
        %v850 = vadd.f32 0.0, %v849
        %v851 = vpop.f32.mrb[0].mxu0
        %v852 = vpop.f32.mrb[0].mxu0
        %v853 = vpop.f32.mrb[0].mxu0
        %854 = vdwg.mxu0
        %v855 = vadd.f32 %v774, %v842
        %v856 = vadd.f32 %v775, %v845
        %v857 = vadd.f32 %v776, %v850
        %s858 = scalar_lea.vmem %s1, 112
        %v859 = vld [vmem:[%s858] sm:$0xf]
        %v860 = vld [vmem:[%s858 + $0x4] sm:$0xf]
        %v861 = vld [vmem:[%s858 + $0x8] sm:$0xf]
        %v862 = vld [vmem:[%s858 + $0xc] sm:$0xf]
        %vm863 = vsmask.f32 5376
        %v864 = vshrl.u32 %v701, 16
        %v866 = vrot.slane %v864, 2
        %v867 = vshll.u32 %v701, 16
        %v869 = vrot.slane %v867, 3
        %v870 = vor.u32 %v866, %v869
        %v872 = vshrl.u32 %v777, 16
        %v874 = vrot.slane %v872, 2
        %v875 = vshll.u32 %v777, 16
        %v877 = vrot.slane %v875, 3
        %v878 = vor.u32 %v874, %v877
        %v879 = vsel %vm863, %v870, %v878
        %v884 = vunpack.c.l.b16 %v859
        %v885 = vunpack.c.l.b16 %v860
        %v886 = vunpack.c.l.b16 %v861
        %v887 = vunpack.c.l.b16 %v862
        %v888 = vpack.c.b16 %v885, %v884
        %v889 = vpack.c.b16 %v887, %v886
        %v893 = vsel %vm272, %v879, 0
        %v896 = vsel %vm272, %v878, 0
        %898 = vmatprep.subr.bf16.mxu0 0
        %899 = vmatpush1.bf16.msra.mxu0 %v888
        %900 = vmatprep.subr.bf16.mxu0 0
        %901 = vmatpush1.bf16.msra.mxu0 %v889
        %902 = vmatprep.subr.bf16.mxu0 0
        %903 = vmatpush1.bf16.msra.mxu0 0
        %904 = vmatprep.subr.bf16.mxu0 0
        %905 = vmatpush1.bf16.msra.mxu0 0
        %906 = vmatprep.subr.bf16.mxu0 0
        %907 = vmatpush1.bf16.msra.mxu0 0
        %908 = vmatprep.subr.bf16.mxu0 0
        %909 = vmatpush1.bf16.msra.mxu0 0
        %910 = vmatprep.subr.bf16.mxu0 0
        %911 = vmatpush1.bf16.msra.mxu0 0
        %912 = vmatprep.subr.bf16.mxu0 0
        %913 = vmatpush1.bf16.msra.mxu0 0
        %914 = vmatprep.subr.bf16.mxu0 0
        %915 = vmatpush1.bf16.msra.mxu0 0
        %916 = vmatprep.subr.bf16.mxu0 0
        %917 = vmatpush1.bf16.msra.mxu0 0
        %918 = vmatprep.subr.bf16.mxu0 0
        %919 = vmatpush1.bf16.msra.mxu0 0
        %920 = vmatprep.subr.bf16.mxu0 0
        %921 = vmatpush1.bf16.msra.mxu0 0
        %922 = vmatprep.subr.bf16.mxu0 0
        %923 = vmatpush1.bf16.msra.mxu0 0
        %924 = vmatprep.subr.bf16.mxu0 0
        %925 = vmatpush1.bf16.msra.mxu0 0
        %926 = vmatprep.subr.bf16.mxu0 0
        %927 = vmatpush1.bf16.msra.mxu0 0
        %928 = vmatprep.subr.bf16.mxu0 0
        %929 = vmatpush1.bf16.msra.mxu0 0
        %930 = vmatprep.mubr.bf16.mxu0 0
        %931 = vmatmul.mubr.bf16.gmra.mrb[0].mxu0 %v893
        %v932 = vpop.f32.mrb[0].mxu0
        %v933 = vadd.f32 0.0, %v932
        %v934 = vpop.f32.mrb[0].mxu0
        %v935 = vpop.f32.mrb[0].mxu0
        %v936 = vadd.f32 0.0, %v935
        %v937 = vpop.f32.mrb[0].mxu0
        %938 = vmatprep.mubr.bf16.mxu0 0
        %939 = vmatmul.mubr.bf16.gmra.mrb[0].mxu0 %v896
        %v940 = vpop.f32.mrb[0].mxu0
        %v941 = vadd.f32 0.0, %v940
        %v942 = vpop.f32.mrb[0].mxu0
        %v943 = vpop.f32.mrb[0].mxu0
        %v944 = vpop.f32.mrb[0].mxu0
        %945 = vdwg.mxu0
        %v946 = vadd.f32 %v855, %v933
        %v947 = vadd.f32 %v856, %v936
        %v948 = vadd.f32 %v857, %v941
        %s949 = scalar_lea.vmem %s1, 128
        %v950 = vld [vmem:[%s949] sm:$0xf]
        %v951 = vld [vmem:[%s949 + $0x4] sm:$0xf]
        %v952 = vld [vmem:[%s949 + $0x8] sm:$0xf]
        %v953 = vld [vmem:[%s949 + $0xc] sm:$0xf]
        %v954 = vrot.slane %v701, 3
        %v955 = vrot.slane %v777, 3
        %v956 = vsel %vm546, %v954, %v955
        %v961 = vunpack.c.l.b16 %v950
        %v962 = vunpack.c.l.b16 %v951
        %v963 = vunpack.c.l.b16 %v952
        %v964 = vunpack.c.l.b16 %v953
        %v965 = vpack.c.b16 %v962, %v961
        %v966 = vpack.c.b16 %v964, %v963
        %v970 = vsel %vm272, %v956, 0
        %v973 = vsel %vm272, %v955, 0
        %975 = vmatprep.subr.bf16.mxu0 0
        %976 = vmatpush1.bf16.msra.mxu0 %v965
        %977 = vmatprep.subr.bf16.mxu0 0
        %978 = vmatpush1.bf16.msra.mxu0 %v966
        %979 = vmatprep.subr.bf16.mxu0 0
        %980 = vmatpush1.bf16.msra.mxu0 0
        %981 = vmatprep.subr.bf16.mxu0 0
        %982 = vmatpush1.bf16.msra.mxu0 0
        %983 = vmatprep.subr.bf16.mxu0 0
        %984 = vmatpush1.bf16.msra.mxu0 0
        %985 = vmatprep.subr.bf16.mxu0 0
        %986 = vmatpush1.bf16.msra.mxu0 0
        %987 = vmatprep.subr.bf16.mxu0 0
        %988 = vmatpush1.bf16.msra.mxu0 0
        %989 = vmatprep.subr.bf16.mxu0 0
        %990 = vmatpush1.bf16.msra.mxu0 0
        %991 = vmatprep.subr.bf16.mxu0 0
        %992 = vmatpush1.bf16.msra.mxu0 0
        %993 = vmatprep.subr.bf16.mxu0 0
        %994 = vmatpush1.bf16.msra.mxu0 0
        %995 = vmatprep.subr.bf16.mxu0 0
        %996 = vmatpush1.bf16.msra.mxu0 0
        %997 = vmatprep.subr.bf16.mxu0 0
        %998 = vmatpush1.bf16.msra.mxu0 0
        %999 = vmatprep.subr.bf16.mxu0 0
        %1000 = vmatpush1.bf16.msra.mxu0 0
        %1001 = vmatprep.subr.bf16.mxu0 0
        %1002 = vmatpush1.bf16.msra.mxu0 0
        %1003 = vmatprep.subr.bf16.mxu0 0
        %1004 = vmatpush1.bf16.msra.mxu0 0
        %1005 = vmatprep.subr.bf16.mxu0 0
        %1006 = vmatpush1.bf16.msra.mxu0 0
        %1007 = vmatprep.mubr.bf16.mxu0 0
        %1008 = vmatmul.mubr.bf16.gmra.mrb[0].mxu0 %v970
        %v1009 = vpop.f32.mrb[0].mxu0
        %v1010 = vadd.f32 0.0, %v1009
        %v1011 = vpop.f32.mrb[0].mxu0
        %v1012 = vpop.f32.mrb[0].mxu0
        %v1013 = vadd.f32 0.0, %v1012
        %v1014 = vpop.f32.mrb[0].mxu0
        %1015 = vmatprep.mubr.bf16.mxu0 0
        %1016 = vmatmul.mubr.bf16.gmra.mrb[0].mxu0 %v973
        %v1017 = vpop.f32.mrb[0].mxu0
        %v1018 = vadd.f32 0.0, %v1017
        %v1019 = vpop.f32.mrb[0].mxu0
        %v1020 = vpop.f32.mrb[0].mxu0
        %v1021 = vpop.f32.mrb[0].mxu0
        %1022 = vdwg.mxu0
        %v1023 = vadd.f32 %v946, %v1010
        %v1024 = vadd.f32 %v947, %v1013
        %v1025 = vadd.f32 %v948, %v1018
        %1027 = vset.pattern.permute.xlu0 0
        %1028 = vperm.xlu0 %1027, %v265
        %v1029 = vpop.permute.xlu0 %1028
        %1032 = vset.pattern.permute.xlu0 0
        %1033 = vperm.xlu0 %1032, %v266
        %v1034 = vpop.permute.xlu0 %1033
        %1037 = vset.pattern.permute.xlu0 0
        %1038 = vperm.xlu0 %1037, %v267
        %v1039 = vpop.permute.xlu0 %1038
        %v1041 = vmul.f32 %v1023, %v1029
        %v1042 = vmul.f32 %v1024, %v1034
        %v1043 = vmul.f32 %v1025, %v1039
        %1044 = vst.msk [vmem:[#allocation2 + $0x7] sm:$0xff] %vm272, %v1041
        %1045 = vst.msk [vmem:[#allocation2 + $0xf] sm:$0xff] %vm272, %v1042
        %1046 = vst.msk [vmem:[#allocation2 + $0x17] sm:$0xff] %vm272, %v1043
      $region48: #{encoder_forward.5} parent=43 // pred_fallthru
        _
      %v1047 = vld [vmem:[#allocation2] sm:$0xff]
      %v1048 = vld [vmem:[#allocation2 + $0x8] sm:$0xff]
      %v1049 = vld [vmem:[#allocation2 + $0x10] sm:$0xff]
      %v1050 = vld [vmem:[#allocation2 + $0x18] sm:$0xff]
      %v1051 = vld [vmem:[#allocation2 + $0x20] sm:$0x3f]
      %v1052 = vmax.f32 %v1047, 0.0
      %v1053 = vmax.f32 %v1048, 0.0
      %v1054 = vmax.f32 %v1049, 0.0
      %v1055 = vmax.f32 %v1050, 0.0
      %v1056 = vmax.f32 %v1051, 0.0
      %v1057 = vpack.c.bf16 %v1053, %v1052
      %v1058 = vpack.c.bf16 %v1054, %v1054
      %v1059 = vld [vmem:[%s3] sm:$0xf]
      %v1060 = vld [vmem:[%s3 + $0x4] sm:$0xf]
      %v1061 = vld [vmem:[%s3 + $0x8] sm:$0xf]
      %v1062 = vld [vmem:[%s3 + $0xc] sm:$0xf]
      %v1063 = vpack.c.bf16 %v1055, %v1054
      %s1064 = scalar_lea.vmem %s3, 16
      %v1065 = vld [vmem:[%s1064] sm:$0xf]
      %v1066 = vld [vmem:[%s1064 + $0x4] sm:$0xf]
      %v1067 = vld [vmem:[%s1064 + $0x8] sm:$0xf]
      %v1068 = vld [vmem:[%s1064 + $0xc] sm:$0xf]
      %vm1069 = vsmask.f32 7424
      %v1071 = vshrl.u32 %v1057, 16
      %v1073 = vshll.u32 %v1057, 16
      %v1075 = vrot.slane %v1073, 1
      %v1076 = vor.u32 %v1071, %v1075
      %v1078 = vshll.u32 %v1063, 16
      %v1080 = vrot.slane %v1078, 1
      %v1081 = vsel %vm1069, %v1076, %v1080
      %v1082 = vshrl.u32 %v1063, 16
      %v1084 = vor.u32 %v1082, %v1080
      %v1089 = vunpack.c.l.b16 %v1065
      %v1090 = vunpack.c.l.b16 %v1066
      %v1091 = vunpack.c.l.b16 %v1067
      %v1092 = vunpack.c.l.b16 %v1068
      %v1093 = vpack.c.b16 %v1090, %v1089
      %v1094 = vpack.c.b16 %v1092, %v1091
      %vm1097 = vcmask 261120
      %v1099 = vsel %vm1097, %v1081, 0
      %v1102 = vsel %vm1097, %v1084, 0
      %1104 = vmatprep.subr.bf16.mxu0 0
      %1105 = vmatpush1.bf16.msra.mxu0 %v1093
      %1106 = vmatprep.subr.bf16.mxu0 0
      %1107 = vmatpush1.bf16.msra.mxu0 %v1094
      %1108 = vmatprep.subr.bf16.mxu0 0
      %1109 = vmatpush1.bf16.msra.mxu0 0
      %1110 = vmatprep.subr.bf16.mxu0 0
      %1111 = vmatpush1.bf16.msra.mxu0 0
      %1112 = vmatprep.subr.bf16.mxu0 0
      %1113 = vmatpush1.bf16.msra.mxu0 0
      %1114 = vmatprep.subr.bf16.mxu0 0
      %1115 = vmatpush1.bf16.msra.mxu0 0
      %1116 = vmatprep.subr.bf16.mxu0 0
      %1117 = vmatpush1.bf16.msra.mxu0 0
      %1118 = vmatprep.subr.bf16.mxu0 0
      %1119 = vmatpush1.bf16.msra.mxu0 0
      %1120 = vmatprep.subr.bf16.mxu0 0
      %1121 = vmatpush1.bf16.msra.mxu0 0
      %1122 = vmatprep.subr.bf16.mxu0 0
      %1123 = vmatpush1.bf16.msra.mxu0 0
      %1124 = vmatprep.subr.bf16.mxu0 0
      %1125 = vmatpush1.bf16.msra.mxu0 0
      %1126 = vmatprep.subr.bf16.mxu0 0
      %1127 = vmatpush1.bf16.msra.mxu0 0
      %1128 = vmatprep.subr.bf16.mxu0 0
      %1129 = vmatpush1.bf16.msra.mxu0 0
      %1130 = vmatprep.subr.bf16.mxu0 0
      %1131 = vmatpush1.bf16.msra.mxu0 0
      %1132 = vmatprep.subr.bf16.mxu0 0
      %1133 = vmatpush1.bf16.msra.mxu0 0
      %1134 = vmatprep.subr.bf16.mxu0 0
      %1135 = vmatpush1.bf16.msra.mxu0 0
      %1136 = vmatprep.mubr.bf16.mxu0 0
      %1137 = vmatmul.mubr.bf16.gmra.mrb[0].mxu0 %v1099
      %v1138 = vpop.f32.mrb[0].mxu0
      %v1139 = vadd.f32 0.0, %v1138
      %v1140 = vpop.f32.mrb[0].mxu0
      %v1141 = vpop.f32.mrb[0].mxu0
      %v1142 = vadd.f32 0.0, %v1141
      %v1143 = vpop.f32.mrb[0].mxu0
      %1144 = vmatprep.mubr.bf16.mxu0 0
      %1145 = vmatmul.mubr.bf16.gmra.mrb[0].mxu0 %v1102
      %v1146 = vpop.f32.mrb[0].mxu0
      %v1147 = vadd.f32 0.0, %v1146
      %v1148 = vpop.f32.mrb[0].mxu0
      %v1149 = vpop.f32.mrb[0].mxu0
      %v1150 = vpop.f32.mrb[0].mxu0
      %1151 = vdwg.mxu0
      %v1156 = vunpack.c.l.b16 %v1059
      %v1157 = vunpack.c.l.b16 %v1060
      %v1158 = vunpack.c.l.b16 %v1061
      %v1159 = vunpack.c.l.b16 %v1062
      %v1160 = vpack.c.b16 %v1157, %v1156
      %v1161 = vpack.c.b16 %v1159, %v1158
      %v1164 = vsel %vm1097, %v1057, 0
      %v1167 = vsel %vm1097, %v1058, 0
      %1169 = vmatprep.subr.bf16.mxu0 0
      %1170 = vmatpush1.bf16.msra.mxu0 %v1160
      %1171 = vmatprep.subr.bf16.mxu0 0
      %1172 = vmatpush1.bf16.msra.mxu0 %v1161
      %1173 = vmatprep.subr.bf16.mxu0 0
      %1174 = vmatpush1.bf16.msra.mxu0 0
      %1175 = vmatprep.subr.bf16.mxu0 0
      %1176 = vmatpush1.bf16.msra.mxu0 0
      %1177 = vmatprep.subr.bf16.mxu0 0
      %1178 = vmatpush1.bf16.msra.mxu0 0
      %1179 = vmatprep.subr.bf16.mxu0 0
      %1180 = vmatpush1.bf16.msra.mxu0 0
      %1181 = vmatprep.subr.bf16.mxu0 0
      %1182 = vmatpush1.bf16.msra.mxu0 0
      %1183 = vmatprep.subr.bf16.mxu0 0
      %1184 = vmatpush1.bf16.msra.mxu0 0
      %1185 = vmatprep.subr.bf16.mxu0 0
      %1186 = vmatpush1.bf16.msra.mxu0 0
      %1187 = vmatprep.subr.bf16.mxu0 0
      %1188 = vmatpush1.bf16.msra.mxu0 0
      %1189 = vmatprep.subr.bf16.mxu0 0
      %1190 = vmatpush1.bf16.msra.mxu0 0
      %1191 = vmatprep.subr.bf16.mxu0 0
      %1192 = vmatpush1.bf16.msra.mxu0 0
      %1193 = vmatprep.subr.bf16.mxu0 0
      %1194 = vmatpush1.bf16.msra.mxu0 0
      %1195 = vmatprep.subr.bf16.mxu0 0
      %1196 = vmatpush1.bf16.msra.mxu0 0
      %1197 = vmatprep.subr.bf16.mxu0 0
      %1198 = vmatpush1.bf16.msra.mxu0 0
      %1199 = vmatprep.subr.bf16.mxu0 0
      %1200 = vmatpush1.bf16.msra.mxu0 0
      %1201 = vmatprep.mubr.bf16.mxu0 0
      %1202 = vmatmul.mubr.bf16.gmra.mrb[0].mxu0 %v1164
      %v1203 = vpop.f32.mrb[0].mxu0
      %v1204 = vadd.f32 %v1139, %v1203
      %v1205 = vpop.f32.mrb[0].mxu0
      %v1206 = vpop.f32.mrb[0].mxu0
      %v1207 = vadd.f32 %v1142, %v1206
      %v1208 = vpop.f32.mrb[0].mxu0
      %1209 = vmatprep.mubr.bf16.mxu0 0
      %1210 = vmatmul.mubr.bf16.gmra.mrb[0].mxu0 %v1167
      %v1211 = vpop.f32.mrb[0].mxu0
      %v1212 = vadd.f32 %v1147, %v1211
      %v1213 = vpop.f32.mrb[0].mxu0
      %v1214 = vpop.f32.mrb[0].mxu0
      %v1215 = vpop.f32.mrb[0].mxu0
      %1216 = vdwg.mxu0
      %s1217 = scalar_lea.vmem %s3, 32
      %v1218 = vld [vmem:[%s1217] sm:$0xf]
      %v1219 = vld [vmem:[%s1217 + $0x4] sm:$0xf]
      %v1220 = vld [vmem:[%s1217 + $0x8] sm:$0xf]
      %v1221 = vld [vmem:[%s1217 + $0xc] sm:$0xf]
      %vm1224 = vcmask 1046528
      %v1225 = vrot.slane %v1057, 1
      %v1226 = vrot.slane %v1063, 1
      %v1227 = vsel %vm1224, %v1225, %v1226
      %v1232 = vunpack.c.l.b16 %v1218
      %v1233 = vunpack.c.l.b16 %v1219
      %v1234 = vunpack.c.l.b16 %v1220
      %v1235 = vunpack.c.l.b16 %v1221
      %v1236 = vpack.c.b16 %v1233, %v1232
      %v1237 = vpack.c.b16 %v1235, %v1234
      %v1241 = vsel %vm1097, %v1227, 0
      %v1244 = vsel %vm1097, %v1226, 0
      %1246 = vmatprep.subr.bf16.mxu0 0
      %1247 = vmatpush1.bf16.msra.mxu0 %v1236
      %1248 = vmatprep.subr.bf16.mxu0 0
      %1249 = vmatpush1.bf16.msra.mxu0 %v1237
      %1250 = vmatprep.subr.bf16.mxu0 0
      %1251 = vmatpush1.bf16.msra.mxu0 0
      %1252 = vmatprep.subr.bf16.mxu0 0
      %1253 = vmatpush1.bf16.msra.mxu0 0
      %1254 = vmatprep.subr.bf16.mxu0 0
      %1255 = vmatpush1.bf16.msra.mxu0 0
      %1256 = vmatprep.subr.bf16.mxu0 0
      %1257 = vmatpush1.bf16.msra.mxu0 0
      %1258 = vmatprep.subr.bf16.mxu0 0
      %1259 = vmatpush1.bf16.msra.mxu0 0
      %1260 = vmatprep.subr.bf16.mxu0 0
      %1261 = vmatpush1.bf16.msra.mxu0 0
      %1262 = vmatprep.subr.bf16.mxu0 0
      %1263 = vmatpush1.bf16.msra.mxu0 0
      %1264 = vmatprep.subr.bf16.mxu0 0
      %1265 = vmatpush1.bf16.msra.mxu0 0
      %1266 = vmatprep.subr.bf16.mxu0 0
      %1267 = vmatpush1.bf16.msra.mxu0 0
      %1268 = vmatprep.subr.bf16.mxu0 0
      %1269 = vmatpush1.bf16.msra.mxu0 0
      %1270 = vmatprep.subr.bf16.mxu0 0
      %1271 = vmatpush1.bf16.msra.mxu0 0
      %1272 = vmatprep.subr.bf16.mxu0 0
      %1273 = vmatpush1.bf16.msra.mxu0 0
      %1274 = vmatprep.subr.bf16.mxu0 0
      %1275 = vmatpush1.bf16.msra.mxu0 0
      %1276 = vmatprep.subr.bf16.mxu0 0
      %1277 = vmatpush1.bf16.msra.mxu0 0
      %1278 = vmatprep.mubr.bf16.mxu0 0
      %1279 = vmatmul.mubr.bf16.gmra.mrb[0].mxu0 %v1241
      %v1280 = vpop.f32.mrb[0].mxu0
      %v1281 = vadd.f32 0.0, %v1280
      %v1282 = vpop.f32.mrb[0].mxu0
      %v1283 = vpop.f32.mrb[0].mxu0
      %v1284 = vadd.f32 0.0, %v1283
      %v1285 = vpop.f32.mrb[0].mxu0
      %1286 = vmatprep.mubr.bf16.mxu0 0
      %1287 = vmatmul.mubr.bf16.gmra.mrb[0].mxu0 %v1244
      %v1288 = vpop.f32.mrb[0].mxu0
      %v1289 = vadd.f32 0.0, %v1288
      %v1290 = vpop.f32.mrb[0].mxu0
      %v1291 = vpop.f32.mrb[0].mxu0
      %v1292 = vpop.f32.mrb[0].mxu0
      %1293 = vdwg.mxu0
      %v1294 = vadd.f32 %v1204, %v1281
      %v1295 = vadd.f32 %v1207, %v1284
      %v1296 = vadd.f32 %v1212, %v1289
      %s1297 = scalar_lea.vmem %s3, 48
      %v1298 = vld [vmem:[%s1297] sm:$0xf]
      %v1299 = vld [vmem:[%s1297 + $0x4] sm:$0xf]
      %v1300 = vld [vmem:[%s1297 + $0x8] sm:$0xf]
      %v1301 = vld [vmem:[%s1297 + $0xc] sm:$0xf]
      %vm1302 = vcmask 1044480
      %v1303 = vrot.slane %v1057, 3
      %v1304 = vrot.slane %v1063, 3
      %v1305 = vsel %vm1302, %v1303, %v1304
      %v1310 = vunpack.c.l.b16 %v1298
      %v1311 = vunpack.c.l.b16 %v1299
      %v1312 = vunpack.c.l.b16 %v1300
      %v1313 = vunpack.c.l.b16 %v1301
      %v1314 = vpack.c.b16 %v1311, %v1310
      %v1315 = vpack.c.b16 %v1313, %v1312
      %v1319 = vsel %vm1097, %v1305, 0
      %v1322 = vsel %vm1097, %v1304, 0
      %1324 = vmatprep.subr.bf16.mxu0 0
      %1325 = vmatpush1.bf16.msra.mxu0 %v1314
      %1326 = vmatprep.subr.bf16.mxu0 0
      %1327 = vmatpush1.bf16.msra.mxu0 %v1315
      %1328 = vmatprep.subr.bf16.mxu0 0
      %1329 = vmatpush1.bf16.msra.mxu0 0
      %1330 = vmatprep.subr.bf16.mxu0 0
      %1331 = vmatpush1.bf16.msra.mxu0 0
      %1332 = vmatprep.subr.bf16.mxu0 0
      %1333 = vmatpush1.bf16.msra.mxu0 0
      %1334 = vmatprep.subr.bf16.mxu0 0
      %1335 = vmatpush1.bf16.msra.mxu0 0
      %1336 = vmatprep.subr.bf16.mxu0 0
      %1337 = vmatpush1.bf16.msra.mxu0 0
      %1338 = vmatprep.subr.bf16.mxu0 0
      %1339 = vmatpush1.bf16.msra.mxu0 0
      %1340 = vmatprep.subr.bf16.mxu0 0
      %1341 = vmatpush1.bf16.msra.mxu0 0
      %1342 = vmatprep.subr.bf16.mxu0 0
      %1343 = vmatpush1.bf16.msra.mxu0 0
      %1344 = vmatprep.subr.bf16.mxu0 0
      %1345 = vmatpush1.bf16.msra.mxu0 0
      %1346 = vmatprep.subr.bf16.mxu0 0
      %1347 = vmatpush1.bf16.msra.mxu0 0
      %1348 = vmatprep.subr.bf16.mxu0 0
      %1349 = vmatpush1.bf16.msra.mxu0 0
      %1350 = vmatprep.subr.bf16.mxu0 0
      %1351 = vmatpush1.bf16.msra.mxu0 0
      %1352 = vmatprep.subr.bf16.mxu0 0
      %1353 = vmatpush1.bf16.msra.mxu0 0
      %1354 = vmatprep.subr.bf16.mxu0 0
      %1355 = vmatpush1.bf16.msra.mxu0 0
      %1356 = vmatprep.mubr.bf16.mxu0 0
      %1357 = vmatmul.mubr.bf16.gmra.mrb[0].mxu0 %v1319
      %v1358 = vpop.f32.mrb[0].mxu0
      %v1359 = vadd.f32 0.0, %v1358
      %v1360 = vpop.f32.mrb[0].mxu0
      %v1361 = vpop.f32.mrb[0].mxu0
      %v1362 = vadd.f32 0.0, %v1361
      %v1363 = vpop.f32.mrb[0].mxu0
      %1364 = vmatprep.mubr.bf16.mxu0 0
      %1365 = vmatmul.mubr.bf16.gmra.mrb[0].mxu0 %v1322
      %v1366 = vpop.f32.mrb[0].mxu0
      %v1367 = vadd.f32 0.0, %v1366
      %v1368 = vpop.f32.mrb[0].mxu0
      %v1369 = vpop.f32.mrb[0].mxu0
      %v1370 = vpop.f32.mrb[0].mxu0
      %1371 = vdwg.mxu0
      %v1372 = vadd.f32 %v1294, %v1359
      %v1373 = vadd.f32 %v1295, %v1362
      %v1374 = vadd.f32 %v1296, %v1367
      %s1375 = scalar_lea.vmem %s3, 64
      %v1376 = vld [vmem:[%s1375] sm:$0xf]
      %v1377 = vld [vmem:[%s1375 + $0x4] sm:$0xf]
      %v1378 = vld [vmem:[%s1375 + $0x8] sm:$0xf]
      %v1379 = vld [vmem:[%s1375 + $0xc] sm:$0xf]
      %vm1380 = vsmask.f32 4352
      %v1381 = vrot.slane %v1071, 3
      %v1382 = vrot.slane %v1073, 4
      %v1383 = vor.u32 %v1381, %v1382
      %v1384 = vrot.slane %v1082, 3
      %v1385 = vrot.slane %v1078, 4
      %v1386 = vor.u32 %v1384, %v1385
      %v1387 = vsel %vm1380, %v1383, %v1386
      %v1392 = vunpack.c.l.b16 %v1376
      %v1393 = vunpack.c.l.b16 %v1377
      %v1394 = vunpack.c.l.b16 %v1378
      %v1395 = vunpack.c.l.b16 %v1379
      %v1396 = vpack.c.b16 %v1393, %v1392
      %v1397 = vpack.c.b16 %v1395, %v1394
      %v1401 = vsel %vm1097, %v1387, 0
      %v1404 = vsel %vm1097, %v1386, 0
      %1406 = vmatprep.subr.bf16.mxu0 0
      %1407 = vmatpush1.bf16.msra.mxu0 %v1396
      %1408 = vmatprep.subr.bf16.mxu0 0
      %1409 = vmatpush1.bf16.msra.mxu0 %v1397
      %1410 = vmatprep.subr.bf16.mxu0 0
      %1411 = vmatpush1.bf16.msra.mxu0 0
      %1412 = vmatprep.subr.bf16.mxu0 0
      %1413 = vmatpush1.bf16.msra.mxu0 0
      %1414 = vmatprep.subr.bf16.mxu0 0
      %1415 = vmatpush1.bf16.msra.mxu0 0
      %1416 = vmatprep.subr.bf16.mxu0 0
      %1417 = vmatpush1.bf16.msra.mxu0 0
      %1418 = vmatprep.subr.bf16.mxu0 0
      %1419 = vmatpush1.bf16.msra.mxu0 0
      %1420 = vmatprep.subr.bf16.mxu0 0
      %1421 = vmatpush1.bf16.msra.mxu0 0
      %1422 = vmatprep.subr.bf16.mxu0 0
      %1423 = vmatpush1.bf16.msra.mxu0 0
      %1424 = vmatprep.subr.bf16.mxu0 0
      %1425 = vmatpush1.bf16.msra.mxu0 0
      %1426 = vmatprep.subr.bf16.mxu0 0
      %1427 = vmatpush1.bf16.msra.mxu0 0
      %1428 = vmatprep.subr.bf16.mxu0 0
      %1429 = vmatpush1.bf16.msra.mxu0 0
      %1430 = vmatprep.subr.bf16.mxu0 0
      %1431 = vmatpush1.bf16.msra.mxu0 0
      %1432 = vmatprep.subr.bf16.mxu0 0
      %1433 = vmatpush1.bf16.msra.mxu0 0
      %1434 = vmatprep.subr.bf16.mxu0 0
      %1435 = vmatpush1.bf16.msra.mxu0 0
      %1436 = vmatprep.subr.bf16.mxu0 0
      %1437 = vmatpush1.bf16.msra.mxu0 0
      %1438 = vmatprep.mubr.bf16.mxu0 0
      %1439 = vmatmul.mubr.bf16.gmra.mrb[0].mxu0 %v1401
      %v1440 = vpop.f32.mrb[0].mxu0
      %v1441 = vadd.f32 0.0, %v1440
      %v1442 = vpop.f32.mrb[0].mxu0
      %v1443 = vpop.f32.mrb[0].mxu0
      %v1444 = vadd.f32 0.0, %v1443
      %v1445 = vpop.f32.mrb[0].mxu0
      %1446 = vmatprep.mubr.bf16.mxu0 0
      %1447 = vmatmul.mubr.bf16.gmra.mrb[0].mxu0 %v1404
      %v1448 = vpop.f32.mrb[0].mxu0
      %v1449 = vadd.f32 0.0, %v1448
      %v1450 = vpop.f32.mrb[0].mxu0
      %v1451 = vpop.f32.mrb[0].mxu0
      %v1452 = vpop.f32.mrb[0].mxu0
      %1453 = vdwg.mxu0
      %v1454 = vadd.f32 %v1372, %v1441
      %v1455 = vadd.f32 %v1373, %v1444
      %v1456 = vadd.f32 %v1374, %v1449
      %v1457 = vpack.c.bf16 %v1054, %v1053
      %v1458 = vpack.c.bf16 %v1055, %v1055
      %s1459 = scalar_lea.vmem %s3, 80
      %v1460 = vld [vmem:[%s1459] sm:$0xf]
      %v1461 = vld [vmem:[%s1459 + $0x4] sm:$0xf]
      %v1462 = vld [vmem:[%s1459 + $0x8] sm:$0xf]
      %v1463 = vld [vmem:[%s1459 + $0xc] sm:$0xf]
      %v1468 = vunpack.c.l.b16 %v1460
      %v1469 = vunpack.c.l.b16 %v1461
      %v1470 = vunpack.c.l.b16 %v1462
      %v1471 = vunpack.c.l.b16 %v1463
      %v1472 = vpack.c.b16 %v1469, %v1468
      %v1473 = vpack.c.b16 %v1471, %v1470
      %v1477 = vsel %vm1097, %v1457, 0
      %v1480 = vsel %vm1097, %v1458, 0
      %1482 = vmatprep.subr.bf16.mxu0 0
      %1483 = vmatpush1.bf16.msra.mxu0 %v1472
      %1484 = vmatprep.subr.bf16.mxu0 0
      %1485 = vmatpush1.bf16.msra.mxu0 %v1473
      %1486 = vmatprep.subr.bf16.mxu0 0
      %1487 = vmatpush1.bf16.msra.mxu0 0
      %1488 = vmatprep.subr.bf16.mxu0 0
      %1489 = vmatpush1.bf16.msra.mxu0 0
      %1490 = vmatprep.subr.bf16.mxu0 0
      %1491 = vmatpush1.bf16.msra.mxu0 0
      %1492 = vmatprep.subr.bf16.mxu0 0
      %1493 = vmatpush1.bf16.msra.mxu0 0
      %1494 = vmatprep.subr.bf16.mxu0 0
      %1495 = vmatpush1.bf16.msra.mxu0 0
      %1496 = vmatprep.subr.bf16.mxu0 0
      %1497 = vmatpush1.bf16.msra.mxu0 0
      %1498 = vmatprep.subr.bf16.mxu0 0
      %1499 = vmatpush1.bf16.msra.mxu0 0
      %1500 = vmatprep.subr.bf16.mxu0 0
      %1501 = vmatpush1.bf16.msra.mxu0 0
      %1502 = vmatprep.subr.bf16.mxu0 0
      %1503 = vmatpush1.bf16.msra.mxu0 0
      %1504 = vmatprep.subr.bf16.mxu0 0
      %1505 = vmatpush1.bf16.msra.mxu0 0
      %1506 = vmatprep.subr.bf16.mxu0 0
      %1507 = vmatpush1.bf16.msra.mxu0 0
      %1508 = vmatprep.subr.bf16.mxu0 0
      %1509 = vmatpush1.bf16.msra.mxu0 0
      %1510 = vmatprep.subr.bf16.mxu0 0
      %1511 = vmatpush1.bf16.msra.mxu0 0
      %1512 = vmatprep.subr.bf16.mxu0 0
      %1513 = vmatpush1.bf16.msra.mxu0 0
      %1514 = vmatprep.mubr.bf16.mxu0 0
      %1515 = vmatmul.mubr.bf16.gmra.mrb[0].mxu0 %v1477
      %v1516 = vpop.f32.mrb[0].mxu0
      %v1517 = vadd.f32 0.0, %v1516
      %v1518 = vpop.f32.mrb[0].mxu0
      %v1519 = vpop.f32.mrb[0].mxu0
      %v1520 = vadd.f32 0.0, %v1519
      %v1521 = vpop.f32.mrb[0].mxu0
      %1522 = vmatprep.mubr.bf16.mxu0 0
      %1523 = vmatmul.mubr.bf16.gmra.mrb[0].mxu0 %v1480
      %v1524 = vpop.f32.mrb[0].mxu0
      %v1525 = vadd.f32 0.0, %v1524
      %v1526 = vpop.f32.mrb[0].mxu0
      %v1527 = vpop.f32.mrb[0].mxu0
      %v1528 = vpop.f32.mrb[0].mxu0
      %1529 = vdwg.mxu0
      %v1530 = vadd.f32 %v1454, %v1517
      %v1531 = vadd.f32 %v1455, %v1520
      %v1532 = vadd.f32 %v1456, %v1525
      %v1533 = vpack.c.bf16 %v1056, %v1055
      %s1534 = scalar_lea.vmem %s3, 96
      %v1535 = vld [vmem:[%s1534] sm:$0xf]
      %v1536 = vld [vmem:[%s1534 + $0x4] sm:$0xf]
      %v1537 = vld [vmem:[%s1534 + $0x8] sm:$0xf]
      %v1538 = vld [vmem:[%s1534 + $0xc] sm:$0xf]
      %vm1541 = vcmask 1045504
      %v1542 = vrot.slane %v1457, 2
      %v1543 = vrot.slane %v1533, 2
      %v1544 = vsel %vm1541, %v1542, %v1543
      %v1549 = vunpack.c.l.b16 %v1535
      %v1550 = vunpack.c.l.b16 %v1536
      %v1551 = vunpack.c.l.b16 %v1537
      %v1552 = vunpack.c.l.b16 %v1538
      %v1553 = vpack.c.b16 %v1550, %v1549
      %v1554 = vpack.c.b16 %v1552, %v1551
      %v1558 = vsel %vm1097, %v1544, 0
      %v1561 = vsel %vm1097, %v1543, 0
      %1563 = vmatprep.subr.bf16.mxu0 0
      %1564 = vmatpush1.bf16.msra.mxu0 %v1553
      %1565 = vmatprep.subr.bf16.mxu0 0
      %1566 = vmatpush1.bf16.msra.mxu0 %v1554
      %1567 = vmatprep.subr.bf16.mxu0 0
      %1568 = vmatpush1.bf16.msra.mxu0 0
      %1569 = vmatprep.subr.bf16.mxu0 0
      %1570 = vmatpush1.bf16.msra.mxu0 0
      %1571 = vmatprep.subr.bf16.mxu0 0
      %1572 = vmatpush1.bf16.msra.mxu0 0
      %1573 = vmatprep.subr.bf16.mxu0 0
      %1574 = vmatpush1.bf16.msra.mxu0 0
      %1575 = vmatprep.subr.bf16.mxu0 0
      %1576 = vmatpush1.bf16.msra.mxu0 0
      %1577 = vmatprep.subr.bf16.mxu0 0
      %1578 = vmatpush1.bf16.msra.mxu0 0
      %1579 = vmatprep.subr.bf16.mxu0 0
      %1580 = vmatpush1.bf16.msra.mxu0 0
      %1581 = vmatprep.subr.bf16.mxu0 0
      %1582 = vmatpush1.bf16.msra.mxu0 0
      %1583 = vmatprep.subr.bf16.mxu0 0
      %1584 = vmatpush1.bf16.msra.mxu0 0
      %1585 = vmatprep.subr.bf16.mxu0 0
      %1586 = vmatpush1.bf16.msra.mxu0 0
      %1587 = vmatprep.subr.bf16.mxu0 0
      %1588 = vmatpush1.bf16.msra.mxu0 0
      %1589 = vmatprep.subr.bf16.mxu0 0
      %1590 = vmatpush1.bf16.msra.mxu0 0
      %1591 = vmatprep.subr.bf16.mxu0 0
      %1592 = vmatpush1.bf16.msra.mxu0 0
      %1593 = vmatprep.subr.bf16.mxu0 0
      %1594 = vmatpush1.bf16.msra.mxu0 0
      %1595 = vmatprep.mubr.bf16.mxu0 0
      %1596 = vmatmul.mubr.bf16.gmra.mrb[0].mxu0 %v1558
      %v1597 = vpop.f32.mrb[0].mxu0
      %v1598 = vadd.f32 0.0, %v1597
      %v1599 = vpop.f32.mrb[0].mxu0
      %v1600 = vpop.f32.mrb[0].mxu0
      %v1601 = vadd.f32 0.0, %v1600
      %v1602 = vpop.f32.mrb[0].mxu0
      %1603 = vmatprep.mubr.bf16.mxu0 0
      %1604 = vmatmul.mubr.bf16.gmra.mrb[0].mxu0 %v1561
      %v1605 = vpop.f32.mrb[0].mxu0
      %v1606 = vadd.f32 0.0, %v1605
      %v1607 = vpop.f32.mrb[0].mxu0
      %v1608 = vpop.f32.mrb[0].mxu0
      %v1609 = vpop.f32.mrb[0].mxu0
      %1610 = vdwg.mxu0
      %v1611 = vadd.f32 %v1530, %v1598
      %v1612 = vadd.f32 %v1531, %v1601
      %v1613 = vadd.f32 %v1532, %v1606
      %s1614 = scalar_lea.vmem %s3, 112
      %v1615 = vld [vmem:[%s1614] sm:$0xf]
      %v1616 = vld [vmem:[%s1614 + $0x4] sm:$0xf]
      %v1617 = vld [vmem:[%s1614 + $0x8] sm:$0xf]
      %v1618 = vld [vmem:[%s1614 + $0xc] sm:$0xf]
      %vm1619 = vsmask.f32 5376
      %v1620 = vshrl.u32 %v1457, 16
      %v1622 = vrot.slane %v1620, 2
      %v1623 = vshll.u32 %v1457, 16
      %v1625 = vrot.slane %v1623, 3
      %v1626 = vor.u32 %v1622, %v1625
      %v1628 = vshrl.u32 %v1533, 16
      %v1630 = vrot.slane %v1628, 2
      %v1631 = vshll.u32 %v1533, 16
      %v1633 = vrot.slane %v1631, 3
      %v1634 = vor.u32 %v1630, %v1633
      %v1635 = vsel %vm1619, %v1626, %v1634
      %v1640 = vunpack.c.l.b16 %v1615
      %v1641 = vunpack.c.l.b16 %v1616
      %v1642 = vunpack.c.l.b16 %v1617
      %v1643 = vunpack.c.l.b16 %v1618
      %v1644 = vpack.c.b16 %v1641, %v1640
      %v1645 = vpack.c.b16 %v1643, %v1642
      %v1649 = vsel %vm1097, %v1635, 0
      %v1652 = vsel %vm1097, %v1634, 0
      %1654 = vmatprep.subr.bf16.mxu0 0
      %1655 = vmatpush1.bf16.msra.mxu0 %v1644
      %1656 = vmatprep.subr.bf16.mxu0 0
      %1657 = vmatpush1.bf16.msra.mxu0 %v1645
      %1658 = vmatprep.subr.bf16.mxu0 0
      %1659 = vmatpush1.bf16.msra.mxu0 0
      %1660 = vmatprep.subr.bf16.mxu0 0
      %1661 = vmatpush1.bf16.msra.mxu0 0
      %1662 = vmatprep.subr.bf16.mxu0 0
      %1663 = vmatpush1.bf16.msra.mxu0 0
      %1664 = vmatprep.subr.bf16.mxu0 0
      %1665 = vmatpush1.bf16.msra.mxu0 0
      %1666 = vmatprep.subr.bf16.mxu0 0
      %1667 = vmatpush1.bf16.msra.mxu0 0
      %1668 = vmatprep.subr.bf16.mxu0 0
      %1669 = vmatpush1.bf16.msra.mxu0 0
      %1670 = vmatprep.subr.bf16.mxu0 0
      %1671 = vmatpush1.bf16.msra.mxu0 0
      %1672 = vmatprep.subr.bf16.mxu0 0
      %1673 = vmatpush1.bf16.msra.mxu0 0
      %1674 = vmatprep.subr.bf16.mxu0 0
      %1675 = vmatpush1.bf16.msra.mxu0 0
      %1676 = vmatprep.subr.bf16.mxu0 0
      %1677 = vmatpush1.bf16.msra.mxu0 0
      %1678 = vmatprep.subr.bf16.mxu0 0
      %1679 = vmatpush1.bf16.msra.mxu0 0
      %1680 = vmatprep.subr.bf16.mxu0 0
      %1681 = vmatpush1.bf16.msra.mxu0 0
      %1682 = vmatprep.subr.bf16.mxu0 0
      %1683 = vmatpush1.bf16.msra.mxu0 0
      %1684 = vmatprep.subr.bf16.mxu0 0
      %1685 = vmatpush1.bf16.msra.mxu0 0
      %1686 = vmatprep.mubr.bf16.mxu0 0
      %1687 = vmatmul.mubr.bf16.gmra.mrb[0].mxu0 %v1649
      %v1688 = vpop.f32.mrb[0].mxu0
      %v1689 = vadd.f32 0.0, %v1688
      %v1690 = vpop.f32.mrb[0].mxu0
      %v1691 = vpop.f32.mrb[0].mxu0
      %v1692 = vadd.f32 0.0, %v1691
      %v1693 = vpop.f32.mrb[0].mxu0
      %1694 = vmatprep.mubr.bf16.mxu0 0
      %1695 = vmatmul.mubr.bf16.gmra.mrb[0].mxu0 %v1652
      %v1696 = vpop.f32.mrb[0].mxu0
      %v1697 = vadd.f32 0.0, %v1696
      %v1698 = vpop.f32.mrb[0].mxu0
      %v1699 = vpop.f32.mrb[0].mxu0
      %v1700 = vpop.f32.mrb[0].mxu0
      %1701 = vdwg.mxu0
      %v1702 = vadd.f32 %v1611, %v1689
      %v1703 = vadd.f32 %v1612, %v1692
      %v1704 = vadd.f32 %v1613, %v1697
      %s1705 = scalar_lea.vmem %s3, 128
      %v1706 = vld [vmem:[%s1705] sm:$0xf]
      %v1707 = vld [vmem:[%s1705 + $0x4] sm:$0xf]
      %v1708 = vld [vmem:[%s1705 + $0x8] sm:$0xf]
      %v1709 = vld [vmem:[%s1705 + $0xc] sm:$0xf]
      %v1710 = vrot.slane %v1457, 3
      %v1711 = vrot.slane %v1533, 3
      %v1712 = vsel %vm1302, %v1710, %v1711
      %v1717 = vunpack.c.l.b16 %v1706
      %v1718 = vunpack.c.l.b16 %v1707
      %v1719 = vunpack.c.l.b16 %v1708
      %v1720 = vunpack.c.l.b16 %v1709
      %v1721 = vpack.c.b16 %v1718, %v1717
      %v1722 = vpack.c.b16 %v1720, %v1719
      %v1726 = vsel %vm1097, %v1712, 0
      %v1729 = vsel %vm1097, %v1711, 0
      %1731 = vmatprep.subr.bf16.mxu0 0
      %1732 = vmatpush1.bf16.msra.mxu0 %v1721
      %1733 = vmatprep.subr.bf16.mxu0 0
      %1734 = vmatpush1.bf16.msra.mxu0 %v1722
      %1735 = vmatprep.subr.bf16.mxu0 0
      %1736 = vmatpush1.bf16.msra.mxu0 0
      %1737 = vmatprep.subr.bf16.mxu0 0
      %1738 = vmatpush1.bf16.msra.mxu0 0
      %1739 = vmatprep.subr.bf16.mxu0 0
      %1740 = vmatpush1.bf16.msra.mxu0 0
      %1741 = vmatprep.subr.bf16.mxu0 0
      %1742 = vmatpush1.bf16.msra.mxu0 0
      %1743 = vmatprep.subr.bf16.mxu0 0
      %1744 = vmatpush1.bf16.msra.mxu0 0
      %1745 = vmatprep.subr.bf16.mxu0 0
      %1746 = vmatpush1.bf16.msra.mxu0 0
      %1747 = vmatprep.subr.bf16.mxu0 0
      %1748 = vmatpush1.bf16.msra.mxu0 0
      %1749 = vmatprep.subr.bf16.mxu0 0
      %1750 = vmatpush1.bf16.msra.mxu0 0
      %1751 = vmatprep.subr.bf16.mxu0 0
      %1752 = vmatpush1.bf16.msra.mxu0 0
      %1753 = vmatprep.subr.bf16.mxu0 0
      %1754 = vmatpush1.bf16.msra.mxu0 0
      %1755 = vmatprep.subr.bf16.mxu0 0
      %1756 = vmatpush1.bf16.msra.mxu0 0
      %1757 = vmatprep.subr.bf16.mxu0 0
      %1758 = vmatpush1.bf16.msra.mxu0 0
      %1759 = vmatprep.subr.bf16.mxu0 0
      %1760 = vmatpush1.bf16.msra.mxu0 0
      %1761 = vmatprep.subr.bf16.mxu0 0
      %1762 = vmatpush1.bf16.msra.mxu0 0
      %1763 = vmatprep.mubr.bf16.mxu0 0
      %1764 = vmatmul.mubr.bf16.gmra.mrb[0].mxu0 %v1726
      %v1765 = vpop.f32.mrb[0].mxu0
      %v1766 = vadd.f32 0.0, %v1765
      %v1767 = vpop.f32.mrb[0].mxu0
      %v1768 = vpop.f32.mrb[0].mxu0
      %v1769 = vadd.f32 0.0, %v1768
      %v1770 = vpop.f32.mrb[0].mxu0
      %1771 = vmatprep.mubr.bf16.mxu0 0
      %1772 = vmatmul.mubr.bf16.gmra.mrb[0].mxu0 %v1729
      %v1773 = vpop.f32.mrb[0].mxu0
      %v1774 = vadd.f32 0.0, %v1773
      %v1775 = vpop.f32.mrb[0].mxu0
      %v1776 = vpop.f32.mrb[0].mxu0
      %v1777 = vpop.f32.mrb[0].mxu0
      %1778 = vdwg.mxu0
      %v1779 = vadd.f32 %v1702, %v1766
      %v1780 = vadd.f32 %v1703, %v1769
      %v1781 = vadd.f32 %v1704, %v1774
      %v1782 = vmax.f32 %v1779, 0.0
      %v1783 = vmax.f32 %v1780, 0.0
      %v1784 = vmax.f32 %v1781, 0.0
      %v1785 = vpack.c.bf16 %v1783, %v1782
      %v1786 = vpack.c.bf16 %v1784, %v1784
      %v1787 = vld [vmem:[%s4] sm:$0xf]
      %vm1788 = vcmask 64512
      %v1790 = vsel %vm1788, %v1785, 0
      %v1793 = vsel %vm1788, %v1786, 0
      %vm1795 = vcmask 1043456
      %v1797 = vsel %vm1795, %v1787, 0
      %1799 = vmatprep.subr.bf16.mxu0 0
      %1800 = vmatpush1.bf16.msra.mxu0 %v1797
      %1801 = vmatprep.subr.bf16.mxu0 0
      %1802 = vmatpush1.bf16.msra.mxu0 0
      %1803 = vmatprep.subr.bf16.mxu0 0
      %1804 = vmatpush1.bf16.msra.mxu0 0
      %1805 = vmatprep.subr.bf16.mxu0 0
      %1806 = vmatpush1.bf16.msra.mxu0 0
      %1807 = vmatprep.subr.bf16.mxu0 0
      %1808 = vmatpush1.bf16.msra.mxu0 0
      %1809 = vmatprep.subr.bf16.mxu0 0
      %1810 = vmatpush1.bf16.msra.mxu0 0
      %1811 = vmatprep.subr.bf16.mxu0 0
      %1812 = vmatpush1.bf16.msra.mxu0 0
      %1813 = vmatprep.subr.bf16.mxu0 0
      %1814 = vmatpush1.bf16.msra.mxu0 0
      %1815 = vmatprep.subr.bf16.mxu0 0
      %1816 = vmatpush1.bf16.msra.mxu0 0
      %1817 = vmatprep.subr.bf16.mxu0 0
      %1818 = vmatpush1.bf16.msra.mxu0 0
      %1819 = vmatprep.subr.bf16.mxu0 0
      %1820 = vmatpush1.bf16.msra.mxu0 0
      %1821 = vmatprep.subr.bf16.mxu0 0
      %1822 = vmatpush1.bf16.msra.mxu0 0
      %1823 = vmatprep.subr.bf16.mxu0 0
      %1824 = vmatpush1.bf16.msra.mxu0 0
      %1825 = vmatprep.subr.bf16.mxu0 0
      %1826 = vmatpush1.bf16.msra.mxu0 0
      %1827 = vmatprep.subr.bf16.mxu0 0
      %1828 = vmatpush1.bf16.msra.mxu0 0
      %1829 = vmatprep.subr.bf16.mxu0 0
      %1830 = vmatpush1.bf16.msra.mxu0 0
      %1831 = vmatprep.mubr.bf16.mxu0 0
      %1832 = vmatmul.mubr.bf16.gmra.mrb[0].mxu0 %v1790
      %v1833 = vpop.f32.mrb[0].mxu0
      %v1834 = vadd.f32 0.0, %v1833
      %v1835 = vpop.f32.mrb[0].mxu0
      %v1836 = vpop.f32.mrb[0].mxu0
      %v1837 = vadd.f32 0.0, %v1836
      %v1838 = vpop.f32.mrb[0].mxu0
      %1839 = vmatprep.mubr.bf16.mxu0 0
      %1840 = vmatmul.mubr.bf16.gmra.mrb[0].mxu0 %v1793
      %v1841 = vpop.f32.mrb[0].mxu0
      %v1842 = vadd.f32 0.0, %v1841
      %v1843 = vpop.f32.mrb[0].mxu0
      %v1844 = vpop.f32.mrb[0].mxu0
      %v1845 = vpop.f32.mrb[0].mxu0
      %1846 = vdwg.mxu0
      %v1847 = vld [vmem:[#allocation2 + $0x7] sm:$0xff]
      %v1848 = vld [vmem:[#allocation2 + $0xf] sm:$0xff]
      %v1849 = vld [vmem:[#allocation2 + $0x17] sm:$0xff]
      %1851 = vset.pattern.permute.xlu0 0
      %1852 = vperm.xlu0 %1851, %v265
      %v1853 = vpop.permute.xlu0 %1852
      %1856 = vset.pattern.permute.xlu0 0
      %1857 = vperm.xlu0 %1856, %v266
      %v1858 = vpop.permute.xlu0 %1857
      %1861 = vset.pattern.permute.xlu0 0
      %1862 = vperm.xlu0 %1861, %v267
      %v1863 = vpop.permute.xlu0 %1862
      %v1865 = vmul.f32 %v1834, %v1853
      %v1866 = vmul.f32 %v1837, %v1858
      %v1867 = vmul.f32 %v1842, %v1863
      %v1868 = vadd.f32 %v1847, %v1865
      %v1869 = vadd.f32 %v1848, %v1866
      %v1870 = vadd.f32 %v1849, %v1867
      %1871 = vst.msk [vmem:[#allocation2 + $0x7] sm:$0xff] %vm1097, %v1868
      %1872 = vst.msk [vmem:[#allocation2 + $0xf] sm:$0xff] %vm1097, %v1869
      %1873 = vst.msk [vmem:[#allocation2 + $0x17] sm:$0xff] %vm1097, %v1870
      %p1874 = scmp.eq.s32.totalorder %s22, 1
      // Predicated region
      $region49: #{encoder_forward.5} parent=43 // pred_check
        %p1875 = pneg %p1874
      $region50: #{encoder_forward.5} parent=43 // pred_check_branch
        %1877 = sbr.rel (%p1875) target = $region52
      $region51: #{encoder_forward.5} parent=43 // pred_region
        %v1878 = vld [vmem:[#allocation2 + $0x7] sm:$0xff]
        %v1879 = vld [vmem:[#allocation2 + $0xf] sm:$0xff]
        %v1880 = vld [vmem:[#allocation2 + $0x17] sm:$0xff]
        %v1881 = vmax.f32 %v1878, 0.0
        %v1882 = vmax.f32 %v1879, 0.0
        %v1883 = vmax.f32 %v1880, 0.0
        %1884 = vst.msk [vmem:[%s263] sm:$0xff] %vm1097, %v1881
        %1885 = vst.msk [vmem:[%s263 + $0x8] sm:$0xff] %vm1097, %v1882
        %1886 = vst.msk [vmem:[%s263 + $0x10] sm:$0xff] %vm1097, %v1883
      $region52: #{encoder_forward.5} parent=43 // pred_fallthru
        _
      %p1887 = scmp.lt.s32.totalorder %s21, 1
      %s1888 = scalar_select %p1887, %s21, 1
      %s1889 = smul.addr %s1888, 3
      %s1890 = smul.addr %s1889, 8
      %s1891 = scalar_lea.vmem %s6, %s1890
      // Predicated region
      $region53: #{encoder_forward.5} parent=43 // pred_check
        %p1892 = pneg %p178
      $region54: #{encoder_forward.5} parent=43 // pred_check_branch
        %1894 = sbr.rel (%p1892) target = $region56
      $region55: #{encoder_forward.5} parent=43 // pred_region
        _
      $region56: #{encoder_forward.5} parent=43 // pred_fallthru
        _
    $region44: #{encoder_forward.5} parent=5 // pred_fallthru
      _
    %p1895 = scmp.le.s32.totalorder 2, %s12
    // Predicated region
    $region57: #{encoder_forward.5} parent=5 // pred_check
      %p1896 = pneg %p1895
    $region58: #{encoder_forward.5} parent=5 // pred_check_branch
      %1898 = sbr.rel (%p1896) target = $region60
    $region59: #{encoder_forward.5} parent=5 // pred_region
      %s1899 = ssub.s32 %s12, 2
      // Predicated region
      $region61: #{encoder_forward.5} parent=59 // pred_check
        %p1900 = pneg %p184
      $region62: #{encoder_forward.5} parent=59 // pred_check_branch
        %1902 = sbr.rel (%p1900) target = $region64
      $region63: #{encoder_forward.5} parent=59 // pred_region
        %p1903 = scmp.lt.s32.totalorder %s23, 1
        %s1904 = scalar_select %p1903, %s23, 1
        %s1905 = smul.addr %s1904, 3
        %s1906 = smul.addr %s1905, 8
        %s1907 = scalar_lea.vmem %s6, %s1906
      $region64: #{encoder_forward.5} parent=59 // pred_fallthru
        _
    $region60: #{encoder_forward.5} parent=5 // pred_fallthru
      _
  $region6: #{encoder_forward.5} parent=0 // loop_footer
    %s16 = sadd.s32 1, %s12
  $region7: #{encoder_forward.5} parent=0 // loop_footer_branch
    %11 = sbr.rel target = $region3
  $region8: #{encoder_forward.5} parent=0 // loop_exit
    _

</llo_original>
